<compile_context>
chip_gen: v7x
topology: tpu7x:2x2x1
jax: 0.10.0
libtpu: 0.0.40
codegen_flags: <defaults>
</compile_context>

<pallas_src>
from math import sqrt
import functools

import jax
import jax.numpy as jnp
from jax.experimental import pallas as pl
from jax.experimental.pallas import tpu as pltpu


# ----------------------------- in-kernel helpers -----------------------------

def _layer_norm_f32(x, gamma, beta, eps):
    # x: (M, D) f32; gamma/beta: (1, D) f32. Biased variance, same as torch.nn.LayerNorm.
    mean = jnp.mean(x, axis=-1, keepdims=True)
    var = jnp.mean((x - mean) ** 2, axis=-1, keepdims=True)
    return (x - mean) * jax.lax.rsqrt(var + eps) * gamma + beta


def _softmax_last(x):
    m = jnp.max(x, axis=-1, keepdims=True)
    e = jnp.exp(x - m)
    # reciprocal on the EUP slot (approx) instead of a VALU divide.
    return e * pl.reciprocal(jnp.sum(e, axis=-1, keepdims=True), approx=True)


def _gelu_exact(x):
    # torch.nn.GELU() default (erf based)
    return 0.5 * x * (1.0 + jax.lax.erf(x * 0.7071067811865476))


# ----------------------------- fused kernel ----------------------------------

def fused_encoder_kernel(emb_hbm, eg_ref, eb_ref,
                         ln1g_ref, ln1b_ref,
                         wqkv_ref, bqkv_ref, wo_ref, bo_ref,
                         ln2g_ref, ln2b_ref,
                         w1_ref, b1_ref, w2_ref, b2_ref,
                         o_ref, x_scr, attn_scr, dma_sem,
                         *, num_heads, head_dim_padded, b_block, seq_len):
    """One (batch block, layer) grid step of the full encoder.

    emb_hbm : (B*S, D) f32   token+position embeddings, left in HBM (pl.ANY)
    eg/eb   : (1, D)   f32   embedding LayerNorm params (eps 1e-12)
    ln*_    : (1, 1, D) f32  per-layer LayerNorm params (eps 1e-5)
    wqkv    : (1, D, 3*H*hd_pad) bf16, bqkv: (1, 1, 3*H*hd_pad) f32  fused/padded Q|K|V
    wo      : (1, H*hd_pad, D)  bf16, bo  : (1, 1, D) f32            attn output proj
    w1      : (1, D, 4D) bf16, b1: (1, 1, 4D) f32                    FFN up-projection
    w2      : (1, 4D, D) bf16, b2: (1, 1, D)  f32                    FFN down-projection
    o_ref   : (b_block*S, D) f32  output (written at the last layer only)
    x_scr   : (b_block*S, D) f32  VMEM-resident activation carried across layers
    attn_scr: (b_block*S, H*hd_pad) f32  lane-aligned per-head attention outputs
    """
    bb = pl.program_id(0)
    layer = pl.program_id(1)
    S = seq_len
    mb = b_block * S
    D = o_ref.shape[-1]
    hdp = head_dim_padded
    HP = num_heads * hdp
    bf16 = jnp.bfloat16

    # ---- layer 0: DMA embeddings (HBM -> x_scr) and fuse the embedding LayerNorm ----
    # emb is only consumed here, so it never occupies a pipelined VMEM buffer.
    @pl.when(layer == 0)
    def _():
        cp = pltpu.make_async_copy(emb_hbm.at[pl.ds(bb * mb, mb)], x_scr, dma_sem)
        cp.start()
        cp.wait()
        x_scr[...] = _layer_norm_f32(x_scr[...], eg_ref[...], eb_ref[...], 1e-12)

    x = x_scr[...]                                               # (mb, D) f32

    # ---- sublayer 1: pre-LN multi-head self-attention (no mask, as in reference) ----
    h = _layer_norm_f32(x, ln1g_ref[0], ln1b_ref[0], 1e-5)       # (mb, D) f32
    # One lane-dense MXU matmul for Q|K|V of all heads and the whole batch block.
    qkv = jnp.dot(h.astype(bf16), wqkv_ref[0],
                  preferred_element_type=jnp.float32) + bqkv_ref[0]   # (mb, 3*HP) f32

    # Per (batch element, head) attention.  All slices are sublane/lane aligned
    # (rows in multiples of S, lanes in multiples of hd_pad >= 128): no relayouts.
    # 1/sqrt(head_dim) is already folded into the Q weights -> no score scaling here.
    for b in range(b_block):                                     # static, unrolled
        r0 = b * S
        for hh in range(num_heads):                              # static, unrolled
            q0 = hh * hdp
            k0 = HP + q0
            v0 = 2 * HP + q0
            q_bh = qkv[r0:r0 + S, q0:q0 + hdp].astype(bf16)      # (S, hdp)
            k_bh = qkv[r0:r0 + S, k0:k0 + hdp].astype(bf16)
            v_bh = qkv[r0:r0 + S, v0:v0 + hdp].astype(bf16)
            scores = jax.lax.dot_general(                        # (S, S) f32
                q_bh, k_bh, (((1,), (1,)), ((), ())),
                preferred_element_type=jnp.float32)
            w = _softmax_last(scores)
            attn_scr[r0:r0 + S, q0:q0 + hdp] = jnp.dot(
                w.astype(bf16), v_bh, preferred_element_type=jnp.float32)

    # Output projection over the whole batch block at once (wo is padded to match the
    # lane-aligned head layout, so the concat is just the scratch itself).
    attn_out = jnp.dot(attn_scr[...].astype(bf16), wo_ref[0],
                       preferred_element_type=jnp.float32) + bo_ref[0]   # (mb, D)
    x = x + attn_out

    # ---- sublayer 2: pre-LN feed-forward (exact-erf GELU, dropout = identity) -------
    h2 = _layer_norm_f32(x, ln2g_ref[0], ln2b_ref[0], 1e-5)
    y = jnp.dot(h2.astype(bf16), w1_ref[0],
                preferred_element_type=jnp.float32) + b1_ref[0]          # (mb, 4D)
    y = _gelu_exact(y)
    y = jnp.dot(y.astype(bf16), w2_ref[0],
                preferred_element_type=jnp.float32) + b2_ref[0]          # (mb, D)
    x = x + y

    x_scr[...] = x                                               # stays resident in VMEM

    # Output writeback only once per batch block, at the last layer.  Correct because
    # the layer axis is the innermost grid axis and the output block index only changes
    # with the batch-block axis.
    @pl.when(layer == pl.num_programs(1) - 1)
    def _():
        o_ref[...] = x.astype(o_ref.dtype)


# ----------------------------- wrapper ----------------------------------------

def _vmem_limit_bytes():
    # Chip-aware VMEM budget: ~48 MiB on 64 MiB/TC chips (v7x), up to ~100 MiB on the
    # 128 MiB chips (v5e/v6e) so larger batch blocks / deeper weight buffering fit.
    try:
        cap = int(pltpu.get_tpu_info().vmem_capacity_bytes)
    except Exception:
        cap = 64 * 1024 * 1024
    return max(48 * 1024 * 1024, min(cap - 16 * 1024 * 1024, 100 * 1024 * 1024))


def transformer_encoder(input_ids, params, *, num_heads, b_block=8):
    """Full TransformerEncoder forward: embedding gather in plain JAX, everything else
    (embedding LN + all encoder layers) in a single fused pallas_call."""
    B, S = input_ids.shape
    D = params["tok_table"].shape[1]
    lw = params["layers"]
    L = lw["wqkv"].shape[0]
    HP = lw["wqkv"].shape[-1] // 3              # num_heads * head_dim_padded
    hd_pad = HP // num_heads

    # Largest divisor of B not exceeding the requested batch block.
    b_block = max(1, min(b_block, B))
    while B % b_block != 0:
        b_block -= 1
    Mb = b_block * S

    # Embedding lookup is a gather -> plain-JAX glue outside the kernel.  Kept f32 so it
    # can be DMA'd directly into the f32 activation scratch (no extra VMEM staging buf).
    tok = params["tok_table"][input_ids]                          # (B, S, D)
    pos = params["pos_table"][jnp.arange(S)]                      # (S, D)
    emb2d = (tok + pos[None, :, :]).astype(jnp.float32).reshape(B * S, D)

    weight_order = ["ln1_g", "ln1_b",
                    "wqkv", "bqkv", "wo", "bo",
                    "ln2_g", "ln2_b",
                    "w1", "b1", "w2", "b2"]
    weights = [lw[name] for name in weight_order]                 # all stacked (L, ...)

    def _stacked_spec(arr):
        return pl.BlockSpec((1,) + tuple(arr.shape[1:]), lambda b, l: (l, 0, 0))

    in_specs = [
        pl.BlockSpec(memory_space=pl.ANY),                        # emb stays in HBM
        pl.BlockSpec((1, D), lambda b, l: (0, 0)),                # emb_ln_g
        pl.BlockSpec((1, D), lambda b, l: (0, 0)),                # emb_ln_b
    ] + [_stacked_spec(w) for w in weights]                       # per-layer weights

    out_spec = pl.BlockSpec((Mb, D), lambda b, l: (b, 0))

    kernel = functools.partial(fused_encoder_kernel,
                               num_heads=num_heads, head_dim_padded=hd_pad,
                               b_block=b_block, seq_len=S)

    out2d = pl.pallas_call(
        kernel,
        out_shape=jax.ShapeDtypeStruct((B * S, D), jnp.float32),
        grid=(B // b_block, L),
        in_specs=in_specs,
        out_specs=out_spec,
        scratch_shapes=[
            pltpu.VMEM((Mb, D), jnp.float32),      # resident activation
            pltpu.VMEM((Mb, HP), jnp.float32),     # lane-aligned per-head attn outputs
            pltpu.SemaphoreType.DMA(()),           # embedding DMA semaphore
        ],
        compiler_params=pltpu.CompilerParams(
            # batch-block axis feeds both v7x TensorCores; layer axis (innermost) carries
            # the VMEM-resident activation.
            dimension_semantics=("parallel", "arbitrary"),
            vmem_limit_bytes=_vmem_limit_bytes()),
    )(emb2d, params["emb_ln_g"], params["emb_ln_b"], *weights)

    return out2d.reshape(B, S, D)


# ----------------------------- parameter init ---------------------------------

def init_params(key, vocab_size, window_size, embed_dim, num_heads, num_layers, lane=128):
    """Builds torch-equivalent parameters and packs them into the kernel layout:
       * per-head Q/K/V Linears fused into one (D, 3*H*hd_pad) operand,
       * every head zero-padded to its own 128-lane block,
       * the attention 1/sqrt(head_dim) scale folded into the Q weights & bias,
       * output projection rows re-laid-out to the padded head layout,
       * matmul operands cast to bf16 (biases / LayerNorm params stay f32)."""
    D = embed_dim
    hd = D // num_heads
    hd_pad = max(lane, ((hd + lane - 1) // lane) * lane)
    HP = num_heads * hd_pad
    scale = 1.0 / sqrt(hd)
    f32 = jnp.float32
    bf16 = jnp.bfloat16
    keys = jax.random.split(key, 2 + num_layers)

    params = {
        "tok_table": jax.random.normal(keys[0], (vocab_size, D), f32) * 0.02,
        "pos_table": jax.random.normal(keys[1], (window_size, D), f32) * 0.02,
        "emb_ln_g": jnp.ones((1, D), f32),
        "emb_ln_b": jnp.zeros((1, D), f32),
    }

    def pad_heads_w(w):   # (H, D, hd) -> (D, H*hd_pad): each head in its own lane block
        wp = jnp.pad(w, ((0, 0), (0, 0), (0, hd_pad - hd)))
        return wp.transpose(1, 0, 2).reshape(D, HP)

    def pad_heads_b(b):   # (H, hd) -> (1, H*hd_pad)
        return jnp.pad(b, ((0, 0), (0, hd_pad - hd))).reshape(1, HP)

    names = ["ln1_g", "ln1_b", "wqkv", "bqkv", "wo", "bo",
             "ln2_g", "ln2_b", "w1", "b1", "w2", "b2"]
    stacks = {n: [] for n in names}

    for l in range(num_layers):
        k = jax.random.split(keys[2 + l], 12)
        # torch-equivalent per-head Linear weights, stored pre-transposed as (in, out)
        wq = jax.random.normal(k[0], (num_heads, D, hd), f32) * 0.05
        bq = jax.random.normal(k[1], (num_heads, hd), f32) * 0.01
        wk = jax.random.normal(k[2], (num_heads, D, hd), f32) * 0.05
        bk = jax.random.normal(k[3], (num_heads, hd), f32) * 0.01
        wv = jax.random.normal(k[4], (num_heads, D, hd), f32) * 0.05
        bv = jax.random.normal(k[5], (num_heads, hd), f32) * 0.01
        wo = jax.random.normal(k[6], (D, D), f32) * 0.05
        bo = jax.random.normal(k[7], (1, D), f32) * 0.01
        w1 = jax.random.normal(k[8], (D, 4 * D), f32) * 0.05
        b1 = jax.random.normal(k[9], (1, 4 * D), f32) * 0.01
        w2 = jax.random.normal(k[10], (4 * D, D), f32) * 0.05
        b2 = jax.random.normal(k[11], (1, D), f32) * 0.01

        # Kernel-layout packing (mathematically identical to the torch module).
        wqkv = jnp.concatenate([pad_heads_w(wq * scale),       # scale folded into Q
                                pad_heads_w(wk),
                                pad_heads_w(wv)], axis=-1)     # (D, 3*HP)
        bqkv = jnp.concatenate([pad_heads_b(bq * scale),
                                pad_heads_b(bk),
                                pad_heads_b(bv)], axis=-1)     # (1, 3*HP)
        wo_pad = jnp.pad(wo.reshape(num_heads, hd, D),
                         ((0, 0), (0, hd_pad - hd), (0, 0))).reshape(HP, D)

        stacks["ln1_g"].append(jnp.ones((1, D), f32))
        stacks["ln1_b"].append(jnp.zeros((1, D), f32))
        stacks["wqkv"].append(wqkv)
        stacks["bqkv"].append(bqkv)
        stacks["wo"].append(wo_pad)
        stacks["bo"].append(bo)
        stacks["ln2_g"].append(jnp.ones((1, D), f32))
        stacks["ln2_b"].append(jnp.zeros((1, D), f32))
        stacks["w1"].append(w1)
        stacks["b1"].append(b1)
        stacks["w2"].append(w2)
        stacks["b2"].append(b2)

    matmul_weights = ("wqkv", "wo", "w1", "w2")
    layers = {}
    for n in names:
        arr = jnp.stack(stacks[n], axis=0)
        if n in matmul_weights:
            arr = arr.astype(bf16)          # bf16 MXU operands, biases/LN stay f32
        layers[n] = arr
    params["layers"] = layers
    return params


# ----------------------------- pure-JAX reference ------------------------------

def transformer_encoder_reference(input_ids, params, *, num_heads):
    """Plain-JAX reference using the same packed weights (padded heads contribute zero,
    the folded 1/sqrt(hd) scale replaces the explicit score scaling of the torch code)."""
    B, S = input_ids.shape
    D = params["tok_table"].shape[1]
    lw = params["layers"]
    HP = lw["wqkv"].shape[-1] // 3
    hd_pad = HP // num_heads
    bf16 = jnp.bfloat16

    def ln(x, g, b, eps):
        mean = jnp.mean(x, -1, keepdims=True)
        var = jnp.mean((x - mean) ** 2, -1, keepdims=True)
        return (x - mean) * jax.lax.rsqrt(var + eps) * g + b

    x = params["tok_table"][input_ids] + params["pos_table"][jnp.arange(S)][None]
    x = ln(x.astype(jnp.float32), params["emb_ln_g"], params["emb_ln_b"], 1e-12)

    L = lw["wqkv"].shape[0]
    for l in range(L):
        h = ln(x, lw["ln1_g"][l], lw["ln1_b"][l], 1e-5)
        qkv = jnp.dot(h.astype(bf16), lw["wqkv"][l],
                      preferred_element_type=jnp.float32) + lw["bqkv"][l]
        q = qkv[..., :HP].reshape(B, S, num_heads, hd_pad)
        k = qkv[..., HP:2 * HP].reshape(B, S, num_heads, hd_pad)
        v = qkv[..., 2 * HP:].reshape(B, S, num_heads, hd_pad)
        s = jnp.einsum("bqhd,bkhd->bhqk", q.astype(bf16), k.astype(bf16),
                       preferred_element_type=jnp.float32)      # scale already folded
        w = jax.nn.softmax(s, axis=-1)
        o = jnp.einsum("bhqk,bkhd->bqhd", w.astype(bf16), v.astype(bf16),
                       preferred_element_type=jnp.float32).reshape(B, S, HP)
        attn = jnp.dot(o.astype(bf16), lw["wo"][l],
                       preferred_element_type=jnp.float32) + lw["bo"][l]
        x = x + attn
        h2 = ln(x, lw["ln2_g"][l], lw["ln2_b"][l], 1e-5)
        y = jnp.dot(h2.astype(bf16), lw["w1"][l],
                    preferred_element_type=jnp.float32) + lw["b1"][l]
        y = 0.5 * y * (1.0 + jax.lax.erf(y * 0.7071067811865476))
        y = jnp.dot(y.astype(bf16), lw["w2"][l],
                    preferred_element_type=jnp.float32) + lw["b2"][l]
        x = x + y
    return x


# ----------------------------- main -------------------------------------------

if __name__ == "__main__":
    # Small config: embed_dim=32, window(seq)=8, vocab=50, 4 heads, 2 layers, batch=2
    B, S, D, H, L, V = 2, 8, 32, 4, 2, 50

    key = jax.random.PRNGKey(0)
    k_params, k_ids = jax.random.split(key)
    params = init_params(k_params, vocab_size=V, window_size=S,
                         embed_dim=D, num_heads=H, num_layers=L)
    input_ids = jax.random.randint(k_ids, (B, S), 0, V, dtype=jnp.int32)

    out = transformer_encoder(input_ids, params, num_heads=H, b_block=2)
    out = jax.block_until_ready(out)
    assert out.shape == (B, S, D), out.shape
    assert bool(jnp.all(jnp.isfinite(out)))

    # sanity check against a pure-JAX reference (approx softmax reciprocal + bf16
    # matmuls => loose tolerance)
    ref = transformer_encoder_reference(input_ids, params, num_heads=H)
    max_diff = float(jnp.max(jnp.abs(out - ref)))
    assert max_diff < 2e-2, f"max diff vs reference: {max_diff}"

    print("KERNEL_OK")
</pallas_src>

<mosaic_0001>
module attributes {stable_mosaic.version = 11 : i64} {
  func.func @fused_encoder_kernel(%arg0: i32, %arg1: i32, %arg2: memref<16x32xf32, #tpu.memory_space<any>>, %arg3: memref<1x32xf32, #tpu.memory_space<vmem>>, %arg4: memref<1x32xf32, #tpu.memory_space<vmem>>, %arg5: memref<1x1x32xf32, #tpu.memory_space<vmem>>, %arg6: memref<1x1x32xf32, #tpu.memory_space<vmem>>, %arg7: memref<1x32x1536xbf16, #tpu.memory_space<vmem>>, %arg8: memref<1x1x1536xf32, #tpu.memory_space<vmem>>, %arg9: memref<1x512x32xbf16, #tpu.memory_space<vmem>>, %arg10: memref<1x1x32xf32, #tpu.memory_space<vmem>>, %arg11: memref<1x1x32xf32, #tpu.memory_space<vmem>>, %arg12: memref<1x1x32xf32, #tpu.memory_space<vmem>>, %arg13: memref<1x32x128xbf16, #tpu.memory_space<vmem>>, %arg14: memref<1x1x128xf32, #tpu.memory_space<vmem>>, %arg15: memref<1x128x32xbf16, #tpu.memory_space<vmem>>, %arg16: memref<1x1x32xf32, #tpu.memory_space<vmem>>, %arg17: memref<16x32xf32, #tpu.memory_space<vmem>>, %arg18: memref<16x32xf32, #tpu.memory_space<vmem>>, %arg19: memref<16x512xf32, #tpu.memory_space<vmem>>, %arg20: memref<!tpu.dma_semaphore, #tpu.memory_space<semaphore_mem>>) attributes {dimension_semantics = [#tpu.dimension_semantics<parallel>, #tpu.dimension_semantics<arbitrary>], iteration_bounds = array<i64: 1, 2>, scalar_prefetch = 0 : i64, scratch_operands = 3 : i64, tpu.core_type = #tpu.core_type<tc>, window_params = [{}, {pipeline_mode = #tpu.pipeline_mode<synchronous>, transform_indices = @transform_1, window_bounds = array<i64: 1, 32>}, {pipeline_mode = #tpu.pipeline_mode<synchronous>, transform_indices = @transform_2, window_bounds = array<i64: 1, 32>}, {transform_indices = @transform_3, window_bounds = array<i64: 1, 1, 32>}, {transform_indices = @transform_4, window_bounds = array<i64: 1, 1, 32>}, {transform_indices = @transform_5, window_bounds = array<i64: 1, 32, 1536>}, {transform_indices = @transform_6, window_bounds = array<i64: 1, 1, 1536>}, {transform_indices = @transform_7, window_bounds = array<i64: 1, 512, 32>}, {transform_indices = @transform_8, window_bounds = array<i64: 1, 1, 32>}, {transform_indices = @transform_9, window_bounds = array<i64: 1, 1, 32>}, {transform_indices = @transform_10, window_bounds = array<i64: 1, 1, 32>}, {transform_indices = @transform_11, window_bounds = array<i64: 1, 32, 128>}, {transform_indices = @transform_12, window_bounds = array<i64: 1, 1, 128>}, {transform_indices = @transform_13, window_bounds = array<i64: 1, 128, 32>}, {transform_indices = @transform_14, window_bounds = array<i64: 1, 1, 32>}, {transform_indices = @transform_15, window_bounds = array<i64: 16, 32>}]} {
    %c0_i32 = arith.constant 0 : i32
    %0 = arith.cmpi eq, %arg1, %c0_i32 : i32
    %1 = arith.extui %0 : i1 to i32
    %c0_i32_0 = arith.constant 0 : i32
    %2 = arith.cmpi ne, %1, %c0_i32_0 : i32
    scf.if %2 {
      %c16_i32 = arith.constant 16 : i32
      %263 = arith.muli %arg0, %c16_i32 : i32
      %c0_i32_103 = arith.constant 0 : i32
      %264 = tpu.memref_slice %arg2[%263, %c0_i32_103] : memref<16x32xf32, #tpu.memory_space<any>> -> memref<16x32xf32, #tpu.memory_space<any>>
      tpu.enqueue_dma source(%264 : memref<16x32xf32, #tpu.memory_space<any>>) target(%arg18 : memref<16x32xf32, #tpu.memory_space<vmem>>) target_semaphore(%arg20 : memref<!tpu.dma_semaphore, #tpu.memory_space<semaphore_mem>>)
      %c0_i32_104 = arith.constant 0 : i32
      %265 = tpu.memref_slice %arg2[%263, %c0_i32_104] : memref<16x32xf32, #tpu.memory_space<any>> -> memref<16x32xf32, #tpu.memory_space<any>>
      tpu.wait_dma2 semaphore(%arg20 : memref<!tpu.dma_semaphore, #tpu.memory_space<semaphore_mem>>) src(%265 : memref<16x32xf32, #tpu.memory_space<any>>) dst(%arg18 : memref<16x32xf32, #tpu.memory_space<vmem>>)
      %c0_105 = arith.constant 0 : index
      %c0_106 = arith.constant 0 : index
      %266 = vector.load %arg18[%c0_105, %c0_106] : memref<16x32xf32, #tpu.memory_space<vmem>>, vector<16x32xf32>
      %c0_107 = arith.constant 0 : index
      %c0_108 = arith.constant 0 : index
      %267 = vector.load %arg3[%c0_107, %c0_108] : memref<1x32xf32, #tpu.memory_space<vmem>>, vector<1x32xf32>
      %c0_109 = arith.constant 0 : index
      %c0_110 = arith.constant 0 : index
      %268 = vector.load %arg4[%c0_109, %c0_110] : memref<1x32xf32, #tpu.memory_space<vmem>>, vector<1x32xf32>
      %cst_111 = arith.constant dense<0.000000e+00> : vector<16xf32>
      %269 = vector.multi_reduction <add>, %266, %cst_111 [1] : vector<16x32xf32> to vector<16xf32>
      %270 = vector.shape_cast %269 : vector<16xf32> to vector<16x1xf32>
      %cst_112 = arith.constant 3.200000e+01 : f32
      %271 = vector.broadcast %cst_112 : f32 to vector<16x1xf32>
      %272 = arith.divf %270, %271 : vector<16x1xf32>
      %273 = vector.broadcast %272 : vector<16x1xf32> to vector<16x32xf32>
      %274 = arith.subf %266, %273 : vector<16x32xf32>
      %275 = arith.mulf %274, %274 : vector<16x32xf32>
      %cst_113 = arith.constant dense<0.000000e+00> : vector<16xf32>
      %276 = vector.multi_reduction <add>, %275, %cst_113 [1] : vector<16x32xf32> to vector<16xf32>
      %277 = vector.shape_cast %276 : vector<16xf32> to vector<16x1xf32>
      %cst_114 = arith.constant 3.200000e+01 : f32
      %278 = vector.broadcast %cst_114 : f32 to vector<16x1xf32>
      %279 = arith.divf %277, %278 : vector<16x1xf32>
      %280 = vector.broadcast %272 : vector<16x1xf32> to vector<16x32xf32>
      %281 = arith.subf %266, %280 : vector<16x32xf32>
      %cst_115 = arith.constant 9.99999996E-13 : f32
      %282 = vector.broadcast %cst_115 : f32 to vector<16x1xf32>
      %283 = arith.addf %279, %282 : vector<16x1xf32>
      %284 = math.rsqrt %283 : vector<16x1xf32>
      %285 = vector.broadcast %284 : vector<16x1xf32> to vector<16x32xf32>
      %286 = arith.mulf %281, %285 : vector<16x32xf32>
      %287 = vector.broadcast %267 : vector<1x32xf32> to vector<16x32xf32>
      %288 = arith.mulf %286, %287 : vector<16x32xf32>
      %289 = vector.broadcast %268 : vector<1x32xf32> to vector<16x32xf32>
      %290 = arith.addf %288, %289 : vector<16x32xf32>
      %c0_116 = arith.constant 0 : index
      %c0_117 = arith.constant 0 : index
      %291 = vector.load %arg18[%c0_116, %c0_117] : memref<16x32xf32, #tpu.memory_space<vmem>>, vector<16x32xf32>
      tpu.vector_store %arg18[%c0_116, %c0_117], %290 {strides = array<i32>} : memref<16x32xf32, #tpu.memory_space<vmem>>, vector<16x32xf32>,
    } else {
    }
    %c0 = arith.constant 0 : index
    %c0_1 = arith.constant 0 : index
    %3 = vector.load %arg18[%c0, %c0_1] : memref<16x32xf32, #tpu.memory_space<vmem>>, vector<16x32xf32>
    %c0_2 = arith.constant 0 : index
    %c0_3 = arith.constant 0 : index
    %c0_4 = arith.constant 0 : index
    %4 = vector.load %arg5[%c0_2, %c0_3, %c0_4] : memref<1x1x32xf32, #tpu.memory_space<vmem>>, vector<1x1x32xf32>
    %5 = vector.shape_cast %4 : vector<1x1x32xf32> to vector<1x32xf32>
    %c0_5 = arith.constant 0 : index
    %c0_6 = arith.constant 0 : index
    %c0_7 = arith.constant 0 : index
    %6 = vector.load %arg6[%c0_5, %c0_6, %c0_7] : memref<1x1x32xf32, #tpu.memory_space<vmem>>, vector<1x1x32xf32>
    %7 = vector.shape_cast %6 : vector<1x1x32xf32> to vector<1x32xf32>
    %cst = arith.constant dense<0.000000e+00> : vector<16xf32>
    %8 = vector.multi_reduction <add>, %3, %cst [1] : vector<16x32xf32> to vector<16xf32>
    %9 = vector.shape_cast %8 : vector<16xf32> to vector<16x1xf32>
    %cst_8 = arith.constant 3.200000e+01 : f32
    %10 = vector.broadcast %cst_8 : f32 to vector<16x1xf32>
    %11 = arith.divf %9, %10 : vector<16x1xf32>
    %12 = vector.broadcast %11 : vector<16x1xf32> to vector<16x32xf32>
    %13 = arith.subf %3, %12 : vector<16x32xf32>
    %14 = arith.mulf %13, %13 : vector<16x32xf32>
    %cst_9 = arith.constant dense<0.000000e+00> : vector<16xf32>
    %15 = vector.multi_reduction <add>, %14, %cst_9 [1] : vector<16x32xf32> to vector<16xf32>
    %16 = vector.shape_cast %15 : vector<16xf32> to vector<16x1xf32>
    %cst_10 = arith.constant 3.200000e+01 : f32
    %17 = vector.broadcast %cst_10 : f32 to vector<16x1xf32>
    %18 = arith.divf %16, %17 : vector<16x1xf32>
    %19 = vector.broadcast %11 : vector<16x1xf32> to vector<16x32xf32>
    %20 = arith.subf %3, %19 : vector<16x32xf32>
    %cst_11 = arith.constant 9.99999974E-6 : f32
    %21 = vector.broadcast %cst_11 : f32 to vector<16x1xf32>
    %22 = arith.addf %18, %21 : vector<16x1xf32>
    %23 = math.rsqrt %22 : vector<16x1xf32>
    %24 = vector.broadcast %23 : vector<16x1xf32> to vector<16x32xf32>
    %25 = arith.mulf %20, %24 : vector<16x32xf32>
    %26 = vector.broadcast %5 : vector<1x32xf32> to vector<16x32xf32>
    %27 = arith.mulf %25, %26 : vector<16x32xf32>
    %28 = vector.broadcast %7 : vector<1x32xf32> to vector<16x32xf32>
    %29 = arith.addf %27, %28 : vector<16x32xf32>
    %30 = arith.truncf %29 : vector<16x32xf32> to vector<16x32xbf16>
    %c0_12 = arith.constant 0 : index
    %c0_13 = arith.constant 0 : index
    %c0_14 = arith.constant 0 : index
    %31 = vector.load %arg7[%c0_12, %c0_13, %c0_14] : memref<1x32x1536xbf16, #tpu.memory_space<vmem>>, vector<1x32x1536xbf16>
    %32 = vector.shape_cast %31 : vector<1x32x1536xbf16> to vector<32x1536xbf16>
    %cst_15 = arith.constant dense<0.000000e+00> : vector<16x1536xf32>
    %33 = tpu.matmul %30, %32, %cst_15 {dimension_numbers = #tpu.dot_dimension_numbers<[1], [0], [0], [1], [0, 0, 1, 1], [], []>} : vector<16x32xbf16>, vector<32x1536xbf16>, vector<16x1536xf32> -> vector<16x1536xf32>
    %c0_16 = arith.constant 0 : index
    %c0_17 = arith.constant 0 : index
    %c0_18 = arith.constant 0 : index
    %34 = vector.load %arg8[%c0_16, %c0_17, %c0_18] : memref<1x1x1536xf32, #tpu.memory_space<vmem>>, vector<1x1x1536xf32>
    %35 = vector.shape_cast %34 : vector<1x1x1536xf32> to vector<1x1536xf32>
    %36 = vector.broadcast %35 : vector<1x1536xf32> to vector<16x1536xf32>
    %37 = arith.addf %33, %36 : vector<16x1536xf32>
    %38 = vector.extract_strided_slice %37 {offsets = [0, 0], sizes = [8, 128], strides = [1, 1]} : vector<16x1536xf32> to vector<8x128xf32>
    %39 = arith.truncf %38 : vector<8x128xf32> to vector<8x128xbf16>
    %40 = vector.extract_strided_slice %37 {offsets = [0, 512], sizes = [8, 128], strides = [1, 1]} : vector<16x1536xf32> to vector<8x128xf32>
    %41 = arith.truncf %40 : vector<8x128xf32> to vector<8x128xbf16>
    %42 = vector.extract_strided_slice %37 {offsets = [0, 1024], sizes = [8, 128], strides = [1, 1]} : vector<16x1536xf32> to vector<8x128xf32>
    %43 = arith.truncf %42 : vector<8x128xf32> to vector<8x128xbf16>
    %cst_19 = arith.constant dense<0.000000e+00> : vector<8x8xf32>
    %44 = tpu.matmul %39, %41, %cst_19 {dimension_numbers = #tpu.dot_dimension_numbers<[1], [1], [0], [0], [0, 0, 1, 0], [], []>} : vector<8x128xbf16>, vector<8x128xbf16>, vector<8x8xf32> -> vector<8x8xf32>
    %cst_20 = arith.constant dense<0xFF800000> : vector<8xf32>
    %45 = vector.multi_reduction <maximumf>, %44, %cst_20 [1] : vector<8x8xf32> to vector<8xf32>
    %46 = vector.shape_cast %45 : vector<8xf32> to vector<8x1xf32>
    %47 = vector.broadcast %46 : vector<8x1xf32> to vector<8x8xf32>
    %48 = arith.subf %44, %47 : vector<8x8xf32>
    %49 = math.exp %48 : vector<8x8xf32>
    %cst_21 = arith.constant dense<0.000000e+00> : vector<8xf32>
    %50 = vector.multi_reduction <add>, %49, %cst_21 [1] : vector<8x8xf32> to vector<8xf32>
    %51 = vector.shape_cast %50 : vector<8xf32> to vector<8x1xf32>
    %52 = tpu.reciprocal %51 {approx = true} : vector<8x1xf32> -> vector<8x1xf32>
    %53 = vector.broadcast %52 : vector<8x1xf32> to vector<8x8xf32>
    %54 = arith.mulf %49, %53 : vector<8x8xf32>
    %55 = arith.truncf %54 : vector<8x8xf32> to vector<8x8xbf16>
    %cst_22 = arith.constant dense<0.000000e+00> : vector<8x128xf32>
    %56 = tpu.matmul %55, %43, %cst_22 {dimension_numbers = #tpu.dot_dimension_numbers<[1], [0], [0], [1], [0, 0, 1, 1], [], []>} : vector<8x8xbf16>, vector<8x128xbf16>, vector<8x128xf32> -> vector<8x128xf32>
    %c0_23 = arith.constant 0 : index
    %c0_24 = arith.constant 0 : index
    %57 = vector.load %arg19[%c0_23, %c0_24] : memref<16x512xf32, #tpu.memory_space<vmem>>, vector<8x128xf32>
    tpu.vector_store %arg19[%c0_23, %c0_24], %56 {strides = array<i32>} : memref<16x512xf32, #tpu.memory_space<vmem>>, vector<8x128xf32>,
    %58 = vector.extract_strided_slice %37 {offsets = [0, 128], sizes = [8, 128], strides = [1, 1]} : vector<16x1536xf32> to vector<8x128xf32>
    %59 = arith.truncf %58 : vector<8x128xf32> to vector<8x128xbf16>
    %60 = vector.extract_strided_slice %37 {offsets = [0, 640], sizes = [8, 128], strides = [1, 1]} : vector<16x1536xf32> to vector<8x128xf32>
    %61 = arith.truncf %60 : vector<8x128xf32> to vector<8x128xbf16>
    %62 = vector.extract_strided_slice %37 {offsets = [0, 1152], sizes = [8, 128], strides = [1, 1]} : vector<16x1536xf32> to vector<8x128xf32>
    %63 = arith.truncf %62 : vector<8x128xf32> to vector<8x128xbf16>
    %cst_25 = arith.constant dense<0.000000e+00> : vector<8x8xf32>
    %64 = tpu.matmul %59, %61, %cst_25 {dimension_numbers = #tpu.dot_dimension_numbers<[1], [1], [0], [0], [0, 0, 1, 0], [], []>} : vector<8x128xbf16>, vector<8x128xbf16>, vector<8x8xf32> -> vector<8x8xf32>
    %cst_26 = arith.constant dense<0xFF800000> : vector<8xf32>
    %65 = vector.multi_reduction <maximumf>, %64, %cst_26 [1] : vector<8x8xf32> to vector<8xf32>
    %66 = vector.shape_cast %65 : vector<8xf32> to vector<8x1xf32>
    %67 = vector.broadcast %66 : vector<8x1xf32> to vector<8x8xf32>
    %68 = arith.subf %64, %67 : vector<8x8xf32>
    %69 = math.exp %68 : vector<8x8xf32>
    %cst_27 = arith.constant dense<0.000000e+00> : vector<8xf32>
    %70 = vector.multi_reduction <add>, %69, %cst_27 [1] : vector<8x8xf32> to vector<8xf32>
    %71 = vector.shape_cast %70 : vector<8xf32> to vector<8x1xf32>
    %72 = tpu.reciprocal %71 {approx = true} : vector<8x1xf32> -> vector<8x1xf32>
    %73 = vector.broadcast %72 : vector<8x1xf32> to vector<8x8xf32>
    %74 = arith.mulf %69, %73 : vector<8x8xf32>
    %75 = arith.truncf %74 : vector<8x8xf32> to vector<8x8xbf16>
    %cst_28 = arith.constant dense<0.000000e+00> : vector<8x128xf32>
    %76 = tpu.matmul %75, %63, %cst_28 {dimension_numbers = #tpu.dot_dimension_numbers<[1], [0], [0], [1], [0, 0, 1, 1], [], []>} : vector<8x8xbf16>, vector<8x128xbf16>, vector<8x128xf32> -> vector<8x128xf32>
    %c0_29 = arith.constant 0 : index
    %c128 = arith.constant 128 : index
    %77 = vector.load %arg19[%c0_29, %c128] : memref<16x512xf32, #tpu.memory_space<vmem>>, vector<8x128xf32>
    tpu.vector_store %arg19[%c0_29, %c128], %76 {strides = array<i32>} : memref<16x512xf32, #tpu.memory_space<vmem>>, vector<8x128xf32>,
    %78 = vector.extract_strided_slice %37 {offsets = [0, 256], sizes = [8, 128], strides = [1, 1]} : vector<16x1536xf32> to vector<8x128xf32>
    %79 = arith.truncf %78 : vector<8x128xf32> to vector<8x128xbf16>
    %80 = vector.extract_strided_slice %37 {offsets = [0, 768], sizes = [8, 128], strides = [1, 1]} : vector<16x1536xf32> to vector<8x128xf32>
    %81 = arith.truncf %80 : vector<8x128xf32> to vector<8x128xbf16>
    %82 = vector.extract_strided_slice %37 {offsets = [0, 1280], sizes = [8, 128], strides = [1, 1]} : vector<16x1536xf32> to vector<8x128xf32>
    %83 = arith.truncf %82 : vector<8x128xf32> to vector<8x128xbf16>
    %cst_30 = arith.constant dense<0.000000e+00> : vector<8x8xf32>
    %84 = tpu.matmul %79, %81, %cst_30 {dimension_numbers = #tpu.dot_dimension_numbers<[1], [1], [0], [0], [0, 0, 1, 0], [], []>} : vector<8x128xbf16>, vector<8x128xbf16>, vector<8x8xf32> -> vector<8x8xf32>
    %cst_31 = arith.constant dense<0xFF800000> : vector<8xf32>
    %85 = vector.multi_reduction <maximumf>, %84, %cst_31 [1] : vector<8x8xf32> to vector<8xf32>
    %86 = vector.shape_cast %85 : vector<8xf32> to vector<8x1xf32>
    %87 = vector.broadcast %86 : vector<8x1xf32> to vector<8x8xf32>
    %88 = arith.subf %84, %87 : vector<8x8xf32>
    %89 = math.exp %88 : vector<8x8xf32>
    %cst_32 = arith.constant dense<0.000000e+00> : vector<8xf32>
    %90 = vector.multi_reduction <add>, %89, %cst_32 [1] : vector<8x8xf32> to vector<8xf32>
    %91 = vector.shape_cast %90 : vector<8xf32> to vector<8x1xf32>
    %92 = tpu.reciprocal %91 {approx = true} : vector<8x1xf32> -> vector<8x1xf32>
    %93 = vector.broadcast %92 : vector<8x1xf32> to vector<8x8xf32>
    %94 = arith.mulf %89, %93 : vector<8x8xf32>
    %95 = arith.truncf %94 : vector<8x8xf32> to vector<8x8xbf16>
    %cst_33 = arith.constant dense<0.000000e+00> : vector<8x128xf32>
    %96 = tpu.matmul %95, %83, %cst_33 {dimension_numbers = #tpu.dot_dimension_numbers<[1], [0], [0], [1], [0, 0, 1, 1], [], []>} : vector<8x8xbf16>, vector<8x128xbf16>, vector<8x128xf32> -> vector<8x128xf32>
    %c0_34 = arith.constant 0 : index
    %c256 = arith.constant 256 : index
    %97 = vector.load %arg19[%c0_34, %c256] : memref<16x512xf32, #tpu.memory_space<vmem>>, vector<8x128xf32>
    tpu.vector_store %arg19[%c0_34, %c256], %96 {strides = array<i32>} : memref<16x512xf32, #tpu.memory_space<vmem>>, vector<8x128xf32>,
    %98 = vector.extract_strided_slice %37 {offsets = [0, 384], sizes = [8, 128], strides = [1, 1]} : vector<16x1536xf32> to vector<8x128xf32>
    %99 = arith.truncf %98 : vector<8x128xf32> to vector<8x128xbf16>
    %100 = vector.extract_strided_slice %37 {offsets = [0, 896], sizes = [8, 128], strides = [1, 1]} : vector<16x1536xf32> to vector<8x128xf32>
    %101 = arith.truncf %100 : vector<8x128xf32> to vector<8x128xbf16>
    %102 = vector.extract_strided_slice %37 {offsets = [0, 1408], sizes = [8, 128], strides = [1, 1]} : vector<16x1536xf32> to vector<8x128xf32>
    %103 = arith.truncf %102 : vector<8x128xf32> to vector<8x128xbf16>
    %cst_35 = arith.constant dense<0.000000e+00> : vector<8x8xf32>
    %104 = tpu.matmul %99, %101, %cst_35 {dimension_numbers = #tpu.dot_dimension_numbers<[1], [1], [0], [0], [0, 0, 1, 0], [], []>} : vector<8x128xbf16>, vector<8x128xbf16>, vector<8x8xf32> -> vector<8x8xf32>
    %cst_36 = arith.constant dense<0xFF800000> : vector<8xf32>
    %105 = vector.multi_reduction <maximumf>, %104, %cst_36 [1] : vector<8x8xf32> to vector<8xf32>
    %106 = vector.shape_cast %105 : vector<8xf32> to vector<8x1xf32>
    %107 = vector.broadcast %106 : vector<8x1xf32> to vector<8x8xf32>
    %108 = arith.subf %104, %107 : vector<8x8xf32>
    %109 = math.exp %108 : vector<8x8xf32>
    %cst_37 = arith.constant dense<0.000000e+00> : vector<8xf32>
    %110 = vector.multi_reduction <add>, %109, %cst_37 [1] : vector<8x8xf32> to vector<8xf32>
    %111 = vector.shape_cast %110 : vector<8xf32> to vector<8x1xf32>
    %112 = tpu.reciprocal %111 {approx = true} : vector<8x1xf32> -> vector<8x1xf32>
    %113 = vector.broadcast %112 : vector<8x1xf32> to vector<8x8xf32>
    %114 = arith.mulf %109, %113 : vector<8x8xf32>
    %115 = arith.truncf %114 : vector<8x8xf32> to vector<8x8xbf16>
    %cst_38 = arith.constant dense<0.000000e+00> : vector<8x128xf32>
    %116 = tpu.matmul %115, %103, %cst_38 {dimension_numbers = #tpu.dot_dimension_numbers<[1], [0], [0], [1], [0, 0, 1, 1], [], []>} : vector<8x8xbf16>, vector<8x128xbf16>, vector<8x128xf32> -> vector<8x128xf32>
    %c0_39 = arith.constant 0 : index
    %c384 = arith.constant 384 : index
    %117 = vector.load %arg19[%c0_39, %c384] : memref<16x512xf32, #tpu.memory_space<vmem>>, vector<8x128xf32>
    tpu.vector_store %arg19[%c0_39, %c384], %116 {strides = array<i32>} : memref<16x512xf32, #tpu.memory_space<vmem>>, vector<8x128xf32>,
    %118 = vector.extract_strided_slice %37 {offsets = [8, 0], sizes = [8, 128], strides = [1, 1]} : vector<16x1536xf32> to vector<8x128xf32>
    %119 = arith.truncf %118 : vector<8x128xf32> to vector<8x128xbf16>
    %120 = vector.extract_strided_slice %37 {offsets = [8, 512], sizes = [8, 128], strides = [1, 1]} : vector<16x1536xf32> to vector<8x128xf32>
    %121 = arith.truncf %120 : vector<8x128xf32> to vector<8x128xbf16>
    %122 = vector.extract_strided_slice %37 {offsets = [8, 1024], sizes = [8, 128], strides = [1, 1]} : vector<16x1536xf32> to vector<8x128xf32>
    %123 = arith.truncf %122 : vector<8x128xf32> to vector<8x128xbf16>
    %cst_40 = arith.constant dense<0.000000e+00> : vector<8x8xf32>
    %124 = tpu.matmul %119, %121, %cst_40 {dimension_numbers = #tpu.dot_dimension_numbers<[1], [1], [0], [0], [0, 0, 1, 0], [], []>} : vector<8x128xbf16>, vector<8x128xbf16>, vector<8x8xf32> -> vector<8x8xf32>
    %cst_41 = arith.constant dense<0xFF800000> : vector<8xf32>
    %125 = vector.multi_reduction <maximumf>, %124, %cst_41 [1] : vector<8x8xf32> to vector<8xf32>
    %126 = vector.shape_cast %125 : vector<8xf32> to vector<8x1xf32>
    %127 = vector.broadcast %126 : vector<8x1xf32> to vector<8x8xf32>
    %128 = arith.subf %124, %127 : vector<8x8xf32>
    %129 = math.exp %128 : vector<8x8xf32>
    %cst_42 = arith.constant dense<0.000000e+00> : vector<8xf32>
    %130 = vector.multi_reduction <add>, %129, %cst_42 [1] : vector<8x8xf32> to vector<8xf32>
    %131 = vector.shape_cast %130 : vector<8xf32> to vector<8x1xf32>
    %132 = tpu.reciprocal %131 {approx = true} : vector<8x1xf32> -> vector<8x1xf32>
    %133 = vector.broadcast %132 : vector<8x1xf32> to vector<8x8xf32>
    %134 = arith.mulf %129, %133 : vector<8x8xf32>
    %135 = arith.truncf %134 : vector<8x8xf32> to vector<8x8xbf16>
    %cst_43 = arith.constant dense<0.000000e+00> : vector<8x128xf32>
    %136 = tpu.matmul %135, %123, %cst_43 {dimension_numbers = #tpu.dot_dimension_numbers<[1], [0], [0], [1], [0, 0, 1, 1], [], []>} : vector<8x8xbf16>, vector<8x128xbf16>, vector<8x128xf32> -> vector<8x128xf32>
    %c8 = arith.constant 8 : index
    %c0_44 = arith.constant 0 : index
    %137 = vector.load %arg19[%c8, %c0_44] : memref<16x512xf32, #tpu.memory_space<vmem>>, vector<8x128xf32>
    tpu.vector_store %arg19[%c8, %c0_44], %136 {strides = array<i32>} : memref<16x512xf32, #tpu.memory_space<vmem>>, vector<8x128xf32>,
    %138 = vector.extract_strided_slice %37 {offsets = [8, 128], sizes = [8, 128], strides = [1, 1]} : vector<16x1536xf32> to vector<8x128xf32>
    %139 = arith.truncf %138 : vector<8x128xf32> to vector<8x128xbf16>
    %140 = vector.extract_strided_slice %37 {offsets = [8, 640], sizes = [8, 128], strides = [1, 1]} : vector<16x1536xf32> to vector<8x128xf32>
    %141 = arith.truncf %140 : vector<8x128xf32> to vector<8x128xbf16>
    %142 = vector.extract_strided_slice %37 {offsets = [8, 1152], sizes = [8, 128], strides = [1, 1]} : vector<16x1536xf32> to vector<8x128xf32>
    %143 = arith.truncf %142 : vector<8x128xf32> to vector<8x128xbf16>
    %cst_45 = arith.constant dense<0.000000e+00> : vector<8x8xf32>
    %144 = tpu.matmul %139, %141, %cst_45 {dimension_numbers = #tpu.dot_dimension_numbers<[1], [1], [0], [0], [0, 0, 1, 0], [], []>} : vector<8x128xbf16>, vector<8x128xbf16>, vector<8x8xf32> -> vector<8x8xf32>
    %cst_46 = arith.constant dense<0xFF800000> : vector<8xf32>
    %145 = vector.multi_reduction <maximumf>, %144, %cst_46 [1] : vector<8x8xf32> to vector<8xf32>
    %146 = vector.shape_cast %145 : vector<8xf32> to vector<8x1xf32>
    %147 = vector.broadcast %146 : vector<8x1xf32> to vector<8x8xf32>
    %148 = arith.subf %144, %147 : vector<8x8xf32>
    %149 = math.exp %148 : vector<8x8xf32>
    %cst_47 = arith.constant dense<0.000000e+00> : vector<8xf32>
    %150 = vector.multi_reduction <add>, %149, %cst_47 [1] : vector<8x8xf32> to vector<8xf32>
    %151 = vector.shape_cast %150 : vector<8xf32> to vector<8x1xf32>
    %152 = tpu.reciprocal %151 {approx = true} : vector<8x1xf32> -> vector<8x1xf32>
    %153 = vector.broadcast %152 : vector<8x1xf32> to vector<8x8xf32>
    %154 = arith.mulf %149, %153 : vector<8x8xf32>
    %155 = arith.truncf %154 : vector<8x8xf32> to vector<8x8xbf16>
    %cst_48 = arith.constant dense<0.000000e+00> : vector<8x128xf32>
    %156 = tpu.matmul %155, %143, %cst_48 {dimension_numbers = #tpu.dot_dimension_numbers<[1], [0], [0], [1], [0, 0, 1, 1], [], []>} : vector<8x8xbf16>, vector<8x128xbf16>, vector<8x128xf32> -> vector<8x128xf32>
    %c8_49 = arith.constant 8 : index
    %c128_50 = arith.constant 128 : index
    %157 = vector.load %arg19[%c8_49, %c128_50] : memref<16x512xf32, #tpu.memory_space<vmem>>, vector<8x128xf32>
    tpu.vector_store %arg19[%c8_49, %c128_50], %156 {strides = array<i32>} : memref<16x512xf32, #tpu.memory_space<vmem>>, vector<8x128xf32>,
    %158 = vector.extract_strided_slice %37 {offsets = [8, 256], sizes = [8, 128], strides = [1, 1]} : vector<16x1536xf32> to vector<8x128xf32>
    %159 = arith.truncf %158 : vector<8x128xf32> to vector<8x128xbf16>
    %160 = vector.extract_strided_slice %37 {offsets = [8, 768], sizes = [8, 128], strides = [1, 1]} : vector<16x1536xf32> to vector<8x128xf32>
    %161 = arith.truncf %160 : vector<8x128xf32> to vector<8x128xbf16>
    %162 = vector.extract_strided_slice %37 {offsets = [8, 1280], sizes = [8, 128], strides = [1, 1]} : vector<16x1536xf32> to vector<8x128xf32>
    %163 = arith.truncf %162 : vector<8x128xf32> to vector<8x128xbf16>
    %cst_51 = arith.constant dense<0.000000e+00> : vector<8x8xf32>
    %164 = tpu.matmul %159, %161, %cst_51 {dimension_numbers = #tpu.dot_dimension_numbers<[1], [1], [0], [0], [0, 0, 1, 0], [], []>} : vector<8x128xbf16>, vector<8x128xbf16>, vector<8x8xf32> -> vector<8x8xf32>
    %cst_52 = arith.constant dense<0xFF800000> : vector<8xf32>
    %165 = vector.multi_reduction <maximumf>, %164, %cst_52 [1] : vector<8x8xf32> to vector<8xf32>
    %166 = vector.shape_cast %165 : vector<8xf32> to vector<8x1xf32>
    %167 = vector.broadcast %166 : vector<8x1xf32> to vector<8x8xf32>
    %168 = arith.subf %164, %167 : vector<8x8xf32>
    %169 = math.exp %168 : vector<8x8xf32>
    %cst_53 = arith.constant dense<0.000000e+00> : vector<8xf32>
    %170 = vector.multi_reduction <add>, %169, %cst_53 [1] : vector<8x8xf32> to vector<8xf32>
    %171 = vector.shape_cast %170 : vector<8xf32> to vector<8x1xf32>
    %172 = tpu.reciprocal %171 {approx = true} : vector<8x1xf32> -> vector<8x1xf32>
    %173 = vector.broadcast %172 : vector<8x1xf32> to vector<8x8xf32>
    %174 = arith.mulf %169, %173 : vector<8x8xf32>
    %175 = arith.truncf %174 : vector<8x8xf32> to vector<8x8xbf16>
    %cst_54 = arith.constant dense<0.000000e+00> : vector<8x128xf32>
    %176 = tpu.matmul %175, %163, %cst_54 {dimension_numbers = #tpu.dot_dimension_numbers<[1], [0], [0], [1], [0, 0, 1, 1], [], []>} : vector<8x8xbf16>, vector<8x128xbf16>, vector<8x128xf32> -> vector<8x128xf32>
    %c8_55 = arith.constant 8 : index
    %c256_56 = arith.constant 256 : index
    %177 = vector.load %arg19[%c8_55, %c256_56] : memref<16x512xf32, #tpu.memory_space<vmem>>, vector<8x128xf32>
    tpu.vector_store %arg19[%c8_55, %c256_56], %176 {strides = array<i32>} : memref<16x512xf32, #tpu.memory_space<vmem>>, vector<8x128xf32>,
    %178 = vector.extract_strided_slice %37 {offsets = [8, 384], sizes = [8, 128], strides = [1, 1]} : vector<16x1536xf32> to vector<8x128xf32>
    %179 = arith.truncf %178 : vector<8x128xf32> to vector<8x128xbf16>
    %180 = vector.extract_strided_slice %37 {offsets = [8, 896], sizes = [8, 128], strides = [1, 1]} : vector<16x1536xf32> to vector<8x128xf32>
    %181 = arith.truncf %180 : vector<8x128xf32> to vector<8x128xbf16>
    %182 = vector.extract_strided_slice %37 {offsets = [8, 1408], sizes = [8, 128], strides = [1, 1]} : vector<16x1536xf32> to vector<8x128xf32>
    %183 = arith.truncf %182 : vector<8x128xf32> to vector<8x128xbf16>
    %cst_57 = arith.constant dense<0.000000e+00> : vector<8x8xf32>
    %184 = tpu.matmul %179, %181, %cst_57 {dimension_numbers = #tpu.dot_dimension_numbers<[1], [1], [0], [0], [0, 0, 1, 0], [], []>} : vector<8x128xbf16>, vector<8x128xbf16>, vector<8x8xf32> -> vector<8x8xf32>
    %cst_58 = arith.constant dense<0xFF800000> : vector<8xf32>
    %185 = vector.multi_reduction <maximumf>, %184, %cst_58 [1] : vector<8x8xf32> to vector<8xf32>
    %186 = vector.shape_cast %185 : vector<8xf32> to vector<8x1xf32>
    %187 = vector.broadcast %186 : vector<8x1xf32> to vector<8x8xf32>
    %188 = arith.subf %184, %187 : vector<8x8xf32>
    %189 = math.exp %188 : vector<8x8xf32>
    %cst_59 = arith.constant dense<0.000000e+00> : vector<8xf32>
    %190 = vector.multi_reduction <add>, %189, %cst_59 [1] : vector<8x8xf32> to vector<8xf32>
    %191 = vector.shape_cast %190 : vector<8xf32> to vector<8x1xf32>
    %192 = tpu.reciprocal %191 {approx = true} : vector<8x1xf32> -> vector<8x1xf32>
    %193 = vector.broadcast %192 : vector<8x1xf32> to vector<8x8xf32>
    %194 = arith.mulf %189, %193 : vector<8x8xf32>
    %195 = arith.truncf %194 : vector<8x8xf32> to vector<8x8xbf16>
    %cst_60 = arith.constant dense<0.000000e+00> : vector<8x128xf32>
    %196 = tpu.matmul %195, %183, %cst_60 {dimension_numbers = #tpu.dot_dimension_numbers<[1], [0], [0], [1], [0, 0, 1, 1], [], []>} : vector<8x8xbf16>, vector<8x128xbf16>, vector<8x128xf32> -> vector<8x128xf32>
    %c8_61 = arith.constant 8 : index
    %c384_62 = arith.constant 384 : index
    %197 = vector.load %arg19[%c8_61, %c384_62] : memref<16x512xf32, #tpu.memory_space<vmem>>, vector<8x128xf32>
    tpu.vector_store %arg19[%c8_61, %c384_62], %196 {strides = array<i32>} : memref<16x512xf32, #tpu.memory_space<vmem>>, vector<8x128xf32>,
    %c0_63 = arith.constant 0 : index
    %c0_64 = arith.constant 0 : index
    %198 = vector.load %arg19[%c0_63, %c0_64] : memref<16x512xf32, #tpu.memory_space<vmem>>, vector<16x512xf32>
    %199 = arith.truncf %198 : vector<16x512xf32> to vector<16x512xbf16>
    %c0_65 = arith.constant 0 : index
    %c0_66 = arith.constant 0 : index
    %c0_67 = arith.constant 0 : index
    %200 = vector.load %arg9[%c0_65, %c0_66, %c0_67] : memref<1x512x32xbf16, #tpu.memory_space<vmem>>, vector<1x512x32xbf16>
    %201 = vector.shape_cast %200 : vector<1x512x32xbf16> to vector<512x32xbf16>
    %cst_68 = arith.constant dense<0.000000e+00> : vector<16x32xf32>
    %202 = tpu.matmul %199, %201, %cst_68 {dimension_numbers = #tpu.dot_dimension_numbers<[1], [0], [0], [1], [0, 0, 1, 1], [], []>} : vector<16x512xbf16>, vector<512x32xbf16>, vector<16x32xf32> -> vector<16x32xf32>
    %c0_69 = arith.constant 0 : index
    %c0_70 = arith.constant 0 : index
    %c0_71 = arith.constant 0 : index
    %203 = vector.load %arg10[%c0_69, %c0_70, %c0_71] : memref<1x1x32xf32, #tpu.memory_space<vmem>>, vector<1x1x32xf32>
    %204 = vector.shape_cast %203 : vector<1x1x32xf32> to vector<1x32xf32>
    %205 = vector.broadcast %204 : vector<1x32xf32> to vector<16x32xf32>
    %206 = arith.addf %202, %205 : vector<16x32xf32>
    %207 = arith.addf %3, %206 : vector<16x32xf32>
    %c0_72 = arith.constant 0 : index
    %c0_73 = arith.constant 0 : index
    %c0_74 = arith.constant 0 : index
    %208 = vector.load %arg11[%c0_72, %c0_73, %c0_74] : memref<1x1x32xf32, #tpu.memory_space<vmem>>, vector<1x1x32xf32>
    %209 = vector.shape_cast %208 : vector<1x1x32xf32> to vector<1x32xf32>
    %c0_75 = arith.constant 0 : index
    %c0_76 = arith.constant 0 : index
    %c0_77 = arith.constant 0 : index
    %210 = vector.load %arg12[%c0_75, %c0_76, %c0_77] : memref<1x1x32xf32, #tpu.memory_space<vmem>>, vector<1x1x32xf32>
    %211 = vector.shape_cast %210 : vector<1x1x32xf32> to vector<1x32xf32>
    %cst_78 = arith.constant dense<0.000000e+00> : vector<16xf32>
    %212 = vector.multi_reduction <add>, %207, %cst_78 [1] : vector<16x32xf32> to vector<16xf32>
    %213 = vector.shape_cast %212 : vector<16xf32> to vector<16x1xf32>
    %cst_79 = arith.constant 3.200000e+01 : f32
    %214 = vector.broadcast %cst_79 : f32 to vector<16x1xf32>
    %215 = arith.divf %213, %214 : vector<16x1xf32>
    %216 = vector.broadcast %215 : vector<16x1xf32> to vector<16x32xf32>
    %217 = arith.subf %207, %216 : vector<16x32xf32>
    %218 = arith.mulf %217, %217 : vector<16x32xf32>
    %cst_80 = arith.constant dense<0.000000e+00> : vector<16xf32>
    %219 = vector.multi_reduction <add>, %218, %cst_80 [1] : vector<16x32xf32> to vector<16xf32>
    %220 = vector.shape_cast %219 : vector<16xf32> to vector<16x1xf32>
    %cst_81 = arith.constant 3.200000e+01 : f32
    %221 = vector.broadcast %cst_81 : f32 to vector<16x1xf32>
    %222 = arith.divf %220, %221 : vector<16x1xf32>
    %223 = vector.broadcast %215 : vector<16x1xf32> to vector<16x32xf32>
    %224 = arith.subf %207, %223 : vector<16x32xf32>
    %cst_82 = arith.constant 9.99999974E-6 : f32
    %225 = vector.broadcast %cst_82 : f32 to vector<16x1xf32>
    %226 = arith.addf %222, %225 : vector<16x1xf32>
    %227 = math.rsqrt %226 : vector<16x1xf32>
    %228 = vector.broadcast %227 : vector<16x1xf32> to vector<16x32xf32>
    %229 = arith.mulf %224, %228 : vector<16x32xf32>
    %230 = vector.broadcast %209 : vector<1x32xf32> to vector<16x32xf32>
    %231 = arith.mulf %229, %230 : vector<16x32xf32>
    %232 = vector.broadcast %211 : vector<1x32xf32> to vector<16x32xf32>
    %233 = arith.addf %231, %232 : vector<16x32xf32>
    %234 = arith.truncf %233 : vector<16x32xf32> to vector<16x32xbf16>
    %c0_83 = arith.constant 0 : index
    %c0_84 = arith.constant 0 : index
    %c0_85 = arith.constant 0 : index
    %235 = vector.load %arg13[%c0_83, %c0_84, %c0_85] : memref<1x32x128xbf16, #tpu.memory_space<vmem>>, vector<1x32x128xbf16>
    %236 = vector.shape_cast %235 : vector<1x32x128xbf16> to vector<32x128xbf16>
    %cst_86 = arith.constant dense<0.000000e+00> : vector<16x128xf32>
    %237 = tpu.matmul %234, %236, %cst_86 {dimension_numbers = #tpu.dot_dimension_numbers<[1], [0], [0], [1], [0, 0, 1, 1], [], []>} : vector<16x32xbf16>, vector<32x128xbf16>, vector<16x128xf32> -> vector<16x128xf32>
    %c0_87 = arith.constant 0 : index
    %c0_88 = arith.constant 0 : index
    %c0_89 = arith.constant 0 : index
    %238 = vector.load %arg14[%c0_87, %c0_88, %c0_89] : memref<1x1x128xf32, #tpu.memory_space<vmem>>, vector<1x1x128xf32>
    %239 = vector.shape_cast %238 : vector<1x1x128xf32> to vector<1x128xf32>
    %240 = vector.broadcast %239 : vector<1x128xf32> to vector<16x128xf32>
    %241 = arith.addf %237, %240 : vector<16x128xf32>
    %cst_90 = arith.constant 5.000000e-01 : f32
    %242 = vector.broadcast %cst_90 : f32 to vector<16x128xf32>
    %243 = arith.mulf %242, %241 : vector<16x128xf32>
    %cst_91 = arith.constant 0.707106769 : f32
    %244 = vector.broadcast %cst_91 : f32 to vector<16x128xf32>
    %245 = arith.mulf %241, %244 : vector<16x128xf32>
    %246 = math.erf %245 : vector<16x128xf32>
    %cst_92 = arith.constant 1.000000e+00 : f32
    %247 = vector.broadcast %cst_92 : f32 to vector<16x128xf32>
    %248 = arith.addf %247, %246 : vector<16x128xf32>
    %249 = arith.mulf %243, %248 : vector<16x128xf32>
    %250 = arith.truncf %249 : vector<16x128xf32> to vector<16x128xbf16>
    %c0_93 = arith.constant 0 : index
    %c0_94 = arith.constant 0 : index
    %c0_95 = arith.constant 0 : index
    %251 = vector.load %arg15[%c0_93, %c0_94, %c0_95] : memref<1x128x32xbf16, #tpu.memory_space<vmem>>, vector<1x128x32xbf16>
    %252 = vector.shape_cast %251 : vector<1x128x32xbf16> to vector<128x32xbf16>
    %cst_96 = arith.constant dense<0.000000e+00> : vector<16x32xf32>
    %253 = tpu.matmul %250, %252, %cst_96 {dimension_numbers = #tpu.dot_dimension_numbers<[1], [0], [0], [1], [0, 0, 1, 1], [], []>} : vector<16x128xbf16>, vector<128x32xbf16>, vector<16x32xf32> -> vector<16x32xf32>
    %c0_97 = arith.constant 0 : index
    %c0_98 = arith.constant 0 : index
    %c0_99 = arith.constant 0 : index
    %254 = vector.load %arg16[%c0_97, %c0_98, %c0_99] : memref<1x1x32xf32, #tpu.memory_space<vmem>>, vector<1x1x32xf32>
    %255 = vector.shape_cast %254 : vector<1x1x32xf32> to vector<1x32xf32>
    %256 = vector.broadcast %255 : vector<1x32xf32> to vector<16x32xf32>
    %257 = arith.addf %253, %256 : vector<16x32xf32>
    %258 = arith.addf %207, %257 : vector<16x32xf32>
    %c0_100 = arith.constant 0 : index
    %c0_101 = arith.constant 0 : index
    %259 = vector.load %arg18[%c0_100, %c0_101] : memref<16x32xf32, #tpu.memory_space<vmem>>, vector<16x32xf32>
    tpu.vector_store %arg18[%c0_100, %c0_101], %258 {strides = array<i32>} : memref<16x32xf32, #tpu.memory_space<vmem>>, vector<16x32xf32>,
    %c1_i32 = arith.constant 1 : i32
    %260 = arith.cmpi eq, %arg1, %c1_i32 : i32
    %261 = arith.extui %260 : i1 to i32
    %c0_i32_102 = arith.constant 0 : i32
    %262 = arith.cmpi ne, %261, %c0_i32_102 : i32
    scf.if %262 {
      %c0_103 = arith.constant 0 : index
      %c0_104 = arith.constant 0 : index
      %263 = vector.load %arg17[%c0_103, %c0_104] : memref<16x32xf32, #tpu.memory_space<vmem>>, vector<16x32xf32>
      tpu.vector_store %arg17[%c0_103, %c0_104], %258 {strides = array<i32>} : memref<16x32xf32, #tpu.memory_space<vmem>>, vector<16x32xf32>,
    } else {
    }
    return
  }
  func.func @transform_1(%arg0: i32, %arg1: i32) -> (i32, i32) {
    %c0_i32 = arith.constant 0 : i32
    %c0_i32_0 = arith.constant 0 : i32
    %c0_i32_1 = arith.constant 0 : i32
    return %c0_i32, %c0_i32_0 : i32, i32
  }
  func.func @transform_2(%arg0: i32, %arg1: i32) -> (i32, i32) {
    %c0_i32 = arith.constant 0 : i32
    %c0_i32_0 = arith.constant 0 : i32
    %c0_i32_1 = arith.constant 0 : i32
    return %c0_i32, %c0_i32_0 : i32, i32
  }
  func.func @transform_3(%arg0: i32, %arg1: i32) -> (i32, i32, i32) {
    %c0_i32 = arith.constant 0 : i32
    %c0_i32_0 = arith.constant 0 : i32
    %c0_i32_1 = arith.constant 0 : i32
    return %arg1, %c0_i32, %c0_i32_0 : i32, i32, i32
  }
  func.func @transform_4(%arg0: i32, %arg1: i32) -> (i32, i32, i32) {
    %c0_i32 = arith.constant 0 : i32
    %c0_i32_0 = arith.constant 0 : i32
    %c0_i32_1 = arith.constant 0 : i32
    return %arg1, %c0_i32, %c0_i32_0 : i32, i32, i32
  }
  func.func @transform_5(%arg0: i32, %arg1: i32) -> (i32, i32, i32) {
    %c0_i32 = arith.constant 0 : i32
    %c0_i32_0 = arith.constant 0 : i32
    %c0_i32_1 = arith.constant 0 : i32
    return %arg1, %c0_i32, %c0_i32_0 : i32, i32, i32
  }
  func.func @transform_6(%arg0: i32, %arg1: i32) -> (i32, i32, i32) {
    %c0_i32 = arith.constant 0 : i32
    %c0_i32_0 = arith.constant 0 : i32
    %c0_i32_1 = arith.constant 0 : i32
    return %arg1, %c0_i32, %c0_i32_0 : i32, i32, i32
  }
  func.func @transform_7(%arg0: i32, %arg1: i32) -> (i32, i32, i32) {
    %c0_i32 = arith.constant 0 : i32
    %c0_i32_0 = arith.constant 0 : i32
    %c0_i32_1 = arith.constant 0 : i32
    return %arg1, %c0_i32, %c0_i32_0 : i32, i32, i32
  }
  func.func @transform_8(%arg0: i32, %arg1: i32) -> (i32, i32, i32) {
    %c0_i32 = arith.constant 0 : i32
    %c0_i32_0 = arith.constant 0 : i32
    %c0_i32_1 = arith.constant 0 : i32
    return %arg1, %c0_i32, %c0_i32_0 : i32, i32, i32
  }
  func.func @transform_9(%arg0: i32, %arg1: i32) -> (i32, i32, i32) {
    %c0_i32 = arith.constant 0 : i32
    %c0_i32_0 = arith.constant 0 : i32
    %c0_i32_1 = arith.constant 0 : i32
    return %arg1, %c0_i32, %c0_i32_0 : i32, i32, i32
  }
  func.func @transform_10(%arg0: i32, %arg1: i32) -> (i32, i32, i32) {
    %c0_i32 = arith.constant 0 : i32
    %c0_i32_0 = arith.constant 0 : i32
    %c0_i32_1 = arith.constant 0 : i32
    return %arg1, %c0_i32, %c0_i32_0 : i32, i32, i32
  }
  func.func @transform_11(%arg0: i32, %arg1: i32) -> (i32, i32, i32) {
    %c0_i32 = arith.constant 0 : i32
    %c0_i32_0 = arith.constant 0 : i32
    %c0_i32_1 = arith.constant 0 : i32
    return %arg1, %c0_i32, %c0_i32_0 : i32, i32, i32
  }
  func.func @transform_12(%arg0: i32, %arg1: i32) -> (i32, i32, i32) {
    %c0_i32 = arith.constant 0 : i32
    %c0_i32_0 = arith.constant 0 : i32
    %c0_i32_1 = arith.constant 0 : i32
    return %arg1, %c0_i32, %c0_i32_0 : i32, i32, i32
  }
  func.func @transform_13(%arg0: i32, %arg1: i32) -> (i32, i32, i32) {
    %c0_i32 = arith.constant 0 : i32
    %c0_i32_0 = arith.constant 0 : i32
    %c0_i32_1 = arith.constant 0 : i32
    return %arg1, %c0_i32, %c0_i32_0 : i32, i32, i32
  }
  func.func @transform_14(%arg0: i32, %arg1: i32) -> (i32, i32, i32) {
    %c0_i32 = arith.constant 0 : i32
    %c0_i32_0 = arith.constant 0 : i32
    %c0_i32_1 = arith.constant 0 : i32
    return %arg1, %c0_i32, %c0_i32_0 : i32, i32, i32
  }
  func.func @transform_15(%arg0: i32, %arg1: i32) -> (i32, i32) {
    %c0_i32 = arith.constant 0 : i32
    %c0_i32_0 = arith.constant 0 : i32
    return %arg0, %c0_i32 : i32, i32
  }
}

</mosaic_0001>

<llo_original>
// kernel: tpu_custom_call.1
$region0: #{tpu_custom_call.1}
  #allocation0 [shape = 'u32[]', space=smem, size = 0x4, offset = 0x4, fixed_abs, tag = 'smem constant byte address 0x4 - core index']
  #allocation1 [shape = 'u32[144,128]{1,0:T(1,128)}', space=vmem, size = 0x12000, scoped, tag = 'internal scratch']
  #allocation2 [shape = 'f32[16,32]{1,0:T(8,128)}', space=vmem, size = 0x2000, scoped, tag = 'scratch operand']
  #allocation3 [shape = 'f32[16,512]{1,0:T(8,128)}', space=vmem, size = 0x8000, scoped, tag = 'scratch operand']
  #allocation4 [shape = 's32[1]{0}', space=sflag, size = 0x4, scoped, tag = 'scratch operand']
  #allocation7 [shape = 's32[]', space=sflag, size = 0x4, offset = 0, fixed_abs, tag = 'sflag constant byte address 0x0 - dummy sync flag']
  %s0 = inlined_call_operand.vmem [shape: f32[16,32], index: 0, kind: input, shape index: {}]
  %s1 = inlined_call_operand.vmem [shape: f32[1,32], index: 1, kind: input, shape index: {}]
  %s2 = inlined_call_operand.vmem [shape: f32[1,32], index: 2, kind: input, shape index: {}]
  %s3 = inlined_call_operand.vmem [shape: f32[2,1,32], index: 3, kind: input, shape index: {}]
  %s4 = inlined_call_operand.vmem [shape: f32[2,1,32], index: 4, kind: input, shape index: {}]
  %s5 = inlined_call_operand.vmem [shape: bf16[2,32,1536], index: 5, kind: input, shape index: {}]
  %s6 = inlined_call_operand.vmem [shape: f32[2,1,1536], index: 6, kind: input, shape index: {}]
  %s7 = inlined_call_operand.vmem [shape: bf16[2,512,32], index: 7, kind: input, shape index: {}]
  %s8 = inlined_call_operand.vmem [shape: f32[2,1,32], index: 8, kind: input, shape index: {}]
  %s9 = inlined_call_operand.vmem [shape: f32[2,1,32], index: 9, kind: input, shape index: {}]
  %s10 = inlined_call_operand.vmem [shape: f32[2,1,32], index: 10, kind: input, shape index: {}]
  %s11 = inlined_call_operand.vmem [shape: bf16[2,32,128], index: 11, kind: input, shape index: {}]
  %s12 = inlined_call_operand.vmem [shape: f32[2,1,128], index: 12, kind: input, shape index: {}]
  %s13 = inlined_call_operand.vmem [shape: bf16[2,128,32], index: 13, kind: input, shape index: {}]
  %s14 = inlined_call_operand.vmem [shape: f32[2,1,32], index: 14, kind: input, shape index: {}]
  %s15 = inlined_call_operand.hbm [shape: f32[16,32], index: 15, kind: output, shape index: {}]
  %s16 = sld [smem:[#allocation0]]
  $region131: #{tpu_custom_call.1} parent=0
    _
  %s18 = ssub.s32 1, %s16
  %s19 = scalar_select 0, %s18, %s16
  $region1: #{tpu_custom_call.1} parent=0
    #allocation5 [shape = 'u8[8192]{0}', space=vmem, size = 0x2000, scoped, tag = 'output window, operand 0, single buffered']
    #allocation6 [shape = 's32[2]{0}', space=sflag, size = 0x8, scoped, tag = 'scoped memory for tpu_custom_call.1']
    %20 = vsyncpa [#allocation6], 0
    loop: start=0, step=1, limit=4
    $region2: #{tpu_custom_call.1} parent=1 // loop_pre_header
      _
    $region3: #{tpu_custom_call.1} parent=1 // loop_header
      %s22 = sphi 0, %s26
      %p23 = scmp.ge.s32.totalorder %s22, 4
      %s29 = sphi 0, %s41
      %s30 = sphi 0, %s37
      %s31 = sphi 0, %s29
      %s32 = sphi 0, %s30
      %s33 = sphi 0, %s31
      %s34 = sphi 0, %s32
      %s42 = sphi 0, %s42
      %s44 = sphi 0, %s42
      %s45 = sphi 0, %s44
      %s59 = sphi 0, %s45
      %s63 = sphi 0, %s63
      %s65 = sphi 0, %s63
      %s66 = sphi 0, %s65
      %s80 = sphi 0, %s66
      %s86 = sphi 0, %s88
      %s89 = sphi 0, %s86
      %s90 = sphi 0, %s89
      %s106 = sphi 0, %s90
      %s112 = sphi 0, %s114
      %s115 = sphi 0, %s112
      %s116 = sphi 0, %s115
      %s132 = sphi 0, %s116
      %s138 = sphi 0, %s140
      %s141 = sphi 0, %s138
      %s142 = sphi 0, %s141
      %s158 = sphi 0, %s142
      %s164 = sphi 0, %s166
      %s167 = sphi 0, %s164
      %s168 = sphi 0, %s167
      %s184 = sphi 0, %s168
      %s190 = sphi 0, %s192
      %s193 = sphi 0, %s190
      %s194 = sphi 0, %s193
      %s210 = sphi 0, %s194
      %s216 = sphi 0, %s218
      %s219 = sphi 0, %s216
      %s220 = sphi 0, %s219
      %s236 = sphi 0, %s220
      %s242 = sphi 0, %s244
      %s245 = sphi 0, %s242
      %s246 = sphi 0, %s245
      %s262 = sphi 0, %s246
      %s268 = sphi 0, %s270
      %s271 = sphi 0, %s268
      %s272 = sphi 0, %s271
      %s288 = sphi 0, %s272
      %s294 = sphi 0, %s296
      %s297 = sphi 0, %s294
      %s298 = sphi 0, %s297
      %s314 = sphi 0, %s298
      %s320 = sphi 0, %s322
      %s323 = sphi 0, %s320
      %s324 = sphi 0, %s323
      %s340 = sphi 0, %s324
      %s346 = sphi 0, %s348
      %s349 = sphi 0, %s346
      %s350 = sphi 0, %s349
      %s366 = sphi 0, %s350
      %s372 = sphi 0, %s374
      %s375 = sphi 0, %s372
      %s376 = sphi 0, %s375
      %s392 = sphi 0, %s376
      %s398 = sphi 0, %s400
      %s401 = sphi 0, %s398
      %s402 = sphi 0, %s401
      %s418 = sphi 0, %s402
    $region4: #{tpu_custom_call.1} parent=1 // loop_header_branch
      %25 = sbr.rel (%p23) target = $region8
    $region5: #{tpu_custom_call.1} parent=1 // loop_body
      %s27 = ssub.s32 %s22, 1
      %s28 = ssub.s32 %s22, 2
      %s35 = sadd.s32 1, %s30
      %p36 = scmp.ge.s32.totalorder %s35, 2
      %s37 = scalar_select %p36, 0, %s35
      %s38 = sadd.s32 1, %s29
      %s39 = scalar_select %p36, %s38, %s29
      %p40 = scmp.ge.s32.totalorder %s39, 1
      %s41 = scalar_select %p40, 0, %s39
      %s43 = sadd.s32 %s42, 1
      %p46 = scmp.eq.s32.totalorder %s22, 1
      %p47 = scmp.ne.s32.totalorder %s42, %s44
      %p48 = scmp.eq.s32.totalorder %s22, 0
      %p49 = por %p47, %p48
      %p50 = scmp.ne.s32.totalorder %s42, %s44
      %p51 = scmp.eq.s32.totalorder %s27, 1
      %p52 = por %p50, %p51
      %p53 = scmp.ne.s32.totalorder %s44, %s45
      %p54 = scmp.eq.s32.totalorder %s27, 0
      %p55 = por %p53, %p54
      %p56 = scmp.ne.s32.totalorder %s44, %s45
      %p57 = scmp.eq.s32.totalorder %s28, 1
      %p58 = por %p56, %p57
      %p60 = scmp.ne.s32.totalorder %s45, %s59
      %p61 = scmp.eq.s32.totalorder %s28, 0
      %p62 = por %p60, %p61
      %s64 = sadd.s32 %s63, 1
      %p67 = scmp.eq.s32.totalorder %s22, 1
      %p68 = scmp.ne.s32.totalorder %s63, %s65
      %p69 = scmp.eq.s32.totalorder %s22, 0
      %p70 = por %p68, %p69
      %p71 = scmp.ne.s32.totalorder %s63, %s65
      %p72 = scmp.eq.s32.totalorder %s27, 1
      %p73 = por %p71, %p72
      %p74 = scmp.ne.s32.totalorder %s65, %s66
      %p75 = scmp.eq.s32.totalorder %s27, 0
      %p76 = por %p74, %p75
      %p77 = scmp.ne.s32.totalorder %s65, %s66
      %p78 = scmp.eq.s32.totalorder %s28, 1
      %p79 = por %p77, %p78
      %p81 = scmp.ne.s32.totalorder %s66, %s80
      %p82 = scmp.eq.s32.totalorder %s28, 0
      %p83 = por %p81, %p82
      %s84 = ssub.s32 %s30, %s37
      %p85 = scmp.eq.s32.totalorder %s84, 0
      %s87 = sadd.s32 %s86, 1
      %s88 = scalar_select %p85, %s86, %s87
      %p91 = pneg %p85
      %p92 = scmp.eq.s32.totalorder %s22, 1
      %p93 = por %p91, %p92
      %p94 = scmp.ne.s32.totalorder %s86, %s89
      %p95 = scmp.eq.s32.totalorder %s22, 0
      %p96 = por %p94, %p95
      %p97 = scmp.ne.s32.totalorder %s86, %s89
      %p98 = scmp.eq.s32.totalorder %s27, 1
      %p99 = por %p97, %p98
      %p100 = scmp.ne.s32.totalorder %s89, %s90
      %p101 = scmp.eq.s32.totalorder %s27, 0
      %p102 = por %p100, %p101
      %p103 = scmp.ne.s32.totalorder %s89, %s90
      %p104 = scmp.eq.s32.totalorder %s28, 1
      %p105 = por %p103, %p104
      %p107 = scmp.ne.s32.totalorder %s90, %s106
      %p108 = scmp.eq.s32.totalorder %s28, 0
      %p109 = por %p107, %p108
      %s110 = ssub.s32 %s30, %s37
      %p111 = scmp.eq.s32.totalorder %s110, 0
      %s113 = sadd.s32 %s112, 1
      %s114 = scalar_select %p111, %s112, %s113
      %p117 = pneg %p111
      %p118 = scmp.eq.s32.totalorder %s22, 1
      %p119 = por %p117, %p118
      %p120 = scmp.ne.s32.totalorder %s112, %s115
      %p121 = scmp.eq.s32.totalorder %s22, 0
      %p122 = por %p120, %p121
      %p123 = scmp.ne.s32.totalorder %s112, %s115
      %p124 = scmp.eq.s32.totalorder %s27, 1
      %p125 = por %p123, %p124
      %p126 = scmp.ne.s32.totalorder %s115, %s116
      %p127 = scmp.eq.s32.totalorder %s27, 0
      %p128 = por %p126, %p127
      %p129 = scmp.ne.s32.totalorder %s115, %s116
      %p130 = scmp.eq.s32.totalorder %s28, 1
      %p131 = por %p129, %p130
      %p133 = scmp.ne.s32.totalorder %s116, %s132
      %p134 = scmp.eq.s32.totalorder %s28, 0
      %p135 = por %p133, %p134
      %s136 = ssub.s32 %s30, %s37
      %p137 = scmp.eq.s32.totalorder %s136, 0
      %s139 = sadd.s32 %s138, 1
      %s140 = scalar_select %p137, %s138, %s139
      %p143 = pneg %p137
      %p144 = scmp.eq.s32.totalorder %s22, 1
      %p145 = por %p143, %p144
      %p146 = scmp.ne.s32.totalorder %s138, %s141
      %p147 = scmp.eq.s32.totalorder %s22, 0
      %p148 = por %p146, %p147
      %p149 = scmp.ne.s32.totalorder %s138, %s141
      %p150 = scmp.eq.s32.totalorder %s27, 1
      %p151 = por %p149, %p150
      %p152 = scmp.ne.s32.totalorder %s141, %s142
      %p153 = scmp.eq.s32.totalorder %s27, 0
      %p154 = por %p152, %p153
      %p155 = scmp.ne.s32.totalorder %s141, %s142
      %p156 = scmp.eq.s32.totalorder %s28, 1
      %p157 = por %p155, %p156
      %p159 = scmp.ne.s32.totalorder %s142, %s158
      %p160 = scmp.eq.s32.totalorder %s28, 0
      %p161 = por %p159, %p160
      %s162 = ssub.s32 %s30, %s37
      %p163 = scmp.eq.s32.totalorder %s162, 0
      %s165 = sadd.s32 %s164, 1
      %s166 = scalar_select %p163, %s164, %s165
      %p169 = pneg %p163
      %p170 = scmp.eq.s32.totalorder %s22, 1
      %p171 = por %p169, %p170
      %p172 = scmp.ne.s32.totalorder %s164, %s167
      %p173 = scmp.eq.s32.totalorder %s22, 0
      %p174 = por %p172, %p173
      %p175 = scmp.ne.s32.totalorder %s164, %s167
      %p176 = scmp.eq.s32.totalorder %s27, 1
      %p177 = por %p175, %p176
      %p178 = scmp.ne.s32.totalorder %s167, %s168
      %p179 = scmp.eq.s32.totalorder %s27, 0
      %p180 = por %p178, %p179
      %p181 = scmp.ne.s32.totalorder %s167, %s168
      %p182 = scmp.eq.s32.totalorder %s28, 1
      %p183 = por %p181, %p182
      %p185 = scmp.ne.s32.totalorder %s168, %s184
      %p186 = scmp.eq.s32.totalorder %s28, 0
      %p187 = por %p185, %p186
      %s188 = ssub.s32 %s30, %s37
      %p189 = scmp.eq.s32.totalorder %s188, 0
      %s191 = sadd.s32 %s190, 1
      %s192 = scalar_select %p189, %s190, %s191
      %p195 = pneg %p189
      %p196 = scmp.eq.s32.totalorder %s22, 1
      %p197 = por %p195, %p196
      %p198 = scmp.ne.s32.totalorder %s190, %s193
      %p199 = scmp.eq.s32.totalorder %s22, 0
      %p200 = por %p198, %p199
      %p201 = scmp.ne.s32.totalorder %s190, %s193
      %p202 = scmp.eq.s32.totalorder %s27, 1
      %p203 = por %p201, %p202
      %p204 = scmp.ne.s32.totalorder %s193, %s194
      %p205 = scmp.eq.s32.totalorder %s27, 0
      %p206 = por %p204, %p205
      %p207 = scmp.ne.s32.totalorder %s193, %s194
      %p208 = scmp.eq.s32.totalorder %s28, 1
      %p209 = por %p207, %p208
      %p211 = scmp.ne.s32.totalorder %s194, %s210
      %p212 = scmp.eq.s32.totalorder %s28, 0
      %p213 = por %p211, %p212
      %s214 = ssub.s32 %s30, %s37
      %p215 = scmp.eq.s32.totalorder %s214, 0
      %s217 = sadd.s32 %s216, 1
      %s218 = scalar_select %p215, %s216, %s217
      %p221 = pneg %p215
      %p222 = scmp.eq.s32.totalorder %s22, 1
      %p223 = por %p221, %p222
      %p224 = scmp.ne.s32.totalorder %s216, %s219
      %p225 = scmp.eq.s32.totalorder %s22, 0
      %p226 = por %p224, %p225
      %p227 = scmp.ne.s32.totalorder %s216, %s219
      %p228 = scmp.eq.s32.totalorder %s27, 1
      %p229 = por %p227, %p228
      %p230 = scmp.ne.s32.totalorder %s219, %s220
      %p231 = scmp.eq.s32.totalorder %s27, 0
      %p232 = por %p230, %p231
      %p233 = scmp.ne.s32.totalorder %s219, %s220
      %p234 = scmp.eq.s32.totalorder %s28, 1
      %p235 = por %p233, %p234
      %p237 = scmp.ne.s32.totalorder %s220, %s236
      %p238 = scmp.eq.s32.totalorder %s28, 0
      %p239 = por %p237, %p238
      %s240 = ssub.s32 %s30, %s37
      %p241 = scmp.eq.s32.totalorder %s240, 0
      %s243 = sadd.s32 %s242, 1
      %s244 = scalar_select %p241, %s242, %s243
      %p247 = pneg %p241
      %p248 = scmp.eq.s32.totalorder %s22, 1
      %p249 = por %p247, %p248
      %p250 = scmp.ne.s32.totalorder %s242, %s245
      %p251 = scmp.eq.s32.totalorder %s22, 0
      %p252 = por %p250, %p251
      %p253 = scmp.ne.s32.totalorder %s242, %s245
      %p254 = scmp.eq.s32.totalorder %s27, 1
      %p255 = por %p253, %p254
      %p256 = scmp.ne.s32.totalorder %s245, %s246
      %p257 = scmp.eq.s32.totalorder %s27, 0
      %p258 = por %p256, %p257
      %p259 = scmp.ne.s32.totalorder %s245, %s246
      %p260 = scmp.eq.s32.totalorder %s28, 1
      %p261 = por %p259, %p260
      %p263 = scmp.ne.s32.totalorder %s246, %s262
      %p264 = scmp.eq.s32.totalorder %s28, 0
      %p265 = por %p263, %p264
      %s266 = ssub.s32 %s30, %s37
      %p267 = scmp.eq.s32.totalorder %s266, 0
      %s269 = sadd.s32 %s268, 1
      %s270 = scalar_select %p267, %s268, %s269
      %p273 = pneg %p267
      %p274 = scmp.eq.s32.totalorder %s22, 1
      %p275 = por %p273, %p274
      %p276 = scmp.ne.s32.totalorder %s268, %s271
      %p277 = scmp.eq.s32.totalorder %s22, 0
      %p278 = por %p276, %p277
      %p279 = scmp.ne.s32.totalorder %s268, %s271
      %p280 = scmp.eq.s32.totalorder %s27, 1
      %p281 = por %p279, %p280
      %p282 = scmp.ne.s32.totalorder %s271, %s272
      %p283 = scmp.eq.s32.totalorder %s27, 0
      %p284 = por %p282, %p283
      %p285 = scmp.ne.s32.totalorder %s271, %s272
      %p286 = scmp.eq.s32.totalorder %s28, 1
      %p287 = por %p285, %p286
      %p289 = scmp.ne.s32.totalorder %s272, %s288
      %p290 = scmp.eq.s32.totalorder %s28, 0
      %p291 = por %p289, %p290
      %s292 = ssub.s32 %s30, %s37
      %p293 = scmp.eq.s32.totalorder %s292, 0
      %s295 = sadd.s32 %s294, 1
      %s296 = scalar_select %p293, %s294, %s295
      %p299 = pneg %p293
      %p300 = scmp.eq.s32.totalorder %s22, 1
      %p301 = por %p299, %p300
      %p302 = scmp.ne.s32.totalorder %s294, %s297
      %p303 = scmp.eq.s32.totalorder %s22, 0
      %p304 = por %p302, %p303
      %p305 = scmp.ne.s32.totalorder %s294, %s297
      %p306 = scmp.eq.s32.totalorder %s27, 1
      %p307 = por %p305, %p306
      %p308 = scmp.ne.s32.totalorder %s297, %s298
      %p309 = scmp.eq.s32.totalorder %s27, 0
      %p310 = por %p308, %p309
      %p311 = scmp.ne.s32.totalorder %s297, %s298
      %p312 = scmp.eq.s32.totalorder %s28, 1
      %p313 = por %p311, %p312
      %p315 = scmp.ne.s32.totalorder %s298, %s314
      %p316 = scmp.eq.s32.totalorder %s28, 0
      %p317 = por %p315, %p316
      %s318 = ssub.s32 %s30, %s37
      %p319 = scmp.eq.s32.totalorder %s318, 0
      %s321 = sadd.s32 %s320, 1
      %s322 = scalar_select %p319, %s320, %s321
      %p325 = pneg %p319
      %p326 = scmp.eq.s32.totalorder %s22, 1
      %p327 = por %p325, %p326
      %p328 = scmp.ne.s32.totalorder %s320, %s323
      %p329 = scmp.eq.s32.totalorder %s22, 0
      %p330 = por %p328, %p329
      %p331 = scmp.ne.s32.totalorder %s320, %s323
      %p332 = scmp.eq.s32.totalorder %s27, 1
      %p333 = por %p331, %p332
      %p334 = scmp.ne.s32.totalorder %s323, %s324
      %p335 = scmp.eq.s32.totalorder %s27, 0
      %p336 = por %p334, %p335
      %p337 = scmp.ne.s32.totalorder %s323, %s324
      %p338 = scmp.eq.s32.totalorder %s28, 1
      %p339 = por %p337, %p338
      %p341 = scmp.ne.s32.totalorder %s324, %s340
      %p342 = scmp.eq.s32.totalorder %s28, 0
      %p343 = por %p341, %p342
      %s344 = ssub.s32 %s30, %s37
      %p345 = scmp.eq.s32.totalorder %s344, 0
      %s347 = sadd.s32 %s346, 1
      %s348 = scalar_select %p345, %s346, %s347
      %p351 = pneg %p345
      %p352 = scmp.eq.s32.totalorder %s22, 1
      %p353 = por %p351, %p352
      %p354 = scmp.ne.s32.totalorder %s346, %s349
      %p355 = scmp.eq.s32.totalorder %s22, 0
      %p356 = por %p354, %p355
      %p357 = scmp.ne.s32.totalorder %s346, %s349
      %p358 = scmp.eq.s32.totalorder %s27, 1
      %p359 = por %p357, %p358
      %p360 = scmp.ne.s32.totalorder %s349, %s350
      %p361 = scmp.eq.s32.totalorder %s27, 0
      %p362 = por %p360, %p361
      %p363 = scmp.ne.s32.totalorder %s349, %s350
      %p364 = scmp.eq.s32.totalorder %s28, 1
      %p365 = por %p363, %p364
      %p367 = scmp.ne.s32.totalorder %s350, %s366
      %p368 = scmp.eq.s32.totalorder %s28, 0
      %p369 = por %p367, %p368
      %s370 = ssub.s32 %s30, %s37
      %p371 = scmp.eq.s32.totalorder %s370, 0
      %s373 = sadd.s32 %s372, 1
      %s374 = scalar_select %p371, %s372, %s373
      %p377 = pneg %p371
      %p378 = scmp.eq.s32.totalorder %s22, 1
      %p379 = por %p377, %p378
      %p380 = scmp.ne.s32.totalorder %s372, %s375
      %p381 = scmp.eq.s32.totalorder %s22, 0
      %p382 = por %p380, %p381
      %p383 = scmp.ne.s32.totalorder %s372, %s375
      %p384 = scmp.eq.s32.totalorder %s27, 1
      %p385 = por %p383, %p384
      %p386 = scmp.ne.s32.totalorder %s375, %s376
      %p387 = scmp.eq.s32.totalorder %s27, 0
      %p388 = por %p386, %p387
      %p389 = scmp.ne.s32.totalorder %s375, %s376
      %p390 = scmp.eq.s32.totalorder %s28, 1
      %p391 = por %p389, %p390
      %p393 = scmp.ne.s32.totalorder %s376, %s392
      %p394 = scmp.eq.s32.totalorder %s28, 0
      %p395 = por %p393, %p394
      %s396 = ssub.s32 %s29, %s41
      %p397 = scmp.eq.s32.totalorder %s396, 0
      %s399 = sadd.s32 %s398, 1
      %s400 = scalar_select %p397, %s398, %s399
      %p403 = pneg %p397
      %p404 = scmp.eq.s32.totalorder %s22, 1
      %p405 = por %p403, %p404
      %p406 = scmp.ne.s32.totalorder %s398, %s401
      %p407 = scmp.eq.s32.totalorder %s22, 0
      %p408 = por %p406, %p407
      %p409 = scmp.ne.s32.totalorder %s398, %s401
      %p410 = scmp.eq.s32.totalorder %s27, 1
      %p411 = por %p409, %p410
      %p412 = scmp.ne.s32.totalorder %s401, %s402
      %p413 = scmp.eq.s32.totalorder %s27, 0
      %p414 = por %p412, %p413
      %p415 = scmp.ne.s32.totalorder %s401, %s402
      %p416 = scmp.eq.s32.totalorder %s28, 1
      %p417 = por %p415, %p416
      %p419 = scmp.ne.s32.totalorder %s402, %s418
      %p420 = scmp.eq.s32.totalorder %s28, 0
      %p421 = por %p419, %p420
      %p422 = scmp.le.s32.totalorder 1, %s22
      %p423 = scmp.lt.s32.totalorder %s22, 3
      %p424 = pnand %p422, %p423
      %p425 = pneg %p424
      // Predicated region
      $region9: #{tpu_custom_call.1} parent=5 // pred_check
        _
      $region10: #{tpu_custom_call.1} parent=5 // pred_check_branch
        %427 = sbr.rel (%p424) target = $region12
      $region11: #{tpu_custom_call.1} parent=5 // pred_region
        %s428 = ssub.s32 %s22, 1
        // Predicated region
        $region13: #{tpu_custom_call.1} parent=11 // pred_check
          %p429 = pneg %p55
        $region14: #{tpu_custom_call.1} parent=11 // pred_check_branch
          %431 = sbr.rel (%p429) target = $region16
        $region15: #{tpu_custom_call.1} parent=11 // pred_region
          _
        $region16: #{tpu_custom_call.1} parent=11 // pred_fallthru
          _
        // Predicated region
        $region17: #{tpu_custom_call.1} parent=11 // pred_check
          %p432 = pneg %p76
        $region18: #{tpu_custom_call.1} parent=11 // pred_check_branch
          %434 = sbr.rel (%p432) target = $region20
        $region19: #{tpu_custom_call.1} parent=11 // pred_region
          _
        $region20: #{tpu_custom_call.1} parent=11 // pred_fallthru
          _
      $region12: #{tpu_custom_call.1} parent=5 // pred_fallthru
        _
      %p435 = scmp.lt.s32.totalorder %s22, 2
      // Predicated region
      $region21: #{tpu_custom_call.1} parent=5 // pred_check
        %p436 = pneg %p435
      $region22: #{tpu_custom_call.1} parent=5 // pred_check_branch
        %438 = sbr.rel (%p436) target = $region24
      $region23: #{tpu_custom_call.1} parent=5 // pred_region
        // Predicated region
        $region25: #{tpu_custom_call.1} parent=23 // pred_check
          %p439 = pneg %p96
        $region26: #{tpu_custom_call.1} parent=23 // pred_check_branch
          %441 = sbr.rel (%p439) target = $region28
        $region27: #{tpu_custom_call.1} parent=23 // pred_region
          %p442 = scmp.lt.s32.totalorder %s30, 1
          %s443 = scalar_select %p442, %s30, 1
          %s444 = scalar_lea.vmem %s3, %s443
        $region28: #{tpu_custom_call.1} parent=23 // pred_fallthru
          _
        // Predicated region
        $region29: #{tpu_custom_call.1} parent=23 // pred_check
          %p445 = pneg %p122
        $region30: #{tpu_custom_call.1} parent=23 // pred_check_branch
          %447 = sbr.rel (%p445) target = $region32
        $region31: #{tpu_custom_call.1} parent=23 // pred_region
          %p448 = scmp.lt.s32.totalorder %s30, 1
          %s449 = scalar_select %p448, %s30, 1
          %s450 = scalar_lea.vmem %s4, %s449
        $region32: #{tpu_custom_call.1} parent=23 // pred_fallthru
          _
        // Predicated region
        $region33: #{tpu_custom_call.1} parent=23 // pred_check
          %p451 = pneg %p148
        $region34: #{tpu_custom_call.1} parent=23 // pred_check_branch
          %453 = sbr.rel (%p451) target = $region36
        $region35: #{tpu_custom_call.1} parent=23 // pred_region
          %p454 = scmp.lt.s32.totalorder %s30, 1
          %s455 = scalar_select %p454, %s30, 1
          %s456 = smul.addr %s455, 48
          %s457 = smul.addr %s456, 4
          %s458 = scalar_lea.vmem %s5, %s457
        $region36: #{tpu_custom_call.1} parent=23 // pred_fallthru
          _
        // Predicated region
        $region37: #{tpu_custom_call.1} parent=23 // pred_check
          %p459 = pneg %p174
        $region38: #{tpu_custom_call.1} parent=23 // pred_check_branch
          %461 = sbr.rel (%p459) target = $region40
        $region39: #{tpu_custom_call.1} parent=23 // pred_region
          %p462 = scmp.lt.s32.totalorder %s30, 1
          %s463 = scalar_select %p462, %s30, 1
          %s464 = smul.addr %s463, 12
          %s465 = scalar_lea.vmem %s6, %s464
        $region40: #{tpu_custom_call.1} parent=23 // pred_fallthru
          _
        // Predicated region
        $region41: #{tpu_custom_call.1} parent=23 // pred_check
          %p466 = pneg %p200
        $region42: #{tpu_custom_call.1} parent=23 // pred_check_branch
          %468 = sbr.rel (%p466) target = $region44
        $region43: #{tpu_custom_call.1} parent=23 // pred_region
          %p469 = scmp.lt.s32.totalorder %s30, 1
          %s470 = scalar_select %p469, %s30, 1
          %s471 = smul.addr %s470, 64
          %s472 = smul.addr %s471, 4
          %s473 = scalar_lea.vmem %s7, %s472
        $region44: #{tpu_custom_call.1} parent=23 // pred_fallthru
          _
        // Predicated region
        $region45: #{tpu_custom_call.1} parent=23 // pred_check
          %p474 = pneg %p226
        $region46: #{tpu_custom_call.1} parent=23 // pred_check_branch
          %476 = sbr.rel (%p474) target = $region48
        $region47: #{tpu_custom_call.1} parent=23 // pred_region
          %p477 = scmp.lt.s32.totalorder %s30, 1
          %s478 = scalar_select %p477, %s30, 1
          %s479 = scalar_lea.vmem %s8, %s478
        $region48: #{tpu_custom_call.1} parent=23 // pred_fallthru
          _
        // Predicated region
        $region49: #{tpu_custom_call.1} parent=23 // pred_check
          %p480 = pneg %p252
        $region50: #{tpu_custom_call.1} parent=23 // pred_check_branch
          %482 = sbr.rel (%p480) target = $region52
        $region51: #{tpu_custom_call.1} parent=23 // pred_region
          %p483 = scmp.lt.s32.totalorder %s30, 1
          %s484 = scalar_select %p483, %s30, 1
          %s485 = scalar_lea.vmem %s9, %s484
        $region52: #{tpu_custom_call.1} parent=23 // pred_fallthru
          _
        // Predicated region
        $region53: #{tpu_custom_call.1} parent=23 // pred_check
          %p486 = pneg %p278
        $region54: #{tpu_custom_call.1} parent=23 // pred_check_branch
          %488 = sbr.rel (%p486) target = $region56
        $region55: #{tpu_custom_call.1} parent=23 // pred_region
          %p489 = scmp.lt.s32.totalorder %s30, 1
          %s490 = scalar_select %p489, %s30, 1
          %s491 = scalar_lea.vmem %s10, %s490
        $region56: #{tpu_custom_call.1} parent=23 // pred_fallthru
          _
        // Predicated region
        $region57: #{tpu_custom_call.1} parent=23 // pred_check
          %p492 = pneg %p304
        $region58: #{tpu_custom_call.1} parent=23 // pred_check_branch
          %494 = sbr.rel (%p492) target = $region60
        $region59: #{tpu_custom_call.1} parent=23 // pred_region
          %p495 = scmp.lt.s32.totalorder %s30, 1
          %s496 = scalar_select %p495, %s30, 1
          %s497 = smul.addr %s496, 4
          %s498 = smul.addr %s497, 4
          %s499 = scalar_lea.vmem %s11, %s498
        $region60: #{tpu_custom_call.1} parent=23 // pred_fallthru
          _
        // Predicated region
        $region61: #{tpu_custom_call.1} parent=23 // pred_check
          %p500 = pneg %p330
        $region62: #{tpu_custom_call.1} parent=23 // pred_check_branch
          %502 = sbr.rel (%p500) target = $region64
        $region63: #{tpu_custom_call.1} parent=23 // pred_region
          %p503 = scmp.lt.s32.totalorder %s30, 1
          %s504 = scalar_select %p503, %s30, 1
          %s505 = scalar_lea.vmem %s12, %s504
        $region64: #{tpu_custom_call.1} parent=23 // pred_fallthru
          _
        // Predicated region
        $region65: #{tpu_custom_call.1} parent=23 // pred_check
          %p506 = pneg %p356
        $region66: #{tpu_custom_call.1} parent=23 // pred_check_branch
          %508 = sbr.rel (%p506) target = $region68
        $region67: #{tpu_custom_call.1} parent=23 // pred_region
          %p509 = scmp.lt.s32.totalorder %s30, 1
          %s510 = scalar_select %p509, %s30, 1
          %s511 = smul.addr %s510, 16
          %s512 = smul.addr %s511, 4
          %s513 = scalar_lea.vmem %s13, %s512
        $region68: #{tpu_custom_call.1} parent=23 // pred_fallthru
          _
        // Predicated region
        $region69: #{tpu_custom_call.1} parent=23 // pred_check
          %p514 = pneg %p382
        $region70: #{tpu_custom_call.1} parent=23 // pred_check_branch
          %516 = sbr.rel (%p514) target = $region72
        $region71: #{tpu_custom_call.1} parent=23 // pred_region
          %p517 = scmp.lt.s32.totalorder %s30, 1
          %s518 = scalar_select %p517, %s30, 1
          %s519 = scalar_lea.vmem %s14, %s518
        $region72: #{tpu_custom_call.1} parent=23 // pred_fallthru
          _
      $region24: #{tpu_custom_call.1} parent=5 // pred_fallthru
        _
      %p520 = scmp.le.s32.totalorder 1, %s22
      %p521 = scmp.lt.s32.totalorder %s22, 3
      %p522 = pnand %p520, %p521
      %p523 = pneg %p522
      // Predicated region
      $region73: #{tpu_custom_call.1} parent=5 // pred_check
        _
      $region74: #{tpu_custom_call.1} parent=5 // pred_check_branch
        %525 = sbr.rel (%p522) target = $region76
      $region75: #{tpu_custom_call.1} parent=5 // pred_region
        %s526 = ssub.s32 %s22, 1
        %p527 = pneg %p55
        %p528 = pneg %p52
        %p529 = pneg %p76
        %p530 = pneg %p73
        %p531 = scmp.lt.s32.totalorder %s32, 1
        %s532 = scalar_select %p531, %s32, 1
        %s533 = scalar_lea.vmem %s3, %s532
        %p534 = pneg %p102
        %p535 = pneg %p99
        %p536 = scmp.lt.s32.totalorder %s32, 1
        %s537 = scalar_select %p536, %s32, 1
        %s538 = scalar_lea.vmem %s4, %s537
        %p539 = pneg %p128
        %p540 = pneg %p125
        %p541 = scmp.lt.s32.totalorder %s32, 1
        %s542 = scalar_select %p541, %s32, 1
        %s543 = smul.addr %s542, 48
        %s544 = smul.addr %s543, 4
        %s545 = scalar_lea.vmem %s5, %s544
        %p546 = pneg %p154
        %p547 = pneg %p151
        %p548 = scmp.lt.s32.totalorder %s32, 1
        %s549 = scalar_select %p548, %s32, 1
        %s550 = smul.addr %s549, 12
        %s551 = scalar_lea.vmem %s6, %s550
        %p552 = pneg %p180
        %p553 = pneg %p177
        %p554 = scmp.lt.s32.totalorder %s32, 1
        %s555 = scalar_select %p554, %s32, 1
        %s556 = smul.addr %s555, 64
        %s557 = smul.addr %s556, 4
        %s558 = scalar_lea.vmem %s7, %s557
        %p559 = pneg %p206
        %p560 = pneg %p203
        %p561 = scmp.lt.s32.totalorder %s32, 1
        %s562 = scalar_select %p561, %s32, 1
        %s563 = scalar_lea.vmem %s8, %s562
        %p564 = pneg %p232
        %p565 = pneg %p229
        %p566 = scmp.lt.s32.totalorder %s32, 1
        %s567 = scalar_select %p566, %s32, 1
        %s568 = scalar_lea.vmem %s9, %s567
        %p569 = pneg %p258
        %p570 = pneg %p255
        %p571 = scmp.lt.s32.totalorder %s32, 1
        %s572 = scalar_select %p571, %s32, 1
        %s573 = scalar_lea.vmem %s10, %s572
        %p574 = pneg %p284
        %p575 = pneg %p281
        %p576 = scmp.lt.s32.totalorder %s32, 1
        %s577 = scalar_select %p576, %s32, 1
        %s578 = smul.addr %s577, 4
        %s579 = smul.addr %s578, 4
        %s580 = scalar_lea.vmem %s11, %s579
        %p581 = pneg %p310
        %p582 = pneg %p307
        %p583 = scmp.lt.s32.totalorder %s32, 1
        %s584 = scalar_select %p583, %s32, 1
        %s585 = scalar_lea.vmem %s12, %s584
        %p586 = pneg %p336
        %p587 = pneg %p333
        %p588 = scmp.lt.s32.totalorder %s32, 1
        %s589 = scalar_select %p588, %s32, 1
        %s590 = smul.addr %s589, 16
        %s591 = smul.addr %s590, 4
        %s592 = scalar_lea.vmem %s13, %s591
        %p593 = pneg %p362
        %p594 = pneg %p359
        %p595 = scmp.lt.s32.totalorder %s32, 1
        %s596 = scalar_select %p595, %s32, 1
        %s597 = scalar_lea.vmem %s14, %s596
        %p598 = pneg %p388
        %p599 = pneg %p385
        %p600 = pneg %p414
        %p601 = pneg %p411
        %p602 = scmp.lt.s32.totalorder %s32, 1
        %s603 = scalar_select %p602, %s32, 1
        %s604 = scalar_lea.vmem %s3, %s603
        %p605 = scmp.lt.s32.totalorder %s32, 1
        %s606 = scalar_select %p605, %s32, 1
        %s607 = scalar_lea.vmem %s4, %s606
        %p608 = scmp.lt.s32.totalorder %s32, 1
        %s609 = scalar_select %p608, %s32, 1
        %s610 = smul.addr %s609, 48
        %s611 = smul.addr %s610, 4
        %s612 = scalar_lea.vmem %s5, %s611
        %p613 = scmp.lt.s32.totalorder %s32, 1
        %s614 = scalar_select %p613, %s32, 1
        %s615 = smul.addr %s614, 12
        %s616 = scalar_lea.vmem %s6, %s615
        %p617 = scmp.lt.s32.totalorder %s32, 1
        %s618 = scalar_select %p617, %s32, 1
        %s619 = smul.addr %s618, 64
        %s620 = smul.addr %s619, 4
        %s621 = scalar_lea.vmem %s7, %s620
        %p622 = scmp.lt.s32.totalorder %s32, 1
        %s623 = scalar_select %p622, %s32, 1
        %s624 = scalar_lea.vmem %s8, %s623
        %p625 = scmp.lt.s32.totalorder %s32, 1
        %s626 = scalar_select %p625, %s32, 1
        %s627 = scalar_lea.vmem %s9, %s626
        %p628 = scmp.lt.s32.totalorder %s32, 1
        %s629 = scalar_select %p628, %s32, 1
        %s630 = scalar_lea.vmem %s10, %s629
        %p631 = scmp.lt.s32.totalorder %s32, 1
        %s632 = scalar_select %p631, %s32, 1
        %s633 = smul.addr %s632, 4
        %s634 = smul.addr %s633, 4
        %s635 = scalar_lea.vmem %s11, %s634
        %p636 = scmp.lt.s32.totalorder %s32, 1
        %s637 = scalar_select %p636, %s32, 1
        %s638 = scalar_lea.vmem %s12, %s637
        %p639 = scmp.lt.s32.totalorder %s32, 1
        %s640 = scalar_select %p639, %s32, 1
        %s641 = smul.addr %s640, 16
        %s642 = smul.addr %s641, 4
        %s643 = scalar_lea.vmem %s13, %s642
        %p644 = scmp.lt.s32.totalorder %s32, 1
        %s645 = scalar_select %p644, %s32, 1
        %s646 = scalar_lea.vmem %s14, %s645
        %s647 = smul.u32 2, %s31
        %p649 = scmp.eq.s32.totalorder %s32, 0
        // Predicated region
        $region77: #{tpu_custom_call.1} parent=75 // pred_check
          %p650 = pneg %p649
        $region78: #{tpu_custom_call.1} parent=75 // pred_check_branch
          %652 = sbr.rel (%p650) target = $region80
        $region79: #{tpu_custom_call.1} parent=75 // pred_region
          %s653 = smul.u32 %s31, 16
          %s654 = scalar_lea.vmem %s0, %s653
          %p656 = scmp.lt.u32.totalorder 16, 8
          %p657 = pneg %p656
          // Predicated region
          $region81: #{tpu_custom_call.1} parent=79 // pred_check
            _
          $region82: #{tpu_custom_call.1} parent=79 // pred_check_branch
            %659 = sbr.rel (%p656) target = $region84
          $region83: #{tpu_custom_call.1} parent=79 // pred_region
            %s674 = sand.u32 16, 7
            %p675 = scmp.eq.s32.totalorder %s674, 0
            // Predicated region
            $region96: #{tpu_custom_call.1} parent=83 // pred_check
              %p676 = pneg %p675
            $region97: #{tpu_custom_call.1} parent=83 // pred_check_branch
              %678 = sbr.rel (%p676) target = $region99
            $region98: #{tpu_custom_call.1} parent=83 // pred_region
              loop: start=0, step=1, limit=1
              $region100: #{tpu_custom_call.1} parent=98 // loop_pre_header
                _
              $region101: #{tpu_custom_call.1} parent=98 // loop_header
                %s680 = sphi 0, %s684
                %p681 = scmp.ge.s32.totalorder %s680, 1
                %s685 = sphi %s654, %s654
                %s686 = sphi [#allocation2], [#allocation2]
              $region102: #{tpu_custom_call.1} parent=98 // loop_header_branch
                %683 = sbr.rel (%p681) target = $region106
              $region103: #{tpu_custom_call.1} parent=98 // loop_body
                %v687 = vld [vmem:[%s685] sm:$0xff]
                %688 = vst [vmem:[%s686] sm:$0xff] %v687
                %v689 = vld [vmem:[%s685 + $0x8] sm:$0xff]
                %690 = vst [vmem:[%s686 + $0x8] sm:$0xff] %v689
              $region104: #{tpu_custom_call.1} parent=98 // loop_footer
                %s684 = sadd.s32 1, %s680
              $region105: #{tpu_custom_call.1} parent=98 // loop_footer_branch
                %679 = sbr.rel target = $region101
              $region106: #{tpu_custom_call.1} parent=98 // loop_exit
                _
            $region99: #{tpu_custom_call.1} parent=83 // pred_fallthru
              _
            %p691 = pneg %p675
            // Predicated region
            $region107: #{tpu_custom_call.1} parent=83 // pred_check
              _
            $region108: #{tpu_custom_call.1} parent=83 // pred_check_branch
              %693 = sbr.rel (%p675) target = $region110
            $region109: #{tpu_custom_call.1} parent=83 // pred_region
              %s694 = sand.u32 16, 7
            $region110: #{tpu_custom_call.1} parent=83 // pred_fallthru
              _
          $region84: #{tpu_custom_call.1} parent=79 // pred_fallthru
            _
          // Predicated region
          $region85: #{tpu_custom_call.1} parent=79 // pred_check
            %p660 = pneg %p656
          $region86: #{tpu_custom_call.1} parent=79 // pred_check_branch
            %662 = sbr.rel (%p660) target = $region88
          $region87: #{tpu_custom_call.1} parent=79 // pred_region
            %s663 = sshllo.u32 0, 16
            loop: start=0, step=1, limit=1
            $region89: #{tpu_custom_call.1} parent=87 // loop_pre_header
              _
            $region90: #{tpu_custom_call.1} parent=87 // loop_header
              %s665 = sphi 0, %s669
              %p666 = scmp.ge.s32.totalorder %s665, 1
              %s670 = sphi %s654, %s654
              %s671 = sphi [#allocation2], [#allocation2]
            $region91: #{tpu_custom_call.1} parent=87 // loop_header_branch
              %668 = sbr.rel (%p666) target = $region95
            $region92: #{tpu_custom_call.1} parent=87 // loop_body
              %v672 = vld [vmem:[%s670] sm:%s663]
              %673 = vst [vmem:[%s671] sm:%s663] %v672
            $region93: #{tpu_custom_call.1} parent=87 // loop_footer
              %s669 = sadd.s32 1, %s665
            $region94: #{tpu_custom_call.1} parent=87 // loop_footer_branch
              %664 = sbr.rel target = $region90
            $region95: #{tpu_custom_call.1} parent=87 // loop_exit
              _
          $region88: #{tpu_custom_call.1} parent=79 // pred_fallthru
            _
          // Predicated region
          $region111: #{tpu_custom_call.1} parent=79 // pred_check
            _
          $region112: #{tpu_custom_call.1} parent=79 // pred_check_branch
            %697 = sbr.rel (0) target = $region114
          $region113: #{tpu_custom_call.1} parent=79 // pred_region
            %698 = vsyncadd [#allocation4], 256
          $region114: #{tpu_custom_call.1} parent=79 // pred_fallthru
            _
          %s699 = smul.u32 16, 1
          %s700 = sshll.u32 %s699, 4
          %701 = dma.done [#allocation4], %s700
          %v702 = vld [vmem:[#allocation2] sm:$0xff]
          %v703 = vld [vmem:[#allocation2 + $0x8] sm:$0xff]
          %v704 = vld [vmem:[%s1] sm:$0x1]
          %v705 = vld [vmem:[%s2] sm:$0x1]
          %vm706 = vcmask 261120
          %v707 = vsel %vm706, %v702, 0.0
          %708 = vadd.xlane.f32.xlu0 %v707
          %v709 = vpop.xlane.xlu0 %708
          %v710 = vsel %vm706, %v703, 0.0
          %711 = vadd.xlane.f32.xlu0 %v710
          %v712 = vpop.xlane.xlu0 %711
          %v713 = vrcp.pop 32.0
          %v714 = vmul.f32 %v709, %v713
          %v715 = vmul.f32 %v712, %v713
          %v716 = vsub.f32 %v702, %v714
          %v717 = vsub.f32 %v703, %v715
          %v718 = vmul.f32 %v716, %v716
          %v719 = vmul.f32 %v717, %v717
          %v720 = vsel %vm706, %v718, 0.0
          %721 = vadd.xlane.f32.xlu0 %v720
          %v722 = vpop.xlane.xlu0 %721
          %v723 = vsel %vm706, %v719, 0.0
          %724 = vadd.xlane.f32.xlu0 %v723
          %v725 = vpop.xlane.xlu0 %724
          %v726 = vmul.f32 %v722, %v713
          %v727 = vmul.f32 %v725, %v713
          %v728 = vadd.f32 %v726, 1e-12
          %v729 = vadd.f32 %v727, 1e-12
          %v730 = vrsqrt.pop %v728
          %v731 = vrsqrt.pop %v729
          %v732 = vmul.f32 %v716, %v730
          %v733 = vmul.f32 %v717, %v731
          %v735 = vlaneseq
          %v736 = vshrl.u32 %v735, 7
          %v737 = vsub.s32 0, %v736
          %v738 = vrot.slane %v704, %v737
          %v740 = vmul.f32 %v732, %v738
          %v741 = vmul.f32 %v733, %v738
          %v743 = vlaneseq
          %v744 = vshrl.u32 %v743, 7
          %v745 = vsub.s32 0, %v744
          %v746 = vrot.slane %v705, %v745
          %v748 = vadd.f32 %v740, %v746
          %v749 = vadd.f32 %v741, %v746
          %750 = vst.msk [vmem:[#allocation2] sm:$0xff] %vm706, %v748
          %751 = vst.msk [vmem:[#allocation2 + $0x8] sm:$0xff] %vm706, %v749
        $region80: #{tpu_custom_call.1} parent=75 // pred_fallthru
          _
        %v752 = vld [vmem:[#allocation2] sm:$0xff]
        %v753 = vld [vmem:[#allocation2 + $0x8] sm:$0xff]
        %v754 = vld [vmem:[%s604] sm:$0x1]
        %v755 = vld [vmem:[%s607] sm:$0x1]
        %vm756 = vcmask 261120
        %v757 = vsel %vm756, %v752, 0.0
        %758 = vadd.xlane.f32.xlu0 %v757
        %v759 = vpop.xlane.xlu0 %758
        %v760 = vsel %vm756, %v753, 0.0
        %761 = vadd.xlane.f32.xlu0 %v760
        %v762 = vpop.xlane.xlu0 %761
        %v763 = vrcp.pop 32.0
        %v764 = vmul.f32 %v759, %v763
        %v765 = vmul.f32 %v762, %v763
        %v766 = vsub.f32 %v752, %v764
        %v767 = vsub.f32 %v753, %v765
        %v768 = vmul.f32 %v766, %v766
        %v769 = vmul.f32 %v767, %v767
        %v770 = vsel %vm756, %v768, 0.0
        %771 = vadd.xlane.f32.xlu0 %v770
        %v772 = vpop.xlane.xlu0 %771
        %v773 = vsel %vm756, %v769, 0.0
        %774 = vadd.xlane.f32.xlu0 %v773
        %v775 = vpop.xlane.xlu0 %774
        %v776 = vmul.f32 %v772, %v763
        %v777 = vmul.f32 %v775, %v763
        %v778 = vadd.f32 %v776, 1e-05
        %v779 = vadd.f32 %v777, 1e-05
        %v780 = vrsqrt.pop %v778
        %v781 = vrsqrt.pop %v779
        %v782 = vmul.f32 %v766, %v780
        %v783 = vmul.f32 %v767, %v781
        %v785 = vlaneseq
        %v786 = vshrl.u32 %v785, 7
        %v787 = vsub.s32 0, %v786
        %v788 = vrot.slane %v754, %v787
        %v790 = vmul.f32 %v782, %v788
        %v791 = vmul.f32 %v783, %v788
        %v793 = vlaneseq
        %v794 = vshrl.u32 %v793, 7
        %v795 = vsub.s32 0, %v794
        %v796 = vrot.slane %v755, %v795
        %v798 = vadd.f32 %v790, %v796
        %v799 = vadd.f32 %v791, %v796
        %v800 = vpack.c.bf16 %v799, %v798
        %v801 = vld [vmem:[%s612] sm:$0xff]
        %v802 = vld [vmem:[%s612 + $0x8] sm:$0xff]
        %v803 = vld [vmem:[%s612 + $0x10] sm:$0xff]
        %v804 = vld [vmem:[%s612 + $0x18] sm:$0xff]
        %v805 = vld [vmem:[%s612 + $0x20] sm:$0xff]
        %v806 = vld [vmem:[%s612 + $0x28] sm:$0xff]
        %v807 = vld [vmem:[%s612 + $0x30] sm:$0xff]
        %v808 = vld [vmem:[%s612 + $0x38] sm:$0xff]
        %v809 = vld [vmem:[%s612 + $0x40] sm:$0xff]
        %v810 = vld [vmem:[%s612 + $0x48] sm:$0xff]
        %v811 = vld [vmem:[%s612 + $0x50] sm:$0xff]
        %v812 = vld [vmem:[%s612 + $0x58] sm:$0xff]
        %v813 = vld [vmem:[%s612 + $0x60] sm:$0xff]
        %v814 = vld [vmem:[%s612 + $0x68] sm:$0xff]
        %v815 = vld [vmem:[%s612 + $0x70] sm:$0xff]
        %v816 = vld [vmem:[%s612 + $0x78] sm:$0xff]
        %v817 = vld [vmem:[%s612 + $0x80] sm:$0xff]
        %v818 = vld [vmem:[%s612 + $0x88] sm:$0xff]
        %v819 = vld [vmem:[%s612 + $0x90] sm:$0xff]
        %v820 = vld [vmem:[%s612 + $0x98] sm:$0xff]
        %v821 = vld [vmem:[%s612 + $0xa0] sm:$0xff]
        %v822 = vld [vmem:[%s612 + $0xa8] sm:$0xff]
        %v823 = vld [vmem:[%s612 + $0xb0] sm:$0xff]
        %v824 = vld [vmem:[%s612 + $0xb8] sm:$0xff]
        %v825 = vld [vmem:[%s616] sm:$0xff]
        %v826 = vld [vmem:[%s616 + $0x8] sm:$0xf]
        %v829 = vlaneseq
        %v830 = vshrl.u32 %v829, 7
        %v831 = vsub.s32 0, %v830
        %v832 = vrot.slane %v825, %v831
        %v833 = vlaneseq
        %v834 = vshrl.u32 %v833, 7
        %v835 = vsub.s32 1, %v834
        %v836 = vrot.slane %v825, %v835
        %v837 = vlaneseq
        %v838 = vshrl.u32 %v837, 7
        %v839 = vsub.s32 2, %v838
        %v840 = vrot.slane %v825, %v839
        %v841 = vlaneseq
        %v842 = vshrl.u32 %v841, 7
        %v843 = vsub.s32 3, %v842
        %v844 = vrot.slane %v825, %v843
        %v845 = vlaneseq
        %v846 = vshrl.u32 %v845, 7
        %v847 = vsub.s32 4, %v846
        %v848 = vrot.slane %v825, %v847
        %v849 = vlaneseq
        %v850 = vshrl.u32 %v849, 7
        %v851 = vsub.s32 5, %v850
        %v852 = vrot.slane %v825, %v851
        %v853 = vlaneseq
        %v854 = vshrl.u32 %v853, 7
        %v855 = vsub.s32 6, %v854
        %v856 = vrot.slane %v825, %v855
        %v857 = vlaneseq
        %v858 = vshrl.u32 %v857, 7
        %v859 = vsub.s32 7, %v858
        %v860 = vrot.slane %v825, %v859
        %v861 = vlaneseq
        %v862 = vshrl.u32 %v861, 7
        %v863 = vsub.s32 0, %v862
        %v864 = vrot.slane %v826, %v863
        %v865 = vlaneseq
        %v866 = vshrl.u32 %v865, 7
        %v867 = vsub.s32 1, %v866
        %v868 = vrot.slane %v826, %v867
        %v869 = vlaneseq
        %v870 = vshrl.u32 %v869, 7
        %v871 = vsub.s32 2, %v870
        %v872 = vrot.slane %v826, %v871
        %v873 = vlaneseq
        %v874 = vshrl.u32 %v873, 7
        %v875 = vsub.s32 3, %v874
        %v876 = vrot.slane %v826, %v875
        %v913 = vunpack.c.l.b16 %v801
        %v914 = vunpack.c.h.b16 %v801
        %v915 = vunpack.c.l.b16 %v802
        %v916 = vunpack.c.h.b16 %v802
        %v917 = vunpack.c.l.b16 %v803
        %v918 = vunpack.c.h.b16 %v803
        %v919 = vunpack.c.l.b16 %v804
        %v920 = vunpack.c.h.b16 %v804
        %v921 = vunpack.c.l.b16 %v805
        %v922 = vunpack.c.h.b16 %v805
        %v923 = vunpack.c.l.b16 %v806
        %v924 = vunpack.c.h.b16 %v806
        %v925 = vunpack.c.l.b16 %v807
        %v926 = vunpack.c.h.b16 %v807
        %v927 = vunpack.c.l.b16 %v808
        %v928 = vunpack.c.h.b16 %v808
        %v929 = vunpack.c.l.b16 %v809
        %v930 = vunpack.c.h.b16 %v809
        %v931 = vunpack.c.l.b16 %v810
        %v932 = vunpack.c.h.b16 %v810
        %v933 = vunpack.c.l.b16 %v811
        %v934 = vunpack.c.h.b16 %v811
        %v935 = vunpack.c.l.b16 %v812
        %v936 = vunpack.c.h.b16 %v812
        %v937 = vunpack.c.l.b16 %v813
        %v938 = vunpack.c.h.b16 %v813
        %v939 = vunpack.c.l.b16 %v814
        %v940 = vunpack.c.h.b16 %v814
        %v941 = vunpack.c.l.b16 %v815
        %v942 = vunpack.c.h.b16 %v815
        %v943 = vunpack.c.l.b16 %v816
        %v944 = vunpack.c.h.b16 %v816
        %v945 = vunpack.c.l.b16 %v817
        %v946 = vunpack.c.h.b16 %v817
        %v947 = vunpack.c.l.b16 %v818
        %v948 = vunpack.c.h.b16 %v818
        %v949 = vunpack.c.l.b16 %v819
        %v950 = vunpack.c.h.b16 %v819
        %v951 = vunpack.c.l.b16 %v820
        %v952 = vunpack.c.h.b16 %v820
        %v953 = vunpack.c.l.b16 %v821
        %v954 = vunpack.c.h.b16 %v821
        %v955 = vunpack.c.l.b16 %v822
        %v956 = vunpack.c.h.b16 %v822
        %v957 = vunpack.c.l.b16 %v823
        %v958 = vunpack.c.h.b16 %v823
        %v959 = vunpack.c.l.b16 %v824
        %v960 = vunpack.c.h.b16 %v824
        %v961 = vpack.c.b16 %v925, %v913
        %v962 = vpack.c.b16 %v926, %v914
        %v963 = vpack.c.b16 %v927, %v915
        %v964 = vpack.c.b16 %v928, %v916
        %v965 = vpack.c.b16 %v929, %v917
        %v966 = vpack.c.b16 %v930, %v918
        %v967 = vpack.c.b16 %v931, %v919
        %v968 = vpack.c.b16 %v932, %v920
        %v969 = vpack.c.b16 %v933, %v921
        %v970 = vpack.c.b16 %v934, %v922
        %v971 = vpack.c.b16 %v935, %v923
        %v972 = vpack.c.b16 %v936, %v924
        %v973 = vpack.c.b16 %v949, %v937
        %v974 = vpack.c.b16 %v950, %v938
        %v975 = vpack.c.b16 %v951, %v939
        %v976 = vpack.c.b16 %v952, %v940
        %v977 = vpack.c.b16 %v953, %v941
        %v978 = vpack.c.b16 %v954, %v942
        %v979 = vpack.c.b16 %v955, %v943
        %v980 = vpack.c.b16 %v956, %v944
        %v981 = vpack.c.b16 %v957, %v945
        %v982 = vpack.c.b16 %v958, %v946
        %v983 = vpack.c.b16 %v959, %v947
        %v984 = vpack.c.b16 %v960, %v948
        %v1010 = vsel %vm756, %v800, 0
        %1012 = vmatprep.subr.bf16.mxu0 %v962
        %1013 = vmatpush1.bf16.msra.mxu0 %v961
        %1014 = vmatprep.subr.bf16.mxu0 %v974
        %1015 = vmatpush1.bf16.msra.mxu0 %v973
        %1016 = vmatprep.subr.bf16.mxu0 0
        %1017 = vmatpush1.bf16.msra.mxu0 0
        %1018 = vmatprep.subr.bf16.mxu0 0
        %1019 = vmatpush1.bf16.msra.mxu0 0
        %1020 = vmatprep.subr.bf16.mxu0 0
        %1021 = vmatpush1.bf16.msra.mxu0 0
        %1022 = vmatprep.subr.bf16.mxu0 0
        %1023 = vmatpush1.bf16.msra.mxu0 0
        %1024 = vmatprep.subr.bf16.mxu0 0
        %1025 = vmatpush1.bf16.msra.mxu0 0
        %1026 = vmatprep.subr.bf16.mxu0 0
        %1027 = vmatpush1.bf16.msra.mxu0 0
        %1028 = vmatprep.subr.bf16.mxu0 0
        %1029 = vmatpush1.bf16.msra.mxu0 0
        %1030 = vmatprep.subr.bf16.mxu0 0
        %1031 = vmatpush1.bf16.msra.mxu0 0
        %1032 = vmatprep.subr.bf16.mxu0 0
        %1033 = vmatpush1.bf16.msra.mxu0 0
        %1034 = vmatprep.subr.bf16.mxu0 0
        %1035 = vmatpush1.bf16.msra.mxu0 0
        %1036 = vmatprep.subr.bf16.mxu0 0
        %1037 = vmatpush1.bf16.msra.mxu0 0
        %1038 = vmatprep.subr.bf16.mxu0 0
        %1039 = vmatpush1.bf16.msra.mxu0 0
        %1040 = vmatprep.subr.bf16.mxu0 0
        %1041 = vmatpush1.bf16.msra.mxu0 0
        %1042 = vmatprep.subr.bf16.mxu0 0
        %1043 = vmatpush1.bf16.msra.mxu0 0
        %1044 = vmatprep.mubr.bf16.mxu0 0
        %1045 = vmatmul.mubr.bf16.gmra.mrb[0].mxu0 %v1010
        %v1046 = vpop.f32.mrb[0].mxu0
        %v1047 = vadd.f32 %v832, %v1046
        %v1048 = vpop.f32.mrb[0].mxu0
        %v1049 = vadd.f32 %v836, %v1048
        %v1050 = vpop.f32.mrb[0].mxu0
        %v1051 = vadd.f32 %v832, %v1050
        %v1052 = vpop.f32.mrb[0].mxu0
        %v1053 = vadd.f32 %v836, %v1052
        %1054 = vdwg.mxu0
        %1055 = vmatprep.subr.bf16.mxu0 %v964
        %1056 = vmatpush1.bf16.msra.mxu0 %v963
        %1057 = vmatprep.subr.bf16.mxu0 %v976
        %1058 = vmatpush1.bf16.msra.mxu0 %v975
        %1059 = vmatprep.subr.bf16.mxu0 0
        %1060 = vmatpush1.bf16.msra.mxu0 0
        %1061 = vmatprep.subr.bf16.mxu0 0
        %1062 = vmatpush1.bf16.msra.mxu0 0
        %1063 = vmatprep.subr.bf16.mxu0 0
        %1064 = vmatpush1.bf16.msra.mxu0 0
        %1065 = vmatprep.subr.bf16.mxu0 0
        %1066 = vmatpush1.bf16.msra.mxu0 0
        %1067 = vmatprep.subr.bf16.mxu0 0
        %1068 = vmatpush1.bf16.msra.mxu0 0
        %1069 = vmatprep.subr.bf16.mxu0 0
        %1070 = vmatpush1.bf16.msra.mxu0 0
        %1071 = vmatprep.subr.bf16.mxu0 0
        %1072 = vmatpush1.bf16.msra.mxu0 0
        %1073 = vmatprep.subr.bf16.mxu0 0
        %1074 = vmatpush1.bf16.msra.mxu0 0
        %1075 = vmatprep.subr.bf16.mxu0 0
        %1076 = vmatpush1.bf16.msra.mxu0 0
        %1077 = vmatprep.subr.bf16.mxu0 0
        %1078 = vmatpush1.bf16.msra.mxu0 0
        %1079 = vmatprep.subr.bf16.mxu0 0
        %1080 = vmatpush1.bf16.msra.mxu0 0
        %1081 = vmatprep.subr.bf16.mxu0 0
        %1082 = vmatpush1.bf16.msra.mxu0 0
        %1083 = vmatprep.subr.bf16.mxu0 0
        %1084 = vmatpush1.bf16.msra.mxu0 0
        %1085 = vmatprep.subr.bf16.mxu0 0
        %1086 = vmatpush1.bf16.msra.mxu0 0
        %1087 = vmatprep.mubr.bf16.mxu0 0
        %1088 = vmatmul.mubr.bf16.gmra.mrb[0].mxu0 %v1010
        %v1089 = vpop.f32.mrb[0].mxu0
        %v1090 = vadd.f32 %v840, %v1089
        %v1091 = vpop.f32.mrb[0].mxu0
        %v1092 = vadd.f32 %v844, %v1091
        %v1093 = vpop.f32.mrb[0].mxu0
        %v1094 = vadd.f32 %v840, %v1093
        %v1095 = vpop.f32.mrb[0].mxu0
        %v1096 = vadd.f32 %v844, %v1095
        %1097 = vdwg.mxu0
        %1098 = vmatprep.subr.bf16.mxu0 %v966
        %1099 = vmatpush1.bf16.msra.mxu0 %v965
        %1100 = vmatprep.subr.bf16.mxu0 %v978
        %1101 = vmatpush1.bf16.msra.mxu0 %v977
        %1102 = vmatprep.subr.bf16.mxu0 0
        %1103 = vmatpush1.bf16.msra.mxu0 0
        %1104 = vmatprep.subr.bf16.mxu0 0
        %1105 = vmatpush1.bf16.msra.mxu0 0
        %1106 = vmatprep.subr.bf16.mxu0 0
        %1107 = vmatpush1.bf16.msra.mxu0 0
        %1108 = vmatprep.subr.bf16.mxu0 0
        %1109 = vmatpush1.bf16.msra.mxu0 0
        %1110 = vmatprep.subr.bf16.mxu0 0
        %1111 = vmatpush1.bf16.msra.mxu0 0
        %1112 = vmatprep.subr.bf16.mxu0 0
        %1113 = vmatpush1.bf16.msra.mxu0 0
        %1114 = vmatprep.subr.bf16.mxu0 0
        %1115 = vmatpush1.bf16.msra.mxu0 0
        %1116 = vmatprep.subr.bf16.mxu0 0
        %1117 = vmatpush1.bf16.msra.mxu0 0
        %1118 = vmatprep.subr.bf16.mxu0 0
        %1119 = vmatpush1.bf16.msra.mxu0 0
        %1120 = vmatprep.subr.bf16.mxu0 0
        %1121 = vmatpush1.bf16.msra.mxu0 0
        %1122 = vmatprep.subr.bf16.mxu0 0
        %1123 = vmatpush1.bf16.msra.mxu0 0
        %1124 = vmatprep.subr.bf16.mxu0 0
        %1125 = vmatpush1.bf16.msra.mxu0 0
        %1126 = vmatprep.subr.bf16.mxu0 0
        %1127 = vmatpush1.bf16.msra.mxu0 0
        %1128 = vmatprep.subr.bf16.mxu0 0
        %1129 = vmatpush1.bf16.msra.mxu0 0
        %1130 = vmatprep.mubr.bf16.mxu0 0
        %1131 = vmatmul.mubr.bf16.gmra.mrb[0].mxu0 %v1010
        %v1132 = vpop.f32.mrb[0].mxu0
        %v1133 = vadd.f32 %v848, %v1132
        %v1134 = vpop.f32.mrb[0].mxu0
        %v1135 = vadd.f32 %v852, %v1134
        %v1136 = vpop.f32.mrb[0].mxu0
        %v1137 = vadd.f32 %v848, %v1136
        %v1138 = vpop.f32.mrb[0].mxu0
        %v1139 = vadd.f32 %v852, %v1138
        %1140 = vdwg.mxu0
        %1141 = vmatprep.subr.bf16.mxu0 %v968
        %1142 = vmatpush1.bf16.msra.mxu0 %v967
        %1143 = vmatprep.subr.bf16.mxu0 %v980
        %1144 = vmatpush1.bf16.msra.mxu0 %v979
        %1145 = vmatprep.subr.bf16.mxu0 0
        %1146 = vmatpush1.bf16.msra.mxu0 0
        %1147 = vmatprep.subr.bf16.mxu0 0
        %1148 = vmatpush1.bf16.msra.mxu0 0
        %1149 = vmatprep.subr.bf16.mxu0 0
        %1150 = vmatpush1.bf16.msra.mxu0 0
        %1151 = vmatprep.subr.bf16.mxu0 0
        %1152 = vmatpush1.bf16.msra.mxu0 0
        %1153 = vmatprep.subr.bf16.mxu0 0
        %1154 = vmatpush1.bf16.msra.mxu0 0
        %1155 = vmatprep.subr.bf16.mxu0 0
        %1156 = vmatpush1.bf16.msra.mxu0 0
        %1157 = vmatprep.subr.bf16.mxu0 0
        %1158 = vmatpush1.bf16.msra.mxu0 0
        %1159 = vmatprep.subr.bf16.mxu0 0
        %1160 = vmatpush1.bf16.msra.mxu0 0
        %1161 = vmatprep.subr.bf16.mxu0 0
        %1162 = vmatpush1.bf16.msra.mxu0 0
        %1163 = vmatprep.subr.bf16.mxu0 0
        %1164 = vmatpush1.bf16.msra.mxu0 0
        %1165 = vmatprep.subr.bf16.mxu0 0
        %1166 = vmatpush1.bf16.msra.mxu0 0
        %1167 = vmatprep.subr.bf16.mxu0 0
        %1168 = vmatpush1.bf16.msra.mxu0 0
        %1169 = vmatprep.subr.bf16.mxu0 0
        %1170 = vmatpush1.bf16.msra.mxu0 0
        %1171 = vmatprep.subr.bf16.mxu0 0
        %1172 = vmatpush1.bf16.msra.mxu0 0
        %1173 = vmatprep.mubr.bf16.mxu0 0
        %1174 = vmatmul.mubr.bf16.gmra.mrb[0].mxu0 %v1010
        %v1175 = vpop.f32.mrb[0].mxu0
        %v1176 = vadd.f32 %v856, %v1175
        %v1177 = vpop.f32.mrb[0].mxu0
        %v1178 = vadd.f32 %v860, %v1177
        %v1179 = vpop.f32.mrb[0].mxu0
        %v1180 = vadd.f32 %v856, %v1179
        %v1181 = vpop.f32.mrb[0].mxu0
        %v1182 = vadd.f32 %v860, %v1181
        %1183 = vdwg.mxu0
        %1184 = vmatprep.subr.bf16.mxu0 %v970
        %1185 = vmatpush1.bf16.msra.mxu0 %v969
        %1186 = vmatprep.subr.bf16.mxu0 %v982
        %1187 = vmatpush1.bf16.msra.mxu0 %v981
        %1188 = vmatprep.subr.bf16.mxu0 0
        %1189 = vmatpush1.bf16.msra.mxu0 0
        %1190 = vmatprep.subr.bf16.mxu0 0
        %1191 = vmatpush1.bf16.msra.mxu0 0
        %1192 = vmatprep.subr.bf16.mxu0 0
        %1193 = vmatpush1.bf16.msra.mxu0 0
        %1194 = vmatprep.subr.bf16.mxu0 0
        %1195 = vmatpush1.bf16.msra.mxu0 0
        %1196 = vmatprep.subr.bf16.mxu0 0
        %1197 = vmatpush1.bf16.msra.mxu0 0
        %1198 = vmatprep.subr.bf16.mxu0 0
        %1199 = vmatpush1.bf16.msra.mxu0 0
        %1200 = vmatprep.subr.bf16.mxu0 0
        %1201 = vmatpush1.bf16.msra.mxu0 0
        %1202 = vmatprep.subr.bf16.mxu0 0
        %1203 = vmatpush1.bf16.msra.mxu0 0
        %1204 = vmatprep.subr.bf16.mxu0 0
        %1205 = vmatpush1.bf16.msra.mxu0 0
        %1206 = vmatprep.subr.bf16.mxu0 0
        %1207 = vmatpush1.bf16.msra.mxu0 0
        %1208 = vmatprep.subr.bf16.mxu0 0
        %1209 = vmatpush1.bf16.msra.mxu0 0
        %1210 = vmatprep.subr.bf16.mxu0 0
        %1211 = vmatpush1.bf16.msra.mxu0 0
        %1212 = vmatprep.subr.bf16.mxu0 0
        %1213 = vmatpush1.bf16.msra.mxu0 0
        %1214 = vmatprep.subr.bf16.mxu0 0
        %1215 = vmatpush1.bf16.msra.mxu0 0
        %1216 = vmatprep.mubr.bf16.mxu0 0
        %1217 = vmatmul.mubr.bf16.gmra.mrb[0].mxu0 %v1010
        %v1218 = vpop.f32.mrb[0].mxu0
        %v1219 = vadd.f32 %v864, %v1218
        %v1220 = vpop.f32.mrb[0].mxu0
        %v1221 = vadd.f32 %v868, %v1220
        %v1222 = vpop.f32.mrb[0].mxu0
        %v1223 = vadd.f32 %v864, %v1222
        %v1224 = vpop.f32.mrb[0].mxu0
        %v1225 = vadd.f32 %v868, %v1224
        %1226 = vdwg.mxu0
        %1227 = vmatprep.subr.bf16.mxu0 %v972
        %1228 = vmatpush1.bf16.msra.mxu0 %v971
        %1229 = vmatprep.subr.bf16.mxu0 %v984
        %1230 = vmatpush1.bf16.msra.mxu0 %v983
        %1231 = vmatprep.subr.bf16.mxu0 0
        %1232 = vmatpush1.bf16.msra.mxu0 0
        %1233 = vmatprep.subr.bf16.mxu0 0
        %1234 = vmatpush1.bf16.msra.mxu0 0
        %1235 = vmatprep.subr.bf16.mxu0 0
        %1236 = vmatpush1.bf16.msra.mxu0 0
        %1237 = vmatprep.subr.bf16.mxu0 0
        %1238 = vmatpush1.bf16.msra.mxu0 0
        %1239 = vmatprep.subr.bf16.mxu0 0
        %1240 = vmatpush1.bf16.msra.mxu0 0
        %1241 = vmatprep.subr.bf16.mxu0 0
        %1242 = vmatpush1.bf16.msra.mxu0 0
        %1243 = vmatprep.subr.bf16.mxu0 0
        %1244 = vmatpush1.bf16.msra.mxu0 0
        %1245 = vmatprep.subr.bf16.mxu0 0
        %1246 = vmatpush1.bf16.msra.mxu0 0
        %1247 = vmatprep.subr.bf16.mxu0 0
        %1248 = vmatpush1.bf16.msra.mxu0 0
        %1249 = vmatprep.subr.bf16.mxu0 0
        %1250 = vmatpush1.bf16.msra.mxu0 0
        %1251 = vmatprep.subr.bf16.mxu0 0
        %1252 = vmatpush1.bf16.msra.mxu0 0
        %1253 = vmatprep.subr.bf16.mxu0 0
        %1254 = vmatpush1.bf16.msra.mxu0 0
        %1255 = vmatprep.subr.bf16.mxu0 0
        %1256 = vmatpush1.bf16.msra.mxu0 0
        %1257 = vmatprep.subr.bf16.mxu0 0
        %1258 = vmatpush1.bf16.msra.mxu0 0
        %1259 = vmatprep.mubr.bf16.mxu0 0
        %1260 = vmatmul.mubr.bf16.gmra.mrb[0].mxu0 %v1010
        %v1261 = vpop.f32.mrb[0].mxu0
        %v1262 = vadd.f32 %v872, %v1261
        %v1263 = vpop.f32.mrb[0].mxu0
        %v1264 = vadd.f32 %v876, %v1263
        %v1265 = vpop.f32.mrb[0].mxu0
        %v1266 = vadd.f32 %v872, %v1265
        %v1267 = vpop.f32.mrb[0].mxu0
        %v1268 = vadd.f32 %v876, %v1267
        %1269 = vdwg.mxu0
        %v1270 = vpack.c.bf16 %v1047, %v1047
        %v1271 = vpack.c.bf16 %v1133, %v1133
        %v1272 = vpack.c.bf16 %v1219, %v1219
        %1273 = vmatprep.subr.bf16.mxu0 0
        %1274 = vmatpush1.bf16.xpose.msra.mxu0 %v1271
        %1275 = vmatprep.subr.bf16.mxu0 0
        %1276 = vmatpush1.bf16.xpose.msra.mxu0 0
        %1277 = vmatprep.subr.bf16.mxu0 0
        %1278 = vmatpush1.bf16.xpose.msra.mxu0 0
        %1279 = vmatprep.subr.bf16.mxu0 0
        %1280 = vmatpush1.bf16.xpose.msra.mxu0 0
        %1281 = vmatprep.subr.bf16.mxu0 0
        %1282 = vmatpush1.bf16.xpose.msra.mxu0 0
        %1283 = vmatprep.subr.bf16.mxu0 0
        %1284 = vmatpush1.bf16.xpose.msra.mxu0 0
        %1285 = vmatprep.subr.bf16.mxu0 0
        %1286 = vmatpush1.bf16.xpose.msra.mxu0 0
        %1287 = vmatprep.subr.bf16.mxu0 0
        %1288 = vmatpush1.bf16.xpose.msra.mxu0 0
        %1289 = vmatprep.subr.bf16.mxu0 0
        %1290 = vmatpush1.bf16.xpose.msra.mxu0 0
        %1291 = vmatprep.subr.bf16.mxu0 0
        %1292 = vmatpush1.bf16.xpose.msra.mxu0 0
        %1293 = vmatprep.subr.bf16.mxu0 0
        %1294 = vmatpush1.bf16.xpose.msra.mxu0 0
        %1295 = vmatprep.subr.bf16.mxu0 0
        %1296 = vmatpush1.bf16.xpose.msra.mxu0 0
        %1297 = vmatprep.subr.bf16.mxu0 0
        %1298 = vmatpush1.bf16.xpose.msra.mxu0 0
        %1299 = vmatprep.subr.bf16.mxu0 0
        %1300 = vmatpush1.bf16.xpose.msra.mxu0 0
        %1301 = vmatprep.subr.bf16.mxu0 0
        %1302 = vmatpush1.bf16.xpose.msra.mxu0 0
        %1303 = vmatprep.subr.bf16.mxu0 0
        %1304 = vmatpush1.bf16.xpose.msra.mxu0 0
        %1305 = vmatprep.mubr.bf16.mxu0 0
        %1306 = vmatmul.mubr.bf16.gmra.mrb[0].mxu0 %v1270
        %v1307 = vpop.f32.mrb[0].mxu0
        %v1308 = vadd.f32 0.0, %v1307
        %v1309 = vpop.f32.mrb[0].mxu0
        %v1310 = vpop.f32.mrb[0].mxu0
        %v1311 = vpop.f32.mrb[0].mxu0
        %1312 = vdwg.mxu0
        %vm1313 = vcmask 64512
        %v1314 = vsel %vm1313, %v1308, -inf
        %1315 = vmax.xlane.f32.xlu0 %v1314
        %v1316 = vpop.xlane.xlu0 %1315
        %v1317 = vsub.f32 %v1308, %v1316
        %v1318 = vmul.f32 %v1317, 1.442695
        %v1319 = vpow.pop %v1318
        %v1320 = vsel %vm1313, %v1319, 0.0
        %1321 = vadd.xlane.f32.xlu0 %v1320
        %v1322 = vpop.xlane.xlu0 %1321
        %v1323 = vrcp.pop %v1322
        %v1324 = vmul.f32 %v1319, %v1323
        %v1325 = vpack.c.bf16 %v1324, %v1324
        %v1327 = vsel %vm1313, %v1325, 0
        %vm1329 = vcmask 1043456
        %v1331 = vsel %vm1329, %v1272, 0
        %1333 = vmatprep.subr.bf16.mxu0 0
        %1334 = vmatpush1.bf16.msra.mxu0 %v1331
        %1335 = vmatprep.subr.bf16.mxu0 0
        %1336 = vmatpush1.bf16.msra.mxu0 0
        %1337 = vmatprep.subr.bf16.mxu0 0
        %1338 = vmatpush1.bf16.msra.mxu0 0
        %1339 = vmatprep.subr.bf16.mxu0 0
        %1340 = vmatpush1.bf16.msra.mxu0 0
        %1341 = vmatprep.subr.bf16.mxu0 0
        %1342 = vmatpush1.bf16.msra.mxu0 0
        %1343 = vmatprep.subr.bf16.mxu0 0
        %1344 = vmatpush1.bf16.msra.mxu0 0
        %1345 = vmatprep.subr.bf16.mxu0 0
        %1346 = vmatpush1.bf16.msra.mxu0 0
        %1347 = vmatprep.subr.bf16.mxu0 0
        %1348 = vmatpush1.bf16.msra.mxu0 0
        %1349 = vmatprep.subr.bf16.mxu0 0
        %1350 = vmatpush1.bf16.msra.mxu0 0
        %1351 = vmatprep.subr.bf16.mxu0 0
        %1352 = vmatpush1.bf16.msra.mxu0 0
        %1353 = vmatprep.subr.bf16.mxu0 0
        %1354 = vmatpush1.bf16.msra.mxu0 0
        %1355 = vmatprep.subr.bf16.mxu0 0
        %1356 = vmatpush1.bf16.msra.mxu0 0
        %1357 = vmatprep.subr.bf16.mxu0 0
        %1358 = vmatpush1.bf16.msra.mxu0 0
        %1359 = vmatprep.subr.bf16.mxu0 0
        %1360 = vmatpush1.bf16.msra.mxu0 0
        %1361 = vmatprep.subr.bf16.mxu0 0
        %1362 = vmatpush1.bf16.msra.mxu0 0
        %1363 = vmatprep.subr.bf16.mxu0 0
        %1364 = vmatpush1.bf16.msra.mxu0 0
        %1365 = vmatprep.mubr.bf16.mxu0 0
        %1366 = vmatmul.mubr.bf16.gmra.mrb[0].mxu0 %v1327
        %v1367 = vpop.f32.mrb[0].mxu0
        %v1368 = vadd.f32 0.0, %v1367
        %v1369 = vpop.f32.mrb[0].mxu0
        %v1370 = vpop.f32.mrb[0].mxu0
        %v1371 = vpop.f32.mrb[0].mxu0
        %1372 = vdwg.mxu0
        %1373 = vst [vmem:[#allocation3] sm:$0xff] %v1368
        %v1374 = vpack.c.bf16 %v1049, %v1049
        %v1375 = vpack.c.bf16 %v1135, %v1135
        %v1376 = vpack.c.bf16 %v1221, %v1221
        %1377 = vmatprep.subr.bf16.mxu0 0
        %1378 = vmatpush1.bf16.xpose.msra.mxu0 %v1375
        %1379 = vmatprep.subr.bf16.mxu0 0
        %1380 = vmatpush1.bf16.xpose.msra.mxu0 0
        %1381 = vmatprep.subr.bf16.mxu0 0
        %1382 = vmatpush1.bf16.xpose.msra.mxu0 0
        %1383 = vmatprep.subr.bf16.mxu0 0
        %1384 = vmatpush1.bf16.xpose.msra.mxu0 0
        %1385 = vmatprep.subr.bf16.mxu0 0
        %1386 = vmatpush1.bf16.xpose.msra.mxu0 0
        %1387 = vmatprep.subr.bf16.mxu0 0
        %1388 = vmatpush1.bf16.xpose.msra.mxu0 0
        %1389 = vmatprep.subr.bf16.mxu0 0
        %1390 = vmatpush1.bf16.xpose.msra.mxu0 0
        %1391 = vmatprep.subr.bf16.mxu0 0
        %1392 = vmatpush1.bf16.xpose.msra.mxu0 0
        %1393 = vmatprep.subr.bf16.mxu0 0
        %1394 = vmatpush1.bf16.xpose.msra.mxu0 0
        %1395 = vmatprep.subr.bf16.mxu0 0
        %1396 = vmatpush1.bf16.xpose.msra.mxu0 0
        %1397 = vmatprep.subr.bf16.mxu0 0
        %1398 = vmatpush1.bf16.xpose.msra.mxu0 0
        %1399 = vmatprep.subr.bf16.mxu0 0
        %1400 = vmatpush1.bf16.xpose.msra.mxu0 0
        %1401 = vmatprep.subr.bf16.mxu0 0
        %1402 = vmatpush1.bf16.xpose.msra.mxu0 0
        %1403 = vmatprep.subr.bf16.mxu0 0
        %1404 = vmatpush1.bf16.xpose.msra.mxu0 0
        %1405 = vmatprep.subr.bf16.mxu0 0
        %1406 = vmatpush1.bf16.xpose.msra.mxu0 0
        %1407 = vmatprep.subr.bf16.mxu0 0
        %1408 = vmatpush1.bf16.xpose.msra.mxu0 0
        %1409 = vmatprep.mubr.bf16.mxu0 0
        %1410 = vmatmul.mubr.bf16.gmra.mrb[0].mxu0 %v1374
        %v1411 = vpop.f32.mrb[0].mxu0
        %v1412 = vadd.f32 0.0, %v1411
        %v1413 = vpop.f32.mrb[0].mxu0
        %v1414 = vpop.f32.mrb[0].mxu0
        %v1415 = vpop.f32.mrb[0].mxu0
        %1416 = vdwg.mxu0
        %v1417 = vsel %vm1313, %v1412, -inf
        %1418 = vmax.xlane.f32.xlu0 %v1417
        %v1419 = vpop.xlane.xlu0 %1418
        %v1420 = vsub.f32 %v1412, %v1419
        %v1421 = vmul.f32 %v1420, 1.442695
        %v1422 = vpow.pop %v1421
        %v1423 = vsel %vm1313, %v1422, 0.0
        %1424 = vadd.xlane.f32.xlu0 %v1423
        %v1425 = vpop.xlane.xlu0 %1424
        %v1426 = vrcp.pop %v1425
        %v1427 = vmul.f32 %v1422, %v1426
        %v1428 = vpack.c.bf16 %v1427, %v1427
        %v1430 = vsel %vm1313, %v1428, 0
        %v1433 = vsel %vm1329, %v1376, 0
        %1435 = vmatprep.subr.bf16.mxu0 0
        %1436 = vmatpush1.bf16.msra.mxu0 %v1433
        %1437 = vmatprep.subr.bf16.mxu0 0
        %1438 = vmatpush1.bf16.msra.mxu0 0
        %1439 = vmatprep.subr.bf16.mxu0 0
        %1440 = vmatpush1.bf16.msra.mxu0 0
        %1441 = vmatprep.subr.bf16.mxu0 0
        %1442 = vmatpush1.bf16.msra.mxu0 0
        %1443 = vmatprep.subr.bf16.mxu0 0
        %1444 = vmatpush1.bf16.msra.mxu0 0
        %1445 = vmatprep.subr.bf16.mxu0 0
        %1446 = vmatpush1.bf16.msra.mxu0 0
        %1447 = vmatprep.subr.bf16.mxu0 0
        %1448 = vmatpush1.bf16.msra.mxu0 0
        %1449 = vmatprep.subr.bf16.mxu0 0
        %1450 = vmatpush1.bf16.msra.mxu0 0
        %1451 = vmatprep.subr.bf16.mxu0 0
        %1452 = vmatpush1.bf16.msra.mxu0 0
        %1453 = vmatprep.subr.bf16.mxu0 0
        %1454 = vmatpush1.bf16.msra.mxu0 0
        %1455 = vmatprep.subr.bf16.mxu0 0
        %1456 = vmatpush1.bf16.msra.mxu0 0
        %1457 = vmatprep.subr.bf16.mxu0 0
        %1458 = vmatpush1.bf16.msra.mxu0 0
        %1459 = vmatprep.subr.bf16.mxu0 0
        %1460 = vmatpush1.bf16.msra.mxu0 0
        %1461 = vmatprep.subr.bf16.mxu0 0
        %1462 = vmatpush1.bf16.msra.mxu0 0
        %1463 = vmatprep.subr.bf16.mxu0 0
        %1464 = vmatpush1.bf16.msra.mxu0 0
        %1465 = vmatprep.subr.bf16.mxu0 0
        %1466 = vmatpush1.bf16.msra.mxu0 0
        %1467 = vmatprep.mubr.bf16.mxu0 0
        %1468 = vmatmul.mubr.bf16.gmra.mrb[0].mxu0 %v1430
        %v1469 = vpop.f32.mrb[0].mxu0
        %v1470 = vadd.f32 0.0, %v1469
        %v1471 = vpop.f32.mrb[0].mxu0
        %v1472 = vpop.f32.mrb[0].mxu0
        %v1473 = vpop.f32.mrb[0].mxu0
        %1474 = vdwg.mxu0
        %1475 = vst [vmem:[#allocation3 + $0x8] sm:$0xff] %v1470
        %v1476 = vpack.c.bf16 %v1090, %v1090
        %v1477 = vpack.c.bf16 %v1176, %v1176
        %v1478 = vpack.c.bf16 %v1262, %v1262
        %1479 = vmatprep.subr.bf16.mxu0 0
        %1480 = vmatpush1.bf16.xpose.msra.mxu0 %v1477
        %1481 = vmatprep.subr.bf16.mxu0 0
        %1482 = vmatpush1.bf16.xpose.msra.mxu0 0
        %1483 = vmatprep.subr.bf16.mxu0 0
        %1484 = vmatpush1.bf16.xpose.msra.mxu0 0
        %1485 = vmatprep.subr.bf16.mxu0 0
        %1486 = vmatpush1.bf16.xpose.msra.mxu0 0
        %1487 = vmatprep.subr.bf16.mxu0 0
        %1488 = vmatpush1.bf16.xpose.msra.mxu0 0
        %1489 = vmatprep.subr.bf16.mxu0 0
        %1490 = vmatpush1.bf16.xpose.msra.mxu0 0
        %1491 = vmatprep.subr.bf16.mxu0 0
        %1492 = vmatpush1.bf16.xpose.msra.mxu0 0
        %1493 = vmatprep.subr.bf16.mxu0 0
        %1494 = vmatpush1.bf16.xpose.msra.mxu0 0
        %1495 = vmatprep.subr.bf16.mxu0 0
        %1496 = vmatpush1.bf16.xpose.msra.mxu0 0
        %1497 = vmatprep.subr.bf16.mxu0 0
        %1498 = vmatpush1.bf16.xpose.msra.mxu0 0
        %1499 = vmatprep.subr.bf16.mxu0 0
        %1500 = vmatpush1.bf16.xpose.msra.mxu0 0
        %1501 = vmatprep.subr.bf16.mxu0 0
        %1502 = vmatpush1.bf16.xpose.msra.mxu0 0
        %1503 = vmatprep.subr.bf16.mxu0 0
        %1504 = vmatpush1.bf16.xpose.msra.mxu0 0
        %1505 = vmatprep.subr.bf16.mxu0 0
        %1506 = vmatpush1.bf16.xpose.msra.mxu0 0
        %1507 = vmatprep.subr.bf16.mxu0 0
        %1508 = vmatpush1.bf16.xpose.msra.mxu0 0
        %1509 = vmatprep.subr.bf16.mxu0 0
        %1510 = vmatpush1.bf16.xpose.msra.mxu0 0
        %1511 = vmatprep.mubr.bf16.mxu0 0
        %1512 = vmatmul.mubr.bf16.gmra.mrb[0].mxu0 %v1476
        %v1513 = vpop.f32.mrb[0].mxu0
        %v1514 = vadd.f32 0.0, %v1513
        %v1515 = vpop.f32.mrb[0].mxu0
        %v1516 = vpop.f32.mrb[0].mxu0
        %v1517 = vpop.f32.mrb[0].mxu0
        %1518 = vdwg.mxu0
        %v1519 = vsel %vm1313, %v1514, -inf
        %1520 = vmax.xlane.f32.xlu0 %v1519
        %v1521 = vpop.xlane.xlu0 %1520
        %v1522 = vsub.f32 %v1514, %v1521
        %v1523 = vmul.f32 %v1522, 1.442695
        %v1524 = vpow.pop %v1523
        %v1525 = vsel %vm1313, %v1524, 0.0
        %1526 = vadd.xlane.f32.xlu0 %v1525
        %v1527 = vpop.xlane.xlu0 %1526
        %v1528 = vrcp.pop %v1527
        %v1529 = vmul.f32 %v1524, %v1528
        %v1530 = vpack.c.bf16 %v1529, %v1529
        %v1532 = vsel %vm1313, %v1530, 0
        %v1535 = vsel %vm1329, %v1478, 0
        %1537 = vmatprep.subr.bf16.mxu0 0
        %1538 = vmatpush1.bf16.msra.mxu0 %v1535
        %1539 = vmatprep.subr.bf16.mxu0 0
        %1540 = vmatpush1.bf16.msra.mxu0 0
        %1541 = vmatprep.subr.bf16.mxu0 0
        %1542 = vmatpush1.bf16.msra.mxu0 0
        %1543 = vmatprep.subr.bf16.mxu0 0
        %1544 = vmatpush1.bf16.msra.mxu0 0
        %1545 = vmatprep.subr.bf16.mxu0 0
        %1546 = vmatpush1.bf16.msra.mxu0 0
        %1547 = vmatprep.subr.bf16.mxu0 0
        %1548 = vmatpush1.bf16.msra.mxu0 0
        %1549 = vmatprep.subr.bf16.mxu0 0
        %1550 = vmatpush1.bf16.msra.mxu0 0
        %1551 = vmatprep.subr.bf16.mxu0 0
        %1552 = vmatpush1.bf16.msra.mxu0 0
        %1553 = vmatprep.subr.bf16.mxu0 0
        %1554 = vmatpush1.bf16.msra.mxu0 0
        %1555 = vmatprep.subr.bf16.mxu0 0
        %1556 = vmatpush1.bf16.msra.mxu0 0
        %1557 = vmatprep.subr.bf16.mxu0 0
        %1558 = vmatpush1.bf16.msra.mxu0 0
        %1559 = vmatprep.subr.bf16.mxu0 0
        %1560 = vmatpush1.bf16.msra.mxu0 0
        %1561 = vmatprep.subr.bf16.mxu0 0
        %1562 = vmatpush1.bf16.msra.mxu0 0
        %1563 = vmatprep.subr.bf16.mxu0 0
        %1564 = vmatpush1.bf16.msra.mxu0 0
        %1565 = vmatprep.subr.bf16.mxu0 0
        %1566 = vmatpush1.bf16.msra.mxu0 0
        %1567 = vmatprep.subr.bf16.mxu0 0
        %1568 = vmatpush1.bf16.msra.mxu0 0
        %1569 = vmatprep.mubr.bf16.mxu0 0
        %1570 = vmatmul.mubr.bf16.gmra.mrb[0].mxu0 %v1532
        %v1571 = vpop.f32.mrb[0].mxu0
        %v1572 = vadd.f32 0.0, %v1571
        %v1573 = vpop.f32.mrb[0].mxu0
        %v1574 = vpop.f32.mrb[0].mxu0
        %v1575 = vpop.f32.mrb[0].mxu0
        %1576 = vdwg.mxu0
        %1577 = vst [vmem:[#allocation3 + $0x10] sm:$0xff] %v1572
        %v1578 = vpack.c.bf16 %v1092, %v1092
        %v1579 = vpack.c.bf16 %v1178, %v1178
        %v1580 = vpack.c.bf16 %v1264, %v1264
        %1581 = vmatprep.subr.bf16.mxu0 0
        %1582 = vmatpush1.bf16.xpose.msra.mxu0 %v1579
        %1583 = vmatprep.subr.bf16.mxu0 0
        %1584 = vmatpush1.bf16.xpose.msra.mxu0 0
        %1585 = vmatprep.subr.bf16.mxu0 0
        %1586 = vmatpush1.bf16.xpose.msra.mxu0 0
        %1587 = vmatprep.subr.bf16.mxu0 0
        %1588 = vmatpush1.bf16.xpose.msra.mxu0 0
        %1589 = vmatprep.subr.bf16.mxu0 0
        %1590 = vmatpush1.bf16.xpose.msra.mxu0 0
        %1591 = vmatprep.subr.bf16.mxu0 0
        %1592 = vmatpush1.bf16.xpose.msra.mxu0 0
        %1593 = vmatprep.subr.bf16.mxu0 0
        %1594 = vmatpush1.bf16.xpose.msra.mxu0 0
        %1595 = vmatprep.subr.bf16.mxu0 0
        %1596 = vmatpush1.bf16.xpose.msra.mxu0 0
        %1597 = vmatprep.subr.bf16.mxu0 0
        %1598 = vmatpush1.bf16.xpose.msra.mxu0 0
        %1599 = vmatprep.subr.bf16.mxu0 0
        %1600 = vmatpush1.bf16.xpose.msra.mxu0 0
        %1601 = vmatprep.subr.bf16.mxu0 0
        %1602 = vmatpush1.bf16.xpose.msra.mxu0 0
        %1603 = vmatprep.subr.bf16.mxu0 0
        %1604 = vmatpush1.bf16.xpose.msra.mxu0 0
        %1605 = vmatprep.subr.bf16.mxu0 0
        %1606 = vmatpush1.bf16.xpose.msra.mxu0 0
        %1607 = vmatprep.subr.bf16.mxu0 0
        %1608 = vmatpush1.bf16.xpose.msra.mxu0 0
        %1609 = vmatprep.subr.bf16.mxu0 0
        %1610 = vmatpush1.bf16.xpose.msra.mxu0 0
        %1611 = vmatprep.subr.bf16.mxu0 0
        %1612 = vmatpush1.bf16.xpose.msra.mxu0 0
        %1613 = vmatprep.mubr.bf16.mxu0 0
        %1614 = vmatmul.mubr.bf16.gmra.mrb[0].mxu0 %v1578
        %v1615 = vpop.f32.mrb[0].mxu0
        %v1616 = vadd.f32 0.0, %v1615
        %v1617 = vpop.f32.mrb[0].mxu0
        %v1618 = vpop.f32.mrb[0].mxu0
        %v1619 = vpop.f32.mrb[0].mxu0
        %1620 = vdwg.mxu0
        %v1621 = vsel %vm1313, %v1616, -inf
        %1622 = vmax.xlane.f32.xlu0 %v1621
        %v1623 = vpop.xlane.xlu0 %1622
        %v1624 = vsub.f32 %v1616, %v1623
        %v1625 = vmul.f32 %v1624, 1.442695
        %v1626 = vpow.pop %v1625
        %v1627 = vsel %vm1313, %v1626, 0.0
        %1628 = vadd.xlane.f32.xlu0 %v1627
        %v1629 = vpop.xlane.xlu0 %1628
        %v1630 = vrcp.pop %v1629
        %v1631 = vmul.f32 %v1626, %v1630
        %v1632 = vpack.c.bf16 %v1631, %v1631
        %v1634 = vsel %vm1313, %v1632, 0
        %v1637 = vsel %vm1329, %v1580, 0
        %1639 = vmatprep.subr.bf16.mxu0 0
        %1640 = vmatpush1.bf16.msra.mxu0 %v1637
        %1641 = vmatprep.subr.bf16.mxu0 0
        %1642 = vmatpush1.bf16.msra.mxu0 0
        %1643 = vmatprep.subr.bf16.mxu0 0
        %1644 = vmatpush1.bf16.msra.mxu0 0
        %1645 = vmatprep.subr.bf16.mxu0 0
        %1646 = vmatpush1.bf16.msra.mxu0 0
        %1647 = vmatprep.subr.bf16.mxu0 0
        %1648 = vmatpush1.bf16.msra.mxu0 0
        %1649 = vmatprep.subr.bf16.mxu0 0
        %1650 = vmatpush1.bf16.msra.mxu0 0
        %1651 = vmatprep.subr.bf16.mxu0 0
        %1652 = vmatpush1.bf16.msra.mxu0 0
        %1653 = vmatprep.subr.bf16.mxu0 0
        %1654 = vmatpush1.bf16.msra.mxu0 0
        %1655 = vmatprep.subr.bf16.mxu0 0
        %1656 = vmatpush1.bf16.msra.mxu0 0
        %1657 = vmatprep.subr.bf16.mxu0 0
        %1658 = vmatpush1.bf16.msra.mxu0 0
        %1659 = vmatprep.subr.bf16.mxu0 0
        %1660 = vmatpush1.bf16.msra.mxu0 0
        %1661 = vmatprep.subr.bf16.mxu0 0
        %1662 = vmatpush1.bf16.msra.mxu0 0
        %1663 = vmatprep.subr.bf16.mxu0 0
        %1664 = vmatpush1.bf16.msra.mxu0 0
        %1665 = vmatprep.subr.bf16.mxu0 0
        %1666 = vmatpush1.bf16.msra.mxu0 0
        %1667 = vmatprep.subr.bf16.mxu0 0
        %1668 = vmatpush1.bf16.msra.mxu0 0
        %1669 = vmatprep.subr.bf16.mxu0 0
        %1670 = vmatpush1.bf16.msra.mxu0 0
        %1671 = vmatprep.mubr.bf16.mxu0 0
        %1672 = vmatmul.mubr.bf16.gmra.mrb[0].mxu0 %v1634
        %v1673 = vpop.f32.mrb[0].mxu0
        %v1674 = vadd.f32 0.0, %v1673
        %v1675 = vpop.f32.mrb[0].mxu0
        %v1676 = vpop.f32.mrb[0].mxu0
        %v1677 = vpop.f32.mrb[0].mxu0
        %1678 = vdwg.mxu0
        %1679 = vst [vmem:[#allocation3 + $0x18] sm:$0xff] %v1674
        %v1680 = vpack.c.bf16 %v1051, %v1051
        %v1681 = vpack.c.bf16 %v1137, %v1137
        %v1682 = vpack.c.bf16 %v1223, %v1223
        %1683 = vmatprep.subr.bf16.mxu0 0
        %1684 = vmatpush1.bf16.xpose.msra.mxu0 %v1681
        %1685 = vmatprep.subr.bf16.mxu0 0
        %1686 = vmatpush1.bf16.xpose.msra.mxu0 0
        %1687 = vmatprep.subr.bf16.mxu0 0
        %1688 = vmatpush1.bf16.xpose.msra.mxu0 0
        %1689 = vmatprep.subr.bf16.mxu0 0
        %1690 = vmatpush1.bf16.xpose.msra.mxu0 0
        %1691 = vmatprep.subr.bf16.mxu0 0
        %1692 = vmatpush1.bf16.xpose.msra.mxu0 0
        %1693 = vmatprep.subr.bf16.mxu0 0
        %1694 = vmatpush1.bf16.xpose.msra.mxu0 0
        %1695 = vmatprep.subr.bf16.mxu0 0
        %1696 = vmatpush1.bf16.xpose.msra.mxu0 0
        %1697 = vmatprep.subr.bf16.mxu0 0
        %1698 = vmatpush1.bf16.xpose.msra.mxu0 0
        %1699 = vmatprep.subr.bf16.mxu0 0
        %1700 = vmatpush1.bf16.xpose.msra.mxu0 0
        %1701 = vmatprep.subr.bf16.mxu0 0
        %1702 = vmatpush1.bf16.xpose.msra.mxu0 0
        %1703 = vmatprep.subr.bf16.mxu0 0
        %1704 = vmatpush1.bf16.xpose.msra.mxu0 0
        %1705 = vmatprep.subr.bf16.mxu0 0
        %1706 = vmatpush1.bf16.xpose.msra.mxu0 0
        %1707 = vmatprep.subr.bf16.mxu0 0
        %1708 = vmatpush1.bf16.xpose.msra.mxu0 0
        %1709 = vmatprep.subr.bf16.mxu0 0
        %1710 = vmatpush1.bf16.xpose.msra.mxu0 0
        %1711 = vmatprep.subr.bf16.mxu0 0
        %1712 = vmatpush1.bf16.xpose.msra.mxu0 0
        %1713 = vmatprep.subr.bf16.mxu0 0
        %1714 = vmatpush1.bf16.xpose.msra.mxu0 0
        %1715 = vmatprep.mubr.bf16.mxu0 0
        %1716 = vmatmul.mubr.bf16.gmra.mrb[0].mxu0 %v1680
        %v1717 = vpop.f32.mrb[0].mxu0
        %v1718 = vadd.f32 0.0, %v1717
        %v1719 = vpop.f32.mrb[0].mxu0
        %v1720 = vpop.f32.mrb[0].mxu0
        %v1721 = vpop.f32.mrb[0].mxu0
        %1722 = vdwg.mxu0
        %v1723 = vsel %vm1313, %v1718, -inf
        %1724 = vmax.xlane.f32.xlu0 %v1723
        %v1725 = vpop.xlane.xlu0 %1724
        %v1726 = vsub.f32 %v1718, %v1725
        %v1727 = vmul.f32 %v1726, 1.442695
        %v1728 = vpow.pop %v1727
        %v1729 = vsel %vm1313, %v1728, 0.0
        %1730 = vadd.xlane.f32.xlu0 %v1729
        %v1731 = vpop.xlane.xlu0 %1730
        %v1732 = vrcp.pop %v1731
        %v1733 = vmul.f32 %v1728, %v1732
        %v1734 = vpack.c.bf16 %v1733, %v1733
        %v1736 = vsel %vm1313, %v1734, 0
        %v1739 = vsel %vm1329, %v1682, 0
        %1741 = vmatprep.subr.bf16.mxu0 0
        %1742 = vmatpush1.bf16.msra.mxu0 %v1739
        %1743 = vmatprep.subr.bf16.mxu0 0
        %1744 = vmatpush1.bf16.msra.mxu0 0
        %1745 = vmatprep.subr.bf16.mxu0 0
        %1746 = vmatpush1.bf16.msra.mxu0 0
        %1747 = vmatprep.subr.bf16.mxu0 0
        %1748 = vmatpush1.bf16.msra.mxu0 0
        %1749 = vmatprep.subr.bf16.mxu0 0
        %1750 = vmatpush1.bf16.msra.mxu0 0
        %1751 = vmatprep.subr.bf16.mxu0 0
        %1752 = vmatpush1.bf16.msra.mxu0 0
        %1753 = vmatprep.subr.bf16.mxu0 0
        %1754 = vmatpush1.bf16.msra.mxu0 0
        %1755 = vmatprep.subr.bf16.mxu0 0
        %1756 = vmatpush1.bf16.msra.mxu0 0
        %1757 = vmatprep.subr.bf16.mxu0 0
        %1758 = vmatpush1.bf16.msra.mxu0 0
        %1759 = vmatprep.subr.bf16.mxu0 0
        %1760 = vmatpush1.bf16.msra.mxu0 0
        %1761 = vmatprep.subr.bf16.mxu0 0
        %1762 = vmatpush1.bf16.msra.mxu0 0
        %1763 = vmatprep.subr.bf16.mxu0 0
        %1764 = vmatpush1.bf16.msra.mxu0 0
        %1765 = vmatprep.subr.bf16.mxu0 0
        %1766 = vmatpush1.bf16.msra.mxu0 0
        %1767 = vmatprep.subr.bf16.mxu0 0
        %1768 = vmatpush1.bf16.msra.mxu0 0
        %1769 = vmatprep.subr.bf16.mxu0 0
        %1770 = vmatpush1.bf16.msra.mxu0 0
        %1771 = vmatprep.subr.bf16.mxu0 0
        %1772 = vmatpush1.bf16.msra.mxu0 0
        %1773 = vmatprep.mubr.bf16.mxu0 0
        %1774 = vmatmul.mubr.bf16.gmra.mrb[0].mxu0 %v1736
        %v1775 = vpop.f32.mrb[0].mxu0
        %v1776 = vadd.f32 0.0, %v1775
        %v1777 = vpop.f32.mrb[0].mxu0
        %v1778 = vpop.f32.mrb[0].mxu0
        %v1779 = vpop.f32.mrb[0].mxu0
        %1780 = vdwg.mxu0
        %1781 = vst [vmem:[#allocation3 + $0x20] sm:$0xff] %v1776
        %v1782 = vpack.c.bf16 %v1053, %v1053
        %v1783 = vpack.c.bf16 %v1139, %v1139
        %v1784 = vpack.c.bf16 %v1225, %v1225
        %1785 = vmatprep.subr.bf16.mxu0 0
        %1786 = vmatpush1.bf16.xpose.msra.mxu0 %v1783
        %1787 = vmatprep.subr.bf16.mxu0 0
        %1788 = vmatpush1.bf16.xpose.msra.mxu0 0
        %1789 = vmatprep.subr.bf16.mxu0 0
        %1790 = vmatpush1.bf16.xpose.msra.mxu0 0
        %1791 = vmatprep.subr.bf16.mxu0 0
        %1792 = vmatpush1.bf16.xpose.msra.mxu0 0
        %1793 = vmatprep.subr.bf16.mxu0 0
        %1794 = vmatpush1.bf16.xpose.msra.mxu0 0
        %1795 = vmatprep.subr.bf16.mxu0 0
        %1796 = vmatpush1.bf16.xpose.msra.mxu0 0
        %1797 = vmatprep.subr.bf16.mxu0 0
        %1798 = vmatpush1.bf16.xpose.msra.mxu0 0
        %1799 = vmatprep.subr.bf16.mxu0 0
        %1800 = vmatpush1.bf16.xpose.msra.mxu0 0
        %1801 = vmatprep.subr.bf16.mxu0 0
        %1802 = vmatpush1.bf16.xpose.msra.mxu0 0
        %1803 = vmatprep.subr.bf16.mxu0 0
        %1804 = vmatpush1.bf16.xpose.msra.mxu0 0
        %1805 = vmatprep.subr.bf16.mxu0 0
        %1806 = vmatpush1.bf16.xpose.msra.mxu0 0
        %1807 = vmatprep.subr.bf16.mxu0 0
        %1808 = vmatpush1.bf16.xpose.msra.mxu0 0
        %1809 = vmatprep.subr.bf16.mxu0 0
        %1810 = vmatpush1.bf16.xpose.msra.mxu0 0
        %1811 = vmatprep.subr.bf16.mxu0 0
        %1812 = vmatpush1.bf16.xpose.msra.mxu0 0
        %1813 = vmatprep.subr.bf16.mxu0 0
        %1814 = vmatpush1.bf16.xpose.msra.mxu0 0
        %1815 = vmatprep.subr.bf16.mxu0 0
        %1816 = vmatpush1.bf16.xpose.msra.mxu0 0
        %1817 = vmatprep.mubr.bf16.mxu0 0
        %1818 = vmatmul.mubr.bf16.gmra.mrb[0].mxu0 %v1782
        %v1819 = vpop.f32.mrb[0].mxu0
        %v1820 = vadd.f32 0.0, %v1819
        %v1821 = vpop.f32.mrb[0].mxu0
        %v1822 = vpop.f32.mrb[0].mxu0
        %v1823 = vpop.f32.mrb[0].mxu0
        %1824 = vdwg.mxu0
        %v1825 = vsel %vm1313, %v1820, -inf
        %1826 = vmax.xlane.f32.xlu0 %v1825
        %v1827 = vpop.xlane.xlu0 %1826
        %v1828 = vsub.f32 %v1820, %v1827
        %v1829 = vmul.f32 %v1828, 1.442695
        %v1830 = vpow.pop %v1829
        %v1831 = vsel %vm1313, %v1830, 0.0
        %1832 = vadd.xlane.f32.xlu0 %v1831
        %v1833 = vpop.xlane.xlu0 %1832
        %v1834 = vrcp.pop %v1833
        %v1835 = vmul.f32 %v1830, %v1834
        %v1836 = vpack.c.bf16 %v1835, %v1835
        %v1838 = vsel %vm1313, %v1836, 0
        %v1841 = vsel %vm1329, %v1784, 0
        %1843 = vmatprep.subr.bf16.mxu0 0
        %1844 = vmatpush1.bf16.msra.mxu0 %v1841
        %1845 = vmatprep.subr.bf16.mxu0 0
        %1846 = vmatpush1.bf16.msra.mxu0 0
        %1847 = vmatprep.subr.bf16.mxu0 0
        %1848 = vmatpush1.bf16.msra.mxu0 0
        %1849 = vmatprep.subr.bf16.mxu0 0
        %1850 = vmatpush1.bf16.msra.mxu0 0
        %1851 = vmatprep.subr.bf16.mxu0 0
        %1852 = vmatpush1.bf16.msra.mxu0 0
        %1853 = vmatprep.subr.bf16.mxu0 0
        %1854 = vmatpush1.bf16.msra.mxu0 0
        %1855 = vmatprep.subr.bf16.mxu0 0
        %1856 = vmatpush1.bf16.msra.mxu0 0
        %1857 = vmatprep.subr.bf16.mxu0 0
        %1858 = vmatpush1.bf16.msra.mxu0 0
        %1859 = vmatprep.subr.bf16.mxu0 0
        %1860 = vmatpush1.bf16.msra.mxu0 0
        %1861 = vmatprep.subr.bf16.mxu0 0
        %1862 = vmatpush1.bf16.msra.mxu0 0
        %1863 = vmatprep.subr.bf16.mxu0 0
        %1864 = vmatpush1.bf16.msra.mxu0 0
        %1865 = vmatprep.subr.bf16.mxu0 0
        %1866 = vmatpush1.bf16.msra.mxu0 0
        %1867 = vmatprep.subr.bf16.mxu0 0
        %1868 = vmatpush1.bf16.msra.mxu0 0
        %1869 = vmatprep.subr.bf16.mxu0 0
        %1870 = vmatpush1.bf16.msra.mxu0 0
        %1871 = vmatprep.subr.bf16.mxu0 0
        %1872 = vmatpush1.bf16.msra.mxu0 0
        %1873 = vmatprep.subr.bf16.mxu0 0
        %1874 = vmatpush1.bf16.msra.mxu0 0
        %1875 = vmatprep.mubr.bf16.mxu0 0
        %1876 = vmatmul.mubr.bf16.gmra.mrb[0].mxu0 %v1838
        %v1877 = vpop.f32.mrb[0].mxu0
        %v1878 = vadd.f32 0.0, %v1877
        %v1879 = vpop.f32.mrb[0].mxu0
        %v1880 = vpop.f32.mrb[0].mxu0
        %v1881 = vpop.f32.mrb[0].mxu0
        %1882 = vdwg.mxu0
        %1883 = vst [vmem:[#allocation3 + $0x28] sm:$0xff] %v1878
        %v1884 = vpack.c.bf16 %v1094, %v1094
        %v1885 = vpack.c.bf16 %v1180, %v1180
        %v1886 = vpack.c.bf16 %v1266, %v1266
        %1887 = vmatprep.subr.bf16.mxu0 0
        %1888 = vmatpush1.bf16.xpose.msra.mxu0 %v1885
        %1889 = vmatprep.subr.bf16.mxu0 0
        %1890 = vmatpush1.bf16.xpose.msra.mxu0 0
        %1891 = vmatprep.subr.bf16.mxu0 0
        %1892 = vmatpush1.bf16.xpose.msra.mxu0 0
        %1893 = vmatprep.subr.bf16.mxu0 0
        %1894 = vmatpush1.bf16.xpose.msra.mxu0 0
        %1895 = vmatprep.subr.bf16.mxu0 0
        %1896 = vmatpush1.bf16.xpose.msra.mxu0 0
        %1897 = vmatprep.subr.bf16.mxu0 0
        %1898 = vmatpush1.bf16.xpose.msra.mxu0 0
        %1899 = vmatprep.subr.bf16.mxu0 0
        %1900 = vmatpush1.bf16.xpose.msra.mxu0 0
        %1901 = vmatprep.subr.bf16.mxu0 0
        %1902 = vmatpush1.bf16.xpose.msra.mxu0 0
        %1903 = vmatprep.subr.bf16.mxu0 0
        %1904 = vmatpush1.bf16.xpose.msra.mxu0 0
        %1905 = vmatprep.subr.bf16.mxu0 0
        %1906 = vmatpush1.bf16.xpose.msra.mxu0 0
        %1907 = vmatprep.subr.bf16.mxu0 0
        %1908 = vmatpush1.bf16.xpose.msra.mxu0 0
        %1909 = vmatprep.subr.bf16.mxu0 0
        %1910 = vmatpush1.bf16.xpose.msra.mxu0 0
        %1911 = vmatprep.subr.bf16.mxu0 0
        %1912 = vmatpush1.bf16.xpose.msra.mxu0 0
        %1913 = vmatprep.subr.bf16.mxu0 0
        %1914 = vmatpush1.bf16.xpose.msra.mxu0 0
        %1915 = vmatprep.subr.bf16.mxu0 0
        %1916 = vmatpush1.bf16.xpose.msra.mxu0 0
        %1917 = vmatprep.subr.bf16.mxu0 0
        %1918 = vmatpush1.bf16.xpose.msra.mxu0 0
        %1919 = vmatprep.mubr.bf16.mxu0 0
        %1920 = vmatmul.mubr.bf16.gmra.mrb[0].mxu0 %v1884
        %v1921 = vpop.f32.mrb[0].mxu0
        %v1922 = vadd.f32 0.0, %v1921
        %v1923 = vpop.f32.mrb[0].mxu0
        %v1924 = vpop.f32.mrb[0].mxu0
        %v1925 = vpop.f32.mrb[0].mxu0
        %1926 = vdwg.mxu0
        %v1927 = vsel %vm1313, %v1922, -inf
        %1928 = vmax.xlane.f32.xlu0 %v1927
        %v1929 = vpop.xlane.xlu0 %1928
        %v1930 = vsub.f32 %v1922, %v1929
        %v1931 = vmul.f32 %v1930, 1.442695
        %v1932 = vpow.pop %v1931
        %v1933 = vsel %vm1313, %v1932, 0.0
        %1934 = vadd.xlane.f32.xlu0 %v1933
        %v1935 = vpop.xlane.xlu0 %1934
        %v1936 = vrcp.pop %v1935
        %v1937 = vmul.f32 %v1932, %v1936
        %v1938 = vpack.c.bf16 %v1937, %v1937
        %v1940 = vsel %vm1313, %v1938, 0
        %v1943 = vsel %vm1329, %v1886, 0
        %1945 = vmatprep.subr.bf16.mxu0 0
        %1946 = vmatpush1.bf16.msra.mxu0 %v1943
        %1947 = vmatprep.subr.bf16.mxu0 0
        %1948 = vmatpush1.bf16.msra.mxu0 0
        %1949 = vmatprep.subr.bf16.mxu0 0
        %1950 = vmatpush1.bf16.msra.mxu0 0
        %1951 = vmatprep.subr.bf16.mxu0 0
        %1952 = vmatpush1.bf16.msra.mxu0 0
        %1953 = vmatprep.subr.bf16.mxu0 0
        %1954 = vmatpush1.bf16.msra.mxu0 0
        %1955 = vmatprep.subr.bf16.mxu0 0
        %1956 = vmatpush1.bf16.msra.mxu0 0
        %1957 = vmatprep.subr.bf16.mxu0 0
        %1958 = vmatpush1.bf16.msra.mxu0 0
        %1959 = vmatprep.subr.bf16.mxu0 0
        %1960 = vmatpush1.bf16.msra.mxu0 0
        %1961 = vmatprep.subr.bf16.mxu0 0
        %1962 = vmatpush1.bf16.msra.mxu0 0
        %1963 = vmatprep.subr.bf16.mxu0 0
        %1964 = vmatpush1.bf16.msra.mxu0 0
        %1965 = vmatprep.subr.bf16.mxu0 0
        %1966 = vmatpush1.bf16.msra.mxu0 0
        %1967 = vmatprep.subr.bf16.mxu0 0
        %1968 = vmatpush1.bf16.msra.mxu0 0
        %1969 = vmatprep.subr.bf16.mxu0 0
        %1970 = vmatpush1.bf16.msra.mxu0 0
        %1971 = vmatprep.subr.bf16.mxu0 0
        %1972 = vmatpush1.bf16.msra.mxu0 0
        %1973 = vmatprep.subr.bf16.mxu0 0
        %1974 = vmatpush1.bf16.msra.mxu0 0
        %1975 = vmatprep.subr.bf16.mxu0 0
        %1976 = vmatpush1.bf16.msra.mxu0 0
        %1977 = vmatprep.mubr.bf16.mxu0 0
        %1978 = vmatmul.mubr.bf16.gmra.mrb[0].mxu0 %v1940
        %v1979 = vpop.f32.mrb[0].mxu0
        %v1980 = vadd.f32 0.0, %v1979
        %v1981 = vpop.f32.mrb[0].mxu0
        %v1982 = vpop.f32.mrb[0].mxu0
        %v1983 = vpop.f32.mrb[0].mxu0
        %1984 = vdwg.mxu0
        %1985 = vst [vmem:[#allocation3 + $0x30] sm:$0xff] %v1980
        %v1986 = vpack.c.bf16 %v1096, %v1096
        %v1987 = vpack.c.bf16 %v1182, %v1182
        %v1988 = vpack.c.bf16 %v1268, %v1268
        %1989 = vmatprep.subr.bf16.mxu0 0
        %1990 = vmatpush1.bf16.xpose.msra.mxu0 %v1987
        %1991 = vmatprep.subr.bf16.mxu0 0
        %1992 = vmatpush1.bf16.xpose.msra.mxu0 0
        %1993 = vmatprep.subr.bf16.mxu0 0
        %1994 = vmatpush1.bf16.xpose.msra.mxu0 0
        %1995 = vmatprep.subr.bf16.mxu0 0
        %1996 = vmatpush1.bf16.xpose.msra.mxu0 0
        %1997 = vmatprep.subr.bf16.mxu0 0
        %1998 = vmatpush1.bf16.xpose.msra.mxu0 0
        %1999 = vmatprep.subr.bf16.mxu0 0
        %2000 = vmatpush1.bf16.xpose.msra.mxu0 0
        %2001 = vmatprep.subr.bf16.mxu0 0
        %2002 = vmatpush1.bf16.xpose.msra.mxu0 0
        %2003 = vmatprep.subr.bf16.mxu0 0
        %2004 = vmatpush1.bf16.xpose.msra.mxu0 0
        %2005 = vmatprep.subr.bf16.mxu0 0
        %2006 = vmatpush1.bf16.xpose.msra.mxu0 0
        %2007 = vmatprep.subr.bf16.mxu0 0
        %2008 = vmatpush1.bf16.xpose.msra.mxu0 0
        %2009 = vmatprep.subr.bf16.mxu0 0
        %2010 = vmatpush1.bf16.xpose.msra.mxu0 0
        %2011 = vmatprep.subr.bf16.mxu0 0
        %2012 = vmatpush1.bf16.xpose.msra.mxu0 0
        %2013 = vmatprep.subr.bf16.mxu0 0
        %2014 = vmatpush1.bf16.xpose.msra.mxu0 0
        %2015 = vmatprep.subr.bf16.mxu0 0
        %2016 = vmatpush1.bf16.xpose.msra.mxu0 0
        %2017 = vmatprep.subr.bf16.mxu0 0
        %2018 = vmatpush1.bf16.xpose.msra.mxu0 0
        %2019 = vmatprep.subr.bf16.mxu0 0
        %2020 = vmatpush1.bf16.xpose.msra.mxu0 0
        %2021 = vmatprep.mubr.bf16.mxu0 0
        %2022 = vmatmul.mubr.bf16.gmra.mrb[0].mxu0 %v1986
        %v2023 = vpop.f32.mrb[0].mxu0
        %v2024 = vadd.f32 0.0, %v2023
        %v2025 = vpop.f32.mrb[0].mxu0
        %v2026 = vpop.f32.mrb[0].mxu0
        %v2027 = vpop.f32.mrb[0].mxu0
        %2028 = vdwg.mxu0
        %v2029 = vsel %vm1313, %v2024, -inf
        %2030 = vmax.xlane.f32.xlu0 %v2029
        %v2031 = vpop.xlane.xlu0 %2030
        %v2032 = vsub.f32 %v2024, %v2031
        %v2033 = vmul.f32 %v2032, 1.442695
        %v2034 = vpow.pop %v2033
        %v2035 = vsel %vm1313, %v2034, 0.0
        %2036 = vadd.xlane.f32.xlu0 %v2035
        %v2037 = vpop.xlane.xlu0 %2036
        %v2038 = vrcp.pop %v2037
        %v2039 = vmul.f32 %v2034, %v2038
        %v2040 = vpack.c.bf16 %v2039, %v2039
        %v2042 = vsel %vm1313, %v2040, 0
        %v2045 = vsel %vm1329, %v1988, 0
        %2047 = vmatprep.subr.bf16.mxu0 0
        %2048 = vmatpush1.bf16.msra.mxu0 %v2045
        %2049 = vmatprep.subr.bf16.mxu0 0
        %2050 = vmatpush1.bf16.msra.mxu0 0
        %2051 = vmatprep.subr.bf16.mxu0 0
        %2052 = vmatpush1.bf16.msra.mxu0 0
        %2053 = vmatprep.subr.bf16.mxu0 0
        %2054 = vmatpush1.bf16.msra.mxu0 0
        %2055 = vmatprep.subr.bf16.mxu0 0
        %2056 = vmatpush1.bf16.msra.mxu0 0
        %2057 = vmatprep.subr.bf16.mxu0 0
        %2058 = vmatpush1.bf16.msra.mxu0 0
        %2059 = vmatprep.subr.bf16.mxu0 0
        %2060 = vmatpush1.bf16.msra.mxu0 0
        %2061 = vmatprep.subr.bf16.mxu0 0
        %2062 = vmatpush1.bf16.msra.mxu0 0
        %2063 = vmatprep.subr.bf16.mxu0 0
        %2064 = vmatpush1.bf16.msra.mxu0 0
        %2065 = vmatprep.subr.bf16.mxu0 0
        %2066 = vmatpush1.bf16.msra.mxu0 0
        %2067 = vmatprep.subr.bf16.mxu0 0
        %2068 = vmatpush1.bf16.msra.mxu0 0
        %2069 = vmatprep.subr.bf16.mxu0 0
        %2070 = vmatpush1.bf16.msra.mxu0 0
        %2071 = vmatprep.subr.bf16.mxu0 0
        %2072 = vmatpush1.bf16.msra.mxu0 0
        %2073 = vmatprep.subr.bf16.mxu0 0
        %2074 = vmatpush1.bf16.msra.mxu0 0
        %2075 = vmatprep.subr.bf16.mxu0 0
        %2076 = vmatpush1.bf16.msra.mxu0 0
        %2077 = vmatprep.subr.bf16.mxu0 0
        %2078 = vmatpush1.bf16.msra.mxu0 0
        %2079 = vmatprep.mubr.bf16.mxu0 0
        %2080 = vmatmul.mubr.bf16.gmra.mrb[0].mxu0 %v2042
        %v2081 = vpop.f32.mrb[0].mxu0
        %v2082 = vadd.f32 0.0, %v2081
        %v2083 = vpop.f32.mrb[0].mxu0
        %v2084 = vpop.f32.mrb[0].mxu0
        %v2085 = vpop.f32.mrb[0].mxu0
        %2086 = vdwg.mxu0
        %2087 = vst [vmem:[#allocation3 + $0x38] sm:$0xff] %v2082
        %v2088 = vld [vmem:[#allocation3] sm:$0xff]
        %v2089 = vld [vmem:[#allocation3 + $0x8] sm:$0xff]
        %v2090 = vld [vmem:[#allocation3 + $0x10] sm:$0xff]
        %v2091 = vld [vmem:[#allocation3 + $0x18] sm:$0xff]
        %v2092 = vld [vmem:[#allocation3 + $0x20] sm:$0xff]
        %v2093 = vld [vmem:[#allocation3 + $0x28] sm:$0xff]
        %v2094 = vld [vmem:[#allocation3 + $0x30] sm:$0xff]
        %v2095 = vld [vmem:[#allocation3 + $0x38] sm:$0xff]
        %v2096 = vpack.c.bf16 %v2092, %v2088
        %v2097 = vpack.c.bf16 %v2093, %v2089
        %v2098 = vpack.c.bf16 %v2094, %v2090
        %v2099 = vpack.c.bf16 %v2095, %v2091
        %v2100 = vld [vmem:[%s621] sm:$0xf]
        %v2101 = vld [vmem:[%s621 + $0x4] sm:$0xf]
        %v2102 = vld [vmem:[%s621 + $0x8] sm:$0xf]
        %v2103 = vld [vmem:[%s621 + $0xc] sm:$0xf]
        %v2104 = vld [vmem:[%s621 + $0x10] sm:$0xf]
        %v2105 = vld [vmem:[%s621 + $0x14] sm:$0xf]
        %v2106 = vld [vmem:[%s621 + $0x18] sm:$0xf]
        %v2107 = vld [vmem:[%s621 + $0x1c] sm:$0xf]
        %v2108 = vld [vmem:[%s621 + $0x20] sm:$0xf]
        %v2109 = vld [vmem:[%s621 + $0x24] sm:$0xf]
        %v2110 = vld [vmem:[%s621 + $0x28] sm:$0xf]
        %v2111 = vld [vmem:[%s621 + $0x2c] sm:$0xf]
        %v2112 = vld [vmem:[%s621 + $0x30] sm:$0xf]
        %v2113 = vld [vmem:[%s621 + $0x34] sm:$0xf]
        %v2114 = vld [vmem:[%s621 + $0x38] sm:$0xf]
        %v2115 = vld [vmem:[%s621 + $0x3c] sm:$0xf]
        %v2116 = vld [vmem:[%s621 + $0x40] sm:$0xf]
        %v2117 = vld [vmem:[%s621 + $0x44] sm:$0xf]
        %v2118 = vld [vmem:[%s621 + $0x48] sm:$0xf]
        %v2119 = vld [vmem:[%s621 + $0x4c] sm:$0xf]
        %v2120 = vld [vmem:[%s621 + $0x50] sm:$0xf]
        %v2121 = vld [vmem:[%s621 + $0x54] sm:$0xf]
        %v2122 = vld [vmem:[%s621 + $0x58] sm:$0xf]
        %v2123 = vld [vmem:[%s621 + $0x5c] sm:$0xf]
        %v2124 = vld [vmem:[%s621 + $0x60] sm:$0xf]
        %v2125 = vld [vmem:[%s621 + $0x64] sm:$0xf]
        %v2126 = vld [vmem:[%s621 + $0x68] sm:$0xf]
        %v2127 = vld [vmem:[%s621 + $0x6c] sm:$0xf]
        %v2128 = vld [vmem:[%s621 + $0x70] sm:$0xf]
        %v2129 = vld [vmem:[%s621 + $0x74] sm:$0xf]
        %v2130 = vld [vmem:[%s621 + $0x78] sm:$0xf]
        %v2131 = vld [vmem:[%s621 + $0x7c] sm:$0xf]
        %v2132 = vld [vmem:[%s621 + $0x80] sm:$0xf]
        %v2133 = vld [vmem:[%s621 + $0x84] sm:$0xf]
        %v2134 = vld [vmem:[%s621 + $0x88] sm:$0xf]
        %v2135 = vld [vmem:[%s621 + $0x8c] sm:$0xf]
        %v2136 = vld [vmem:[%s621 + $0x90] sm:$0xf]
        %v2137 = vld [vmem:[%s621 + $0x94] sm:$0xf]
        %v2138 = vld [vmem:[%s621 + $0x98] sm:$0xf]
        %v2139 = vld [vmem:[%s621 + $0x9c] sm:$0xf]
        %v2140 = vld [vmem:[%s621 + $0xa0] sm:$0xf]
        %v2141 = vld [vmem:[%s621 + $0xa4] sm:$0xf]
        %v2142 = vld [vmem:[%s621 + $0xa8] sm:$0xf]
        %v2143 = vld [vmem:[%s621 + $0xac] sm:$0xf]
        %v2144 = vld [vmem:[%s621 + $0xb0] sm:$0xf]
        %v2145 = vld [vmem:[%s621 + $0xb4] sm:$0xf]
        %v2146 = vld [vmem:[%s621 + $0xb8] sm:$0xf]
        %v2147 = vld [vmem:[%s621 + $0xbc] sm:$0xf]
        %v2148 = vld [vmem:[%s621 + $0xc0] sm:$0xf]
        %v2149 = vld [vmem:[%s621 + $0xc4] sm:$0xf]
        %v2150 = vld [vmem:[%s621 + $0xc8] sm:$0xf]
        %v2151 = vld [vmem:[%s621 + $0xcc] sm:$0xf]
        %v2152 = vld [vmem:[%s621 + $0xd0] sm:$0xf]
        %v2153 = vld [vmem:[%s621 + $0xd4] sm:$0xf]
        %v2154 = vld [vmem:[%s621 + $0xd8] sm:$0xf]
        %v2155 = vld [vmem:[%s621 + $0xdc] sm:$0xf]
        %v2156 = vld [vmem:[%s621 + $0xe0] sm:$0xf]
        %v2157 = vld [vmem:[%s621 + $0xe4] sm:$0xf]
        %v2158 = vld [vmem:[%s621 + $0xe8] sm:$0xf]
        %v2159 = vld [vmem:[%s621 + $0xec] sm:$0xf]
        %v2160 = vld [vmem:[%s621 + $0xf0] sm:$0xf]
        %v2161 = vld [vmem:[%s621 + $0xf4] sm:$0xf]
        %v2162 = vld [vmem:[%s621 + $0xf8] sm:$0xf]
        %v2163 = vld [vmem:[%s621 + $0xfc] sm:$0xf]
        %v2164 = vld [vmem:[%s624] sm:$0x1]
        %v2166 = vlaneseq
        %v2167 = vshrl.u32 %v2166, 7
        %v2168 = vsub.s32 0, %v2167
        %v2169 = vrot.slane %v2164, %v2168
        %v2235 = vunpack.c.l.b16 %v2100
        %v2236 = vunpack.c.l.b16 %v2101
        %v2237 = vunpack.c.l.b16 %v2102
        %v2238 = vunpack.c.l.b16 %v2103
        %v2239 = vunpack.c.l.b16 %v2104
        %v2240 = vunpack.c.l.b16 %v2105
        %v2241 = vunpack.c.l.b16 %v2106
        %v2242 = vunpack.c.l.b16 %v2107
        %v2243 = vunpack.c.l.b16 %v2108
        %v2244 = vunpack.c.l.b16 %v2109
        %v2245 = vunpack.c.l.b16 %v2110
        %v2246 = vunpack.c.l.b16 %v2111
        %v2247 = vunpack.c.l.b16 %v2112
        %v2248 = vunpack.c.l.b16 %v2113
        %v2249 = vunpack.c.l.b16 %v2114
        %v2250 = vunpack.c.l.b16 %v2115
        %v2251 = vunpack.c.l.b16 %v2116
        %v2252 = vunpack.c.l.b16 %v2117
        %v2253 = vunpack.c.l.b16 %v2118
        %v2254 = vunpack.c.l.b16 %v2119
        %v2255 = vunpack.c.l.b16 %v2120
        %v2256 = vunpack.c.l.b16 %v2121
        %v2257 = vunpack.c.l.b16 %v2122
        %v2258 = vunpack.c.l.b16 %v2123
        %v2259 = vunpack.c.l.b16 %v2124
        %v2260 = vunpack.c.l.b16 %v2125
        %v2261 = vunpack.c.l.b16 %v2126
        %v2262 = vunpack.c.l.b16 %v2127
        %v2263 = vunpack.c.l.b16 %v2128
        %v2264 = vunpack.c.l.b16 %v2129
        %v2265 = vunpack.c.l.b16 %v2130
        %v2266 = vunpack.c.l.b16 %v2131
        %v2267 = vunpack.c.l.b16 %v2132
        %v2268 = vunpack.c.l.b16 %v2133
        %v2269 = vunpack.c.l.b16 %v2134
        %v2270 = vunpack.c.l.b16 %v2135
        %v2271 = vunpack.c.l.b16 %v2136
        %v2272 = vunpack.c.l.b16 %v2137
        %v2273 = vunpack.c.l.b16 %v2138
        %v2274 = vunpack.c.l.b16 %v2139
        %v2275 = vunpack.c.l.b16 %v2140
        %v2276 = vunpack.c.l.b16 %v2141
        %v2277 = vunpack.c.l.b16 %v2142
        %v2278 = vunpack.c.l.b16 %v2143
        %v2279 = vunpack.c.l.b16 %v2144
        %v2280 = vunpack.c.l.b16 %v2145
        %v2281 = vunpack.c.l.b16 %v2146
        %v2282 = vunpack.c.l.b16 %v2147
        %v2283 = vunpack.c.l.b16 %v2148
        %v2284 = vunpack.c.l.b16 %v2149
        %v2285 = vunpack.c.l.b16 %v2150
        %v2286 = vunpack.c.l.b16 %v2151
        %v2287 = vunpack.c.l.b16 %v2152
        %v2288 = vunpack.c.l.b16 %v2153
        %v2289 = vunpack.c.l.b16 %v2154
        %v2290 = vunpack.c.l.b16 %v2155
        %v2291 = vunpack.c.l.b16 %v2156
        %v2292 = vunpack.c.l.b16 %v2157
        %v2293 = vunpack.c.l.b16 %v2158
        %v2294 = vunpack.c.l.b16 %v2159
        %v2295 = vunpack.c.l.b16 %v2160
        %v2296 = vunpack.c.l.b16 %v2161
        %v2297 = vunpack.c.l.b16 %v2162
        %v2298 = vunpack.c.l.b16 %v2163
        %v2299 = vpack.c.b16 %v2236, %v2235
        %v2300 = vpack.c.b16 %v2238, %v2237
        %v2301 = vpack.c.b16 %v2240, %v2239
        %v2302 = vpack.c.b16 %v2242, %v2241
        %v2303 = vpack.c.b16 %v2244, %v2243
        %v2304 = vpack.c.b16 %v2246, %v2245
        %v2305 = vpack.c.b16 %v2248, %v2247
        %v2306 = vpack.c.b16 %v2250, %v2249
        %v2307 = vpack.c.b16 %v2252, %v2251
        %v2308 = vpack.c.b16 %v2254, %v2253
        %v2309 = vpack.c.b16 %v2256, %v2255
        %v2310 = vpack.c.b16 %v2258, %v2257
        %v2311 = vpack.c.b16 %v2260, %v2259
        %v2312 = vpack.c.b16 %v2262, %v2261
        %v2313 = vpack.c.b16 %v2264, %v2263
        %v2314 = vpack.c.b16 %v2266, %v2265
        %v2315 = vpack.c.b16 %v2268, %v2267
        %v2316 = vpack.c.b16 %v2270, %v2269
        %v2317 = vpack.c.b16 %v2272, %v2271
        %v2318 = vpack.c.b16 %v2274, %v2273
        %v2319 = vpack.c.b16 %v2276, %v2275
        %v2320 = vpack.c.b16 %v2278, %v2277
        %v2321 = vpack.c.b16 %v2280, %v2279
        %v2322 = vpack.c.b16 %v2282, %v2281
        %v2323 = vpack.c.b16 %v2284, %v2283
        %v2324 = vpack.c.b16 %v2286, %v2285
        %v2325 = vpack.c.b16 %v2288, %v2287
        %v2326 = vpack.c.b16 %v2290, %v2289
        %v2327 = vpack.c.b16 %v2292, %v2291
        %v2328 = vpack.c.b16 %v2294, %v2293
        %v2329 = vpack.c.b16 %v2296, %v2295
        %v2330 = vpack.c.b16 %v2298, %v2297
        %2363 = vmatprep.subr.bf16.mxu0 0
        %2364 = vmatpush1.bf16.msra.mxu0 %v2299
        %2365 = vmatprep.subr.bf16.mxu0 0
        %2366 = vmatpush1.bf16.msra.mxu0 %v2300
        %2367 = vmatprep.subr.bf16.mxu0 0
        %2368 = vmatpush1.bf16.msra.mxu0 %v2301
        %2369 = vmatprep.subr.bf16.mxu0 0
        %2370 = vmatpush1.bf16.msra.mxu0 %v2302
        %2371 = vmatprep.subr.bf16.mxu0 0
        %2372 = vmatpush1.bf16.msra.mxu0 %v2303
        %2373 = vmatprep.subr.bf16.mxu0 0
        %2374 = vmatpush1.bf16.msra.mxu0 %v2304
        %2375 = vmatprep.subr.bf16.mxu0 0
        %2376 = vmatpush1.bf16.msra.mxu0 %v2305
        %2377 = vmatprep.subr.bf16.mxu0 0
        %2378 = vmatpush1.bf16.msra.mxu0 %v2306
        %2379 = vmatprep.subr.bf16.mxu0 0
        %2380 = vmatpush1.bf16.msra.mxu0 %v2307
        %2381 = vmatprep.subr.bf16.mxu0 0
        %2382 = vmatpush1.bf16.msra.mxu0 %v2308
        %2383 = vmatprep.subr.bf16.mxu0 0
        %2384 = vmatpush1.bf16.msra.mxu0 %v2309
        %2385 = vmatprep.subr.bf16.mxu0 0
        %2386 = vmatpush1.bf16.msra.mxu0 %v2310
        %2387 = vmatprep.subr.bf16.mxu0 0
        %2388 = vmatpush1.bf16.msra.mxu0 %v2311
        %2389 = vmatprep.subr.bf16.mxu0 0
        %2390 = vmatpush1.bf16.msra.mxu0 %v2312
        %2391 = vmatprep.subr.bf16.mxu0 0
        %2392 = vmatpush1.bf16.msra.mxu0 %v2313
        %2393 = vmatprep.subr.bf16.mxu0 0
        %2394 = vmatpush1.bf16.msra.mxu0 %v2314
        %2395 = vmatprep.mubr.bf16.mxu0 %v2097
        %2396 = vmatmul.mubr.bf16.gmra.mrb[0].mxu0 %v2096
        %v2397 = vpop.f32.mrb[0].mxu0
        %v2398 = vadd.f32 %v2169, %v2397
        %v2399 = vpop.f32.mrb[0].mxu0
        %v2400 = vpop.f32.mrb[0].mxu0
        %v2401 = vadd.f32 %v2169, %v2400
        %v2402 = vpop.f32.mrb[0].mxu0
        %2403 = vdwg.mxu0
        %2404 = vmatprep.subr.bf16.mxu0 0
        %2405 = vmatpush1.bf16.msra.mxu0 %v2315
        %2406 = vmatprep.subr.bf16.mxu0 0
        %2407 = vmatpush1.bf16.msra.mxu0 %v2316
        %2408 = vmatprep.subr.bf16.mxu0 0
        %2409 = vmatpush1.bf16.msra.mxu0 %v2317
        %2410 = vmatprep.subr.bf16.mxu0 0
        %2411 = vmatpush1.bf16.msra.mxu0 %v2318
        %2412 = vmatprep.subr.bf16.mxu0 0
        %2413 = vmatpush1.bf16.msra.mxu0 %v2319
        %2414 = vmatprep.subr.bf16.mxu0 0
        %2415 = vmatpush1.bf16.msra.mxu0 %v2320
        %2416 = vmatprep.subr.bf16.mxu0 0
        %2417 = vmatpush1.bf16.msra.mxu0 %v2321
        %2418 = vmatprep.subr.bf16.mxu0 0
        %2419 = vmatpush1.bf16.msra.mxu0 %v2322
        %2420 = vmatprep.subr.bf16.mxu0 0
        %2421 = vmatpush1.bf16.msra.mxu0 %v2323
        %2422 = vmatprep.subr.bf16.mxu0 0
        %2423 = vmatpush1.bf16.msra.mxu0 %v2324
        %2424 = vmatprep.subr.bf16.mxu0 0
        %2425 = vmatpush1.bf16.msra.mxu0 %v2325
        %2426 = vmatprep.subr.bf16.mxu0 0
        %2427 = vmatpush1.bf16.msra.mxu0 %v2326
        %2428 = vmatprep.subr.bf16.mxu0 0
        %2429 = vmatpush1.bf16.msra.mxu0 %v2327
        %2430 = vmatprep.subr.bf16.mxu0 0
        %2431 = vmatpush1.bf16.msra.mxu0 %v2328
        %2432 = vmatprep.subr.bf16.mxu0 0
        %2433 = vmatpush1.bf16.msra.mxu0 %v2329
        %2434 = vmatprep.subr.bf16.mxu0 0
        %2435 = vmatpush1.bf16.msra.mxu0 %v2330
        %2436 = vmatprep.mubr.bf16.mxu0 %v2099
        %2437 = vmatmul.mubr.bf16.gmra.mrb[0].mxu0 %v2098
        %v2438 = vpop.f32.mrb[0].mxu0
        %v2439 = vadd.f32 %v2398, %v2438
        %v2440 = vpop.f32.mrb[0].mxu0
        %v2441 = vpop.f32.mrb[0].mxu0
        %v2442 = vadd.f32 %v2401, %v2441
        %v2443 = vpop.f32.mrb[0].mxu0
        %2444 = vdwg.mxu0
        %v2445 = vadd.f32 %v752, %v2439
        %v2446 = vadd.f32 %v753, %v2442
        %v2447 = vld [vmem:[%s627] sm:$0x1]
        %v2448 = vld [vmem:[%s630] sm:$0x1]
        %v2449 = vsel %vm756, %v2445, 0.0
        %2450 = vadd.xlane.f32.xlu0 %v2449
        %v2451 = vpop.xlane.xlu0 %2450
        %v2452 = vsel %vm756, %v2446, 0.0
        %2453 = vadd.xlane.f32.xlu0 %v2452
        %v2454 = vpop.xlane.xlu0 %2453
        %v2455 = vmul.f32 %v2451, %v763
        %v2456 = vmul.f32 %v2454, %v763
        %v2457 = vsub.f32 %v2445, %v2455
        %v2458 = vsub.f32 %v2446, %v2456
        %v2459 = vmul.f32 %v2457, %v2457
        %v2460 = vmul.f32 %v2458, %v2458
        %v2461 = vsel %vm756, %v2459, 0.0
        %2462 = vadd.xlane.f32.xlu0 %v2461
        %v2463 = vpop.xlane.xlu0 %2462
        %v2464 = vsel %vm756, %v2460, 0.0
        %2465 = vadd.xlane.f32.xlu0 %v2464
        %v2466 = vpop.xlane.xlu0 %2465
        %v2467 = vmul.f32 %v2463, %v763
        %v2468 = vmul.f32 %v2466, %v763
        %v2469 = vadd.f32 %v2467, 1e-05
        %v2470 = vadd.f32 %v2468, 1e-05
        %v2471 = vrsqrt.pop %v2469
        %v2472 = vrsqrt.pop %v2470
        %v2473 = vmul.f32 %v2457, %v2471
        %v2474 = vmul.f32 %v2458, %v2472
        %v2476 = vlaneseq
        %v2477 = vshrl.u32 %v2476, 7
        %v2478 = vsub.s32 0, %v2477
        %v2479 = vrot.slane %v2447, %v2478
        %v2481 = vmul.f32 %v2473, %v2479
        %v2482 = vmul.f32 %v2474, %v2479
        %v2484 = vlaneseq
        %v2485 = vshrl.u32 %v2484, 7
        %v2486 = vsub.s32 0, %v2485
        %v2487 = vrot.slane %v2448, %v2486
        %v2489 = vadd.f32 %v2481, %v2487
        %v2490 = vadd.f32 %v2482, %v2487
        %v2491 = vpack.c.bf16 %v2490, %v2489
        %v2492 = vld [vmem:[%s635] sm:$0xf]
        %v2493 = vld [vmem:[%s635 + $0x4] sm:$0xf]
        %v2494 = vld [vmem:[%s635 + $0x8] sm:$0xf]
        %v2495 = vld [vmem:[%s635 + $0xc] sm:$0xf]
        %v2496 = vld [vmem:[%s638] sm:$0x1]
        %v2498 = vlaneseq
        %v2499 = vshrl.u32 %v2498, 7
        %v2500 = vsub.s32 0, %v2499
        %v2501 = vrot.slane %v2496, %v2500
        %v2507 = vunpack.c.l.b16 %v2492
        %v2508 = vunpack.c.l.b16 %v2493
        %v2509 = vunpack.c.l.b16 %v2494
        %v2510 = vunpack.c.l.b16 %v2495
        %v2511 = vpack.c.b16 %v2508, %v2507
        %v2512 = vpack.c.b16 %v2510, %v2509
        %v2516 = vsel %vm756, %v2491, 0
        %2518 = vmatprep.subr.bf16.mxu0 0
        %2519 = vmatpush1.bf16.msra.mxu0 %v2511
        %2520 = vmatprep.subr.bf16.mxu0 0
        %2521 = vmatpush1.bf16.msra.mxu0 %v2512
        %2522 = vmatprep.subr.bf16.mxu0 0
        %2523 = vmatpush1.bf16.msra.mxu0 0
        %2524 = vmatprep.subr.bf16.mxu0 0
        %2525 = vmatpush1.bf16.msra.mxu0 0
        %2526 = vmatprep.subr.bf16.mxu0 0
        %2527 = vmatpush1.bf16.msra.mxu0 0
        %2528 = vmatprep.subr.bf16.mxu0 0
        %2529 = vmatpush1.bf16.msra.mxu0 0
        %2530 = vmatprep.subr.bf16.mxu0 0
        %2531 = vmatpush1.bf16.msra.mxu0 0
        %2532 = vmatprep.subr.bf16.mxu0 0
        %2533 = vmatpush1.bf16.msra.mxu0 0
        %2534 = vmatprep.subr.bf16.mxu0 0
        %2535 = vmatpush1.bf16.msra.mxu0 0
        %2536 = vmatprep.subr.bf16.mxu0 0
        %2537 = vmatpush1.bf16.msra.mxu0 0
        %2538 = vmatprep.subr.bf16.mxu0 0
        %2539 = vmatpush1.bf16.msra.mxu0 0
        %2540 = vmatprep.subr.bf16.mxu0 0
        %2541 = vmatpush1.bf16.msra.mxu0 0
        %2542 = vmatprep.subr.bf16.mxu0 0
        %2543 = vmatpush1.bf16.msra.mxu0 0
        %2544 = vmatprep.subr.bf16.mxu0 0
        %2545 = vmatpush1.bf16.msra.mxu0 0
        %2546 = vmatprep.subr.bf16.mxu0 0
        %2547 = vmatpush1.bf16.msra.mxu0 0
        %2548 = vmatprep.subr.bf16.mxu0 0
        %2549 = vmatpush1.bf16.msra.mxu0 0
        %2550 = vmatprep.mubr.bf16.mxu0 0
        %2551 = vmatmul.mubr.bf16.gmra.mrb[0].mxu0 %v2516
        %v2552 = vpop.f32.mrb[0].mxu0
        %v2553 = vadd.f32 %v2501, %v2552
        %v2554 = vpop.f32.mrb[0].mxu0
        %v2555 = vpop.f32.mrb[0].mxu0
        %v2556 = vadd.f32 %v2501, %v2555
        %v2557 = vpop.f32.mrb[0].mxu0
        %2558 = vdwg.mxu0
        %v2559 = vmul.f32 %v2553, 0.5
        %v2560 = vmul.f32 %v2556, 0.5
        %v2561 = vmul.f32 %v2553, 0.70710677
        %v2562 = vmul.f32 %v2556, 0.70710677
        %v2563 = verf.f32.pop %v2561
        %v2564 = verf.f32.pop %v2562
        %v2565 = vadd.f32 %v2563, 1.0
        %v2566 = vadd.f32 %v2564, 1.0
        %v2567 = vmul.f32 %v2559, %v2565
        %v2568 = vmul.f32 %v2560, %v2566
        %v2569 = vpack.c.bf16 %v2568, %v2567
        %v2570 = vld [vmem:[%s643] sm:$0xf]
        %v2571 = vld [vmem:[%s643 + $0x4] sm:$0xf]
        %v2572 = vld [vmem:[%s643 + $0x8] sm:$0xf]
        %v2573 = vld [vmem:[%s643 + $0xc] sm:$0xf]
        %v2574 = vld [vmem:[%s643 + $0x10] sm:$0xf]
        %v2575 = vld [vmem:[%s643 + $0x14] sm:$0xf]
        %v2576 = vld [vmem:[%s643 + $0x18] sm:$0xf]
        %v2577 = vld [vmem:[%s643 + $0x1c] sm:$0xf]
        %v2578 = vld [vmem:[%s643 + $0x20] sm:$0xf]
        %v2579 = vld [vmem:[%s643 + $0x24] sm:$0xf]
        %v2580 = vld [vmem:[%s643 + $0x28] sm:$0xf]
        %v2581 = vld [vmem:[%s643 + $0x2c] sm:$0xf]
        %v2582 = vld [vmem:[%s643 + $0x30] sm:$0xf]
        %v2583 = vld [vmem:[%s643 + $0x34] sm:$0xf]
        %v2584 = vld [vmem:[%s643 + $0x38] sm:$0xf]
        %v2585 = vld [vmem:[%s643 + $0x3c] sm:$0xf]
        %v2586 = vld [vmem:[%s646] sm:$0x1]
        %v2588 = vlaneseq
        %v2589 = vshrl.u32 %v2588, 7
        %v2590 = vsub.s32 0, %v2589
        %v2591 = vrot.slane %v2586, %v2590
        %v2609 = vunpack.c.l.b16 %v2570
        %v2610 = vunpack.c.l.b16 %v2571
        %v2611 = vunpack.c.l.b16 %v2572
        %v2612 = vunpack.c.l.b16 %v2573
        %v2613 = vunpack.c.l.b16 %v2574
        %v2614 = vunpack.c.l.b16 %v2575
        %v2615 = vunpack.c.l.b16 %v2576
        %v2616 = vunpack.c.l.b16 %v2577
        %v2617 = vunpack.c.l.b16 %v2578
        %v2618 = vunpack.c.l.b16 %v2579
        %v2619 = vunpack.c.l.b16 %v2580
        %v2620 = vunpack.c.l.b16 %v2581
        %v2621 = vunpack.c.l.b16 %v2582
        %v2622 = vunpack.c.l.b16 %v2583
        %v2623 = vunpack.c.l.b16 %v2584
        %v2624 = vunpack.c.l.b16 %v2585
        %v2625 = vpack.c.b16 %v2610, %v2609
        %v2626 = vpack.c.b16 %v2612, %v2611
        %v2627 = vpack.c.b16 %v2614, %v2613
        %v2628 = vpack.c.b16 %v2616, %v2615
        %v2629 = vpack.c.b16 %v2618, %v2617
        %v2630 = vpack.c.b16 %v2620, %v2619
        %v2631 = vpack.c.b16 %v2622, %v2621
        %v2632 = vpack.c.b16 %v2624, %v2623
        %2641 = vmatprep.subr.bf16.mxu0 0
        %2642 = vmatpush1.bf16.msra.mxu0 %v2625
        %2643 = vmatprep.subr.bf16.mxu0 0
        %2644 = vmatpush1.bf16.msra.mxu0 %v2626
        %2645 = vmatprep.subr.bf16.mxu0 0
        %2646 = vmatpush1.bf16.msra.mxu0 %v2627
        %2647 = vmatprep.subr.bf16.mxu0 0
        %2648 = vmatpush1.bf16.msra.mxu0 %v2628
        %2649 = vmatprep.subr.bf16.mxu0 0
        %2650 = vmatpush1.bf16.msra.mxu0 %v2629
        %2651 = vmatprep.subr.bf16.mxu0 0
        %2652 = vmatpush1.bf16.msra.mxu0 %v2630
        %2653 = vmatprep.subr.bf16.mxu0 0
        %2654 = vmatpush1.bf16.msra.mxu0 %v2631
        %2655 = vmatprep.subr.bf16.mxu0 0
        %2656 = vmatpush1.bf16.msra.mxu0 %v2632
        %2657 = vmatprep.subr.bf16.mxu0 0
        %2658 = vmatpush1.bf16.msra.mxu0 0
        %2659 = vmatprep.subr.bf16.mxu0 0
        %2660 = vmatpush1.bf16.msra.mxu0 0
        %2661 = vmatprep.subr.bf16.mxu0 0
        %2662 = vmatpush1.bf16.msra.mxu0 0
        %2663 = vmatprep.subr.bf16.mxu0 0
        %2664 = vmatpush1.bf16.msra.mxu0 0
        %2665 = vmatprep.subr.bf16.mxu0 0
        %2666 = vmatpush1.bf16.msra.mxu0 0
        %2667 = vmatprep.subr.bf16.mxu0 0
        %2668 = vmatpush1.bf16.msra.mxu0 0
        %2669 = vmatprep.subr.bf16.mxu0 0
        %2670 = vmatpush1.bf16.msra.mxu0 0
        %2671 = vmatprep.subr.bf16.mxu0 0
        %2672 = vmatpush1.bf16.msra.mxu0 0
        %2673 = vmatprep.mubr.bf16.mxu0 0
        %2674 = vmatmul.mubr.bf16.gmra.mrb[0].mxu0 %v2569
        %v2675 = vpop.f32.mrb[0].mxu0
        %v2676 = vadd.f32 %v2591, %v2675
        %v2677 = vpop.f32.mrb[0].mxu0
        %v2678 = vpop.f32.mrb[0].mxu0
        %v2679 = vadd.f32 %v2591, %v2678
        %v2680 = vpop.f32.mrb[0].mxu0
        %2681 = vdwg.mxu0
        %v2682 = vadd.f32 %v2445, %v2676
        %v2683 = vadd.f32 %v2446, %v2679
        %2684 = vst.msk [vmem:[#allocation2] sm:$0xff] %vm756, %v2682
        %2685 = vst.msk [vmem:[#allocation2 + $0x8] sm:$0xff] %vm756, %v2683
        %p2686 = scmp.eq.s32.totalorder %s32, 1
        // Predicated region
        $region115: #{tpu_custom_call.1} parent=75 // pred_check
          %p2687 = pneg %p2686
        $region116: #{tpu_custom_call.1} parent=75 // pred_check_branch
          %2689 = sbr.rel (%p2687) target = $region118
        $region117: #{tpu_custom_call.1} parent=75 // pred_region
          %2690 = vst.msk [vmem:[#allocation5] sm:$0xff] %vm756, %v2682
          %2691 = vst.msk [vmem:[#allocation5 + $0x8] sm:$0xff] %vm756, %v2683
        $region118: #{tpu_custom_call.1} parent=75 // pred_fallthru
          _
        // Predicated region
        $region119: #{tpu_custom_call.1} parent=75 // pred_check
          %p2692 = pneg %p411
        $region120: #{tpu_custom_call.1} parent=75 // pred_check_branch
          %2694 = sbr.rel (%p2692) target = $region122
        $region121: #{tpu_custom_call.1} parent=75 // pred_region
          %s2695 = smul.u32 2, %s31
          %s2697 = ssub.s32 256, 256
          %2698 = vsyncadd [#allocation6], %s2697
          %s2699 = smul.addr %s2695, 128
          %s2700 = scalar_lea.hbm %s15, %s2699
          %s2701 = sshll.u32 [#allocation5], 4
          %s2702 = int_to_ptr.vmem [resolvable:$true] %s2701
          %2707 = dma.vmem_to_hbm [thread:$0]  %s2702, 256, %s2700, [#allocation6], 128, 128, 8
        $region122: #{tpu_custom_call.1} parent=75 // pred_fallthru
          _
        // Predicated region
        $region123: #{tpu_custom_call.1} parent=75 // pred_check
          %p2708 = pneg %p411
        $region124: #{tpu_custom_call.1} parent=75 // pred_check_branch
          %2710 = sbr.rel (%p2708) target = $region126
        $region125: #{tpu_custom_call.1} parent=75 // pred_region
          %2711 = dma.done [#allocation6], 256
        $region126: #{tpu_custom_call.1} parent=75 // pred_fallthru
          _
      $region76: #{tpu_custom_call.1} parent=5 // pred_fallthru
        _
      %p2712 = scmp.le.s32.totalorder 2, %s22
      // Predicated region
      $region127: #{tpu_custom_call.1} parent=5 // pred_check
        %p2713 = pneg %p2712
      $region128: #{tpu_custom_call.1} parent=5 // pred_check_branch
        %2715 = sbr.rel (%p2713) target = $region130
      $region129: #{tpu_custom_call.1} parent=5 // pred_region
        %s2716 = ssub.s32 %s22, 2
      $region130: #{tpu_custom_call.1} parent=5 // pred_fallthru
        _
    $region6: #{tpu_custom_call.1} parent=1 // loop_footer
      %s26 = sadd.s32 1, %s22
    $region7: #{tpu_custom_call.1} parent=1 // loop_footer_branch
      %21 = sbr.rel target = $region3
    $region8: #{tpu_custom_call.1} parent=1 // loop_exit
      _
    %2717 = vsyncpa [#allocation6], 1
    %s2718 = scalar_lea.sflag [#allocation6], 1
    %2719 = vsyncpa %s2718, 1
  %2720 = vsyncmov [#allocation4]
  %s2721 = vpop.sfrf %2720
  %p2722 = scmp.eq.s32.totalorder %s2721, 0
  %p2723 = pneg %p2722
  %2725 = shalt.err (%p2723)

</llo_original>
